<compile_context>
chip_gen: v7x
topology: tpu7x:2x2x1
jax: 0.10.0
libtpu: 0.0.40
codegen_flags: <defaults>
</compile_context>

<pallas_src>
import functools

import jax
import jax.numpy as jnp
from jax.experimental import pallas as pl
from jax.experimental.pallas import tpu as pltpu


def _round_up(x, m):
    return (x + m - 1) // m * m


# ---------------------------------------------------------------------------
# fused Inception kernel
# ---------------------------------------------------------------------------
def inception_kernel(x_ref, wb_ref, wwide_ref, w4_ref, gamma_ref, beta_ref,
                     out_ref, zb_pad, unfold, xp_pad, zmax_sc,
                     *, n_batch, length, pmax, f, cb):
    L = length
    lp = L + 2 * pmax          # per-batch padded length of the bottleneck
    kmax = 2 * pmax + 1        # largest kernel size

    # Pad regions must be zero (conv zero-padding) / -inf (MaxPool1d padding).
    zb_pad[...] = jnp.zeros(zb_pad.shape, zb_pad.dtype)
    unfold[...] = jnp.zeros(unfold.shape, unfold.dtype)
    xp_pad[...] = jnp.full(xp_pad.shape, -jnp.inf, xp_pad.dtype)

    x2d = x_ref[...]                                           # (Cin, N*L)

    # ---- bottleneck 1x1 conv, batched over N: ONE MXU matmul --------------
    zb = jnp.dot(wb_ref[...], x2d,
                 preferred_element_type=jnp.float32)           # (Cb, N*L)

    # scatter into per-batch zero-padded layout (conv zero padding)
    for n in range(n_batch):
        zb_pad[:, n * lp + pmax:n * lp + pmax + L] = zb[:, n * L:(n + 1) * L]

    # ---- im2col unfold (built once): row block t = tap-t shifted bottleneck
    for n in range(n_batch):
        base = n * lp
        for t in range(kmax):
            unfold[t * cb:(t + 1) * cb, n * L:(n + 1) * L] = \
                zb_pad[:, base + t:base + t + L]

    # ---- all three wide convolutions as ONE matmul (contraction = Kpad) ---
    zwide = jnp.dot(wwide_ref[...], unfold[...],
                    preferred_element_type=jnp.float32)        # (3F, N*L)

    # ---- MaxPool1d(kernel=3, stride=1, padding=1), per batch element ------
    for n in range(n_batch):
        xp_pad[:, 1:1 + L] = x2d[:, n * L:(n + 1) * L]
        zmax_sc[:, n * L:(n + 1) * L] = jnp.maximum(
            jnp.maximum(xp_pad[:, 0:L], xp_pad[:, 1:1 + L]),
            xp_pad[:, 2:2 + L])

    # ---- 1x1 conv on the maxpool branch: ONE matmul ------------------------
    z4 = jnp.dot(w4_ref[...], zmax_sc[...],
                 preferred_element_type=jnp.float32)           # (F, N*L)

    # ---- BatchNorm1d (training mode: batch stats, biased var) + ReLU ------
    # BN stats are per-channel over (N, L) == axis 1 of the 2D layout, so the
    # two branch slabs are normalized independently and written straight into
    # the lane-dense output (no duplicate pre-BN accumulator buffer).
    gam = gamma_ref[...]
    bet = beta_ref[...]

    def bn_relu(z, g, b):
        mean = jnp.mean(z, axis=1, keepdims=True)
        var = jnp.mean((z - mean) ** 2, axis=1, keepdims=True)
        zn = (z - mean) * jax.lax.rsqrt(var + 1e-5) * g + b
        return jnp.maximum(zn, 0.0)

    out_ref[0:3 * f, :] = bn_relu(zwide, gam[0:3 * f], bet[0:3 * f])
    out_ref[3 * f:4 * f, :] = bn_relu(z4, gam[3 * f:4 * f], bet[3 * f:4 * f])


# ---------------------------------------------------------------------------
# fused residual kernel: ReLU( Z + BN( Conv1x1(X) + bias ) )
# ---------------------------------------------------------------------------
def residual_kernel(x_ref, z_ref, w_ref, b_ref, gamma_ref, beta_ref, out_ref):
    r = jnp.dot(w_ref[...], x_ref[...],
                preferred_element_type=jnp.float32) + b_ref[...]
    mean = jnp.mean(r, axis=1, keepdims=True)
    var = jnp.mean((r - mean) ** 2, axis=1, keepdims=True)
    rn = (r - mean) * jax.lax.rsqrt(var + 1e-5) * gamma_ref[...] + beta_ref[...]
    out_ref[...] = jnp.maximum(z_ref[...] + rn, 0.0)


# ---------------------------------------------------------------------------
# wrappers
# ---------------------------------------------------------------------------
def _pack_wide_weights(w1, w2, w3, kmax, kpad):
    """Zero-pack the three wide-conv weights (F, Cb, K) into one (3F, kpad)
    matrix whose column (t*Cb + c) multiplies tap t / channel c of the im2col
    unfold buffer.  kpad rounds the contraction dim up to a multiple of 128."""
    parts = []
    for w in (w1, w2, w3):
        f, cb, k = w.shape
        off = (kmax - k) // 2                          # = Pmax - K//2
        buf = jnp.zeros((f, kmax, cb), w.dtype)
        buf = buf.at[:, off:off + k, :].set(jnp.transpose(w, (0, 2, 1)))
        parts.append(buf.reshape(f, kmax * cb))
    ww = jnp.concatenate(parts, axis=0)                # (3F, kmax*Cb)
    return jnp.pad(ww, ((0, 0), (0, kpad - kmax * cb)))


def _inception_2d(x2d, p, *, n_batch, length, kmax):
    cin, nl = x2d.shape
    wb = p["wb"][:, :, 0]                              # (Cb, Cin)
    w4 = p["w4"][:, :, 0]                              # (F, Cin)
    cb = wb.shape[0]
    f = p["w1"].shape[0]
    pmax = kmax // 2
    kpad = _round_up(kmax * cb, 128)                   # 128-aligned contraction
    wwide = _pack_wide_weights(p["w1"], p["w2"], p["w3"], kmax, kpad)
    gamma = p["gamma"].reshape(4 * f, 1)
    beta = p["beta"].reshape(4 * f, 1)

    kernel = functools.partial(inception_kernel, n_batch=n_batch,
                               length=length, pmax=pmax, f=f, cb=cb)
    grid_spec = pltpu.PrefetchScalarGridSpec(
        num_scalar_prefetch=0,
        grid=(1,),
        in_specs=[pl.BlockSpec(x2d.shape, lambda i: (0, 0)),
                  pl.BlockSpec(wb.shape, lambda i: (0, 0)),
                  pl.BlockSpec(wwide.shape, lambda i: (0, 0)),
                  pl.BlockSpec(w4.shape, lambda i: (0, 0)),
                  pl.BlockSpec(gamma.shape, lambda i: (0, 0)),
                  pl.BlockSpec(beta.shape, lambda i: (0, 0))],
        out_specs=pl.BlockSpec((4 * f, nl), lambda i: (0, 0)),
        scratch_shapes=[
            pltpu.VMEM((cb, n_batch * (length + 2 * pmax)), jnp.float32),
            pltpu.VMEM((kpad, nl), jnp.float32),          # im2col unfold
            pltpu.VMEM((cin, length + 2), jnp.float32),   # -inf padded (maxpool)
            pltpu.VMEM((cin, nl), jnp.float32),           # pooled input
        ],
    )
    return pl.pallas_call(
        kernel,
        out_shape=jax.ShapeDtypeStruct((4 * f, nl), jnp.float32),
        grid_spec=grid_spec,
        compiler_params=pltpu.CompilerParams(
            dimension_semantics=("arbitrary",)),
    )(x2d, wb, wwide, w4, gamma, beta)


def _residual_2d(x2d, z2d, res):
    cin, nl = x2d.shape
    cout = z2d.shape[0]
    w = res["w"][:, :, 0]
    b = res["b"].reshape(cout, 1)
    gamma = res["gamma"].reshape(cout, 1)
    beta = res["beta"].reshape(cout, 1)
    grid_spec = pltpu.PrefetchScalarGridSpec(
        num_scalar_prefetch=0,
        grid=(1,),
        in_specs=[pl.BlockSpec(x2d.shape, lambda i: (0, 0)),
                  pl.BlockSpec(z2d.shape, lambda i: (0, 0)),
                  pl.BlockSpec(w.shape, lambda i: (0, 0)),
                  pl.BlockSpec(b.shape, lambda i: (0, 0)),
                  pl.BlockSpec(gamma.shape, lambda i: (0, 0)),
                  pl.BlockSpec(beta.shape, lambda i: (0, 0))],
        out_specs=pl.BlockSpec((cout, nl), lambda i: (0, 0)),
    )
    return pl.pallas_call(
        residual_kernel,
        out_shape=jax.ShapeDtypeStruct((cout, nl), jnp.float32),
        grid_spec=grid_spec,
        compiler_params=pltpu.CompilerParams(
            dimension_semantics=("arbitrary",)),
    )(x2d, z2d, w, b, gamma, beta)


@functools.partial(jax.jit, static_argnames=("kmax",))
def inception_block_forward(x, incep_params, res_params, *, kmax):
    n, cin, length = x.shape
    # lane-dense layout: column n*L + l  <->  (batch n, position l)
    x2d = jnp.transpose(x, (1, 0, 2)).reshape(cin, n * length)
    z = x2d
    for p in incep_params:
        z = _inception_2d(z, p, n_batch=n, length=length, kmax=kmax)
    out2d = _residual_2d(x2d, z, res_params)
    cout = out2d.shape[0]
    return out2d.reshape(cout, n, length).transpose(1, 0, 2)


# ---------------------------------------------------------------------------
# pure-JAX reference of the PyTorch forward (for verification)
# ---------------------------------------------------------------------------
def _ref_inception(x, p):
    n, cin, length = x.shape
    zb = jnp.einsum("oc,ncl->nol", p["wb"][:, :, 0], x)
    xpad = jnp.pad(x, ((0, 0), (0, 0), (1, 1)), constant_values=-jnp.inf)
    zmax = jnp.maximum(
        jnp.maximum(xpad[:, :, 0:length], xpad[:, :, 1:1 + length]),
        xpad[:, :, 2:2 + length])

    def conv(z, w):
        k = w.shape[2]
        return jax.lax.conv_general_dilated(
            z, w, window_strides=(1,), padding=[(k // 2, k // 2)],
            dimension_numbers=("NCH", "OIH", "NCH"))

    z = jnp.concatenate(
        [conv(zb, p["w1"]), conv(zb, p["w2"]), conv(zb, p["w3"]),
         jnp.einsum("oc,ncl->nol", p["w4"][:, :, 0], zmax)], axis=1)
    mean = z.mean(axis=(0, 2), keepdims=True)
    var = ((z - mean) ** 2).mean(axis=(0, 2), keepdims=True)
    zn = (z - mean) / jnp.sqrt(var + 1e-5)
    zn = zn * p["gamma"].reshape(1, -1, 1) + p["beta"].reshape(1, -1, 1)
    return jnp.maximum(zn, 0.0)


def reference_block(x, incep_params, res_params):
    z = x
    for p in incep_params:
        z = _ref_inception(z, p)
    r = jnp.einsum("oc,ncl->nol", res_params["w"][:, :, 0], x) \
        + res_params["b"].reshape(1, -1, 1)
    mean = r.mean(axis=(0, 2), keepdims=True)
    var = ((r - mean) ** 2).mean(axis=(0, 2), keepdims=True)
    rn = (r - mean) / jnp.sqrt(var + 1e-5)
    rn = rn * res_params["gamma"].reshape(1, -1, 1) \
        + res_params["beta"].reshape(1, -1, 1)
    return jnp.maximum(z + rn, 0.0)


if __name__ == "__main__":
    # Small shapes: N*L = 128 = one full lane width; in_channels > 1 so every
    # bottleneck conv is active (matching the module's branching).
    N, Cin, L = 2, 4, 64
    n_filters = 8                       # out channels per Inception = 4*8 = 32
    bottleneck_channels = 8
    kernel_sizes = (9, 19, 39)
    kmax = max(kernel_sizes)

    key = jax.random.PRNGKey(0)
    keys = iter(jax.random.split(key, 32))

    x = jax.random.normal(next(keys), (N, Cin, L), jnp.float32)

    def make_inception_params(in_ch):
        return {
            "wb": 0.1 * jax.random.normal(
                next(keys), (bottleneck_channels, in_ch, 1), jnp.float32),
            "w1": 0.1 * jax.random.normal(
                next(keys), (n_filters, bottleneck_channels, kernel_sizes[0]),
                jnp.float32),
            "w2": 0.1 * jax.random.normal(
                next(keys), (n_filters, bottleneck_channels, kernel_sizes[1]),
                jnp.float32),
            "w3": 0.1 * jax.random.normal(
                next(keys), (n_filters, bottleneck_channels, kernel_sizes[2]),
                jnp.float32),
            "w4": 0.1 * jax.random.normal(
                next(keys), (n_filters, in_ch, 1), jnp.float32),
            # BatchNorm1d default init: weight=1, bias=0
            "gamma": jnp.ones((4 * n_filters,), jnp.float32),
            "beta": jnp.zeros((4 * n_filters,), jnp.float32),
        }

    incep_params = (make_inception_params(Cin),
                    make_inception_params(4 * n_filters),
                    make_inception_params(4 * n_filters))
    res_params = {
        "w": 0.1 * jax.random.normal(
            next(keys), (4 * n_filters, Cin, 1), jnp.float32),
        "b": 0.1 * jax.random.normal(
            next(keys), (4 * n_filters,), jnp.float32),
        "gamma": jnp.ones((4 * n_filters,), jnp.float32),
        "beta": jnp.zeros((4 * n_filters,), jnp.float32),
    }

    out = inception_block_forward(x, incep_params, res_params, kmax=kmax)
    out = jax.block_until_ready(out)

    ref = reference_block(x, incep_params, res_params)
    assert out.shape == (N, 4 * n_filters, L)
    err = float(jnp.max(jnp.abs(out - ref)))
    assert jnp.allclose(out, ref, atol=3e-3, rtol=3e-3), err

    print("KERNEL_OK")
</pallas_src>

<mosaic_0001>
module attributes {stable_mosaic.version = 11 : i64} {
  func.func @residual_kernel(%arg0: i32, %arg1: memref<4x128xf32, #tpu.memory_space<vmem>>, %arg2: memref<32x128xf32, #tpu.memory_space<vmem>>, %arg3: memref<32x4xf32, #tpu.memory_space<vmem>>, %arg4: memref<32x1xf32, #tpu.memory_space<vmem>>, %arg5: memref<32x1xf32, #tpu.memory_space<vmem>>, %arg6: memref<32x1xf32, #tpu.memory_space<vmem>>, %arg7: memref<32x128xf32, #tpu.memory_space<vmem>>) attributes {dimension_semantics = [#tpu.dimension_semantics<arbitrary>], iteration_bounds = array<i64: 1>, scalar_prefetch = 0 : i64, scratch_operands = 0 : i64, tpu.core_type = #tpu.core_type<tc>, window_params = [{pipeline_mode = #tpu.pipeline_mode<synchronous>, transform_indices = @transform_0, window_bounds = array<i64: 4, 128>}, {pipeline_mode = #tpu.pipeline_mode<synchronous>, transform_indices = @transform_1, window_bounds = array<i64: 32, 128>}, {pipeline_mode = #tpu.pipeline_mode<synchronous>, transform_indices = @transform_2, window_bounds = array<i64: 32, 4>}, {pipeline_mode = #tpu.pipeline_mode<synchronous>, transform_indices = @transform_3, window_bounds = array<i64: 32, 1>}, {pipeline_mode = #tpu.pipeline_mode<synchronous>, transform_indices = @transform_4, window_bounds = array<i64: 32, 1>}, {pipeline_mode = #tpu.pipeline_mode<synchronous>, transform_indices = @transform_5, window_bounds = array<i64: 32, 1>}, {pipeline_mode = #tpu.pipeline_mode<synchronous>, transform_indices = @transform_6, window_bounds = array<i64: 32, 128>}]} {
    %c0 = arith.constant 0 : index
    %c0_0 = arith.constant 0 : index
    %0 = vector.load %arg3[%c0, %c0_0] : memref<32x4xf32, #tpu.memory_space<vmem>>, vector<32x4xf32>
    %c0_1 = arith.constant 0 : index
    %c0_2 = arith.constant 0 : index
    %1 = vector.load %arg1[%c0_1, %c0_2] : memref<4x128xf32, #tpu.memory_space<vmem>>, vector<4x128xf32>
    %cst = arith.constant dense<0.000000e+00> : vector<32x128xf32>
    %2 = tpu.matmul %0, %1, %cst {dimension_numbers = #tpu.dot_dimension_numbers<[1], [0], [0], [1], [0, 0, 1, 1], [], []>} : vector<32x4xf32>, vector<4x128xf32>, vector<32x128xf32> -> vector<32x128xf32>
    %c0_3 = arith.constant 0 : index
    %c0_4 = arith.constant 0 : index
    %3 = vector.load %arg4[%c0_3, %c0_4] : memref<32x1xf32, #tpu.memory_space<vmem>>, vector<32x1xf32>
    %4 = vector.broadcast %3 : vector<32x1xf32> to vector<32x128xf32>
    %5 = arith.addf %2, %4 : vector<32x128xf32>
    %cst_5 = arith.constant dense<0.000000e+00> : vector<32xf32>
    %6 = vector.multi_reduction <add>, %5, %cst_5 [1] : vector<32x128xf32> to vector<32xf32>
    %7 = vector.shape_cast %6 : vector<32xf32> to vector<32x1xf32>
    %cst_6 = arith.constant 1.280000e+02 : f32
    %8 = vector.broadcast %cst_6 : f32 to vector<32x1xf32>
    %9 = arith.divf %7, %8 : vector<32x1xf32>
    %10 = vector.broadcast %9 : vector<32x1xf32> to vector<32x128xf32>
    %11 = arith.subf %5, %10 : vector<32x128xf32>
    %12 = arith.mulf %11, %11 : vector<32x128xf32>
    %cst_7 = arith.constant dense<0.000000e+00> : vector<32xf32>
    %13 = vector.multi_reduction <add>, %12, %cst_7 [1] : vector<32x128xf32> to vector<32xf32>
    %14 = vector.shape_cast %13 : vector<32xf32> to vector<32x1xf32>
    %cst_8 = arith.constant 1.280000e+02 : f32
    %15 = vector.broadcast %cst_8 : f32 to vector<32x1xf32>
    %16 = arith.divf %14, %15 : vector<32x1xf32>
    %17 = vector.broadcast %9 : vector<32x1xf32> to vector<32x128xf32>
    %18 = arith.subf %5, %17 : vector<32x128xf32>
    %cst_9 = arith.constant 9.99999974E-6 : f32
    %19 = vector.broadcast %cst_9 : f32 to vector<32x1xf32>
    %20 = arith.addf %16, %19 : vector<32x1xf32>
    %21 = math.rsqrt %20 : vector<32x1xf32>
    %22 = vector.broadcast %21 : vector<32x1xf32> to vector<32x128xf32>
    %23 = arith.mulf %18, %22 : vector<32x128xf32>
    %c0_10 = arith.constant 0 : index
    %c0_11 = arith.constant 0 : index
    %24 = vector.load %arg5[%c0_10, %c0_11] : memref<32x1xf32, #tpu.memory_space<vmem>>, vector<32x1xf32>
    %25 = vector.broadcast %24 : vector<32x1xf32> to vector<32x128xf32>
    %26 = arith.mulf %23, %25 : vector<32x128xf32>
    %c0_12 = arith.constant 0 : index
    %c0_13 = arith.constant 0 : index
    %27 = vector.load %arg6[%c0_12, %c0_13] : memref<32x1xf32, #tpu.memory_space<vmem>>, vector<32x1xf32>
    %28 = vector.broadcast %27 : vector<32x1xf32> to vector<32x128xf32>
    %29 = arith.addf %26, %28 : vector<32x128xf32>
    %c0_14 = arith.constant 0 : index
    %c0_15 = arith.constant 0 : index
    %30 = vector.load %arg2[%c0_14, %c0_15] : memref<32x128xf32, #tpu.memory_space<vmem>>, vector<32x128xf32>
    %31 = arith.addf %30, %29 : vector<32x128xf32>
    %cst_16 = arith.constant 0.000000e+00 : f32
    %32 = vector.broadcast %cst_16 : f32 to vector<32x128xf32>
    %33 = arith.maximumf %31, %32 : vector<32x128xf32>
    %c0_17 = arith.constant 0 : index
    %c0_18 = arith.constant 0 : index
    %34 = vector.load %arg7[%c0_17, %c0_18] : memref<32x128xf32, #tpu.memory_space<vmem>>, vector<32x128xf32>
    tpu.vector_store %arg7[%c0_17, %c0_18], %33 {strides = array<i32>} : memref<32x128xf32, #tpu.memory_space<vmem>>, vector<32x128xf32>,
    return
  }
  func.func @transform_0(%arg0: i32) -> (i32, i32) {
    %c0_i32 = arith.constant 0 : i32
    %c0_i32_0 = arith.constant 0 : i32
    %c0_i32_1 = arith.constant 0 : i32
    return %c0_i32, %c0_i32_0 : i32, i32
  }
  func.func @transform_1(%arg0: i32) -> (i32, i32) {
    %c0_i32 = arith.constant 0 : i32
    %c0_i32_0 = arith.constant 0 : i32
    %c0_i32_1 = arith.constant 0 : i32
    return %c0_i32, %c0_i32_0 : i32, i32
  }
  func.func @transform_2(%arg0: i32) -> (i32, i32) {
    %c0_i32 = arith.constant 0 : i32
    %c0_i32_0 = arith.constant 0 : i32
    %c0_i32_1 = arith.constant 0 : i32
    return %c0_i32, %c0_i32_0 : i32, i32
  }
  func.func @transform_3(%arg0: i32) -> (i32, i32) {
    %c0_i32 = arith.constant 0 : i32
    %c0_i32_0 = arith.constant 0 : i32
    %c0_i32_1 = arith.constant 0 : i32
    return %c0_i32, %c0_i32_0 : i32, i32
  }
  func.func @transform_4(%arg0: i32) -> (i32, i32) {
    %c0_i32 = arith.constant 0 : i32
    %c0_i32_0 = arith.constant 0 : i32
    %c0_i32_1 = arith.constant 0 : i32
    return %c0_i32, %c0_i32_0 : i32, i32
  }
  func.func @transform_5(%arg0: i32) -> (i32, i32) {
    %c0_i32 = arith.constant 0 : i32
    %c0_i32_0 = arith.constant 0 : i32
    %c0_i32_1 = arith.constant 0 : i32
    return %c0_i32, %c0_i32_0 : i32, i32
  }
  func.func @transform_6(%arg0: i32) -> (i32, i32) {
    %c0_i32 = arith.constant 0 : i32
    %c0_i32_0 = arith.constant 0 : i32
    %c0_i32_1 = arith.constant 0 : i32
    return %c0_i32, %c0_i32_0 : i32, i32
  }
}

module attributes {stable_mosaic.version = 11 : i64} {
  func.func @inception_kernel(%arg0: i32, %arg1: memref<4x128xf32, #tpu.memory_space<vmem>>, %arg2: memref<8x4xf32, #tpu.memory_space<vmem>>, %arg3: memref<24x384xf32, #tpu.memory_space<vmem>>, %arg4: memref<8x4xf32, #tpu.memory_space<vmem>>, %arg5: memref<32x1xf32, #tpu.memory_space<vmem>>, %arg6: memref<32x1xf32, #tpu.memory_space<vmem>>, %arg7: memref<32x128xf32, #tpu.memory_space<vmem>>, %arg8: memref<8x204xf32, #tpu.memory_space<vmem>>, %arg9: memref<384x128xf32, #tpu.memory_space<vmem>>, %arg10: memref<4x66xf32, #tpu.memory_space<vmem>>, %arg11: memref<4x128xf32, #tpu.memory_space<vmem>>) attributes {dimension_semantics = [#tpu.dimension_semantics<arbitrary>], iteration_bounds = array<i64: 1>, scalar_prefetch = 0 : i64, scratch_operands = 4 : i64, tpu.core_type = #tpu.core_type<tc>, window_params = [{pipeline_mode = #tpu.pipeline_mode<synchronous>, transform_indices = @transform_0, window_bounds = array<i64: 4, 128>}, {pipeline_mode = #tpu.pipeline_mode<synchronous>, transform_indices = @transform_1, window_bounds = array<i64: 8, 4>}, {pipeline_mode = #tpu.pipeline_mode<synchronous>, transform_indices = @transform_2, window_bounds = array<i64: 24, 384>}, {pipeline_mode = #tpu.pipeline_mode<synchronous>, transform_indices = @transform_3, window_bounds = array<i64: 8, 4>}, {pipeline_mode = #tpu.pipeline_mode<synchronous>, transform_indices = @transform_4, window_bounds = array<i64: 32, 1>}, {pipeline_mode = #tpu.pipeline_mode<synchronous>, transform_indices = @transform_5, window_bounds = array<i64: 32, 1>}, {pipeline_mode = #tpu.pipeline_mode<synchronous>, transform_indices = @transform_6, window_bounds = array<i64: 32, 128>}]} {
    %cst = arith.constant 0.000000e+00 : f32
    %0 = vector.broadcast %cst : f32 to vector<8x204xf32>
    %c0 = arith.constant 0 : index
    %c0_0 = arith.constant 0 : index
    %1 = vector.load %arg8[%c0, %c0_0] : memref<8x204xf32, #tpu.memory_space<vmem>>, vector<8x204xf32>
    tpu.vector_store %arg8[%c0, %c0_0], %0 {strides = array<i32>} : memref<8x204xf32, #tpu.memory_space<vmem>>, vector<8x204xf32>,
    %cst_1 = arith.constant 0.000000e+00 : f32
    %2 = vector.broadcast %cst_1 : f32 to vector<384x128xf32>
    %c0_2 = arith.constant 0 : index
    %c0_3 = arith.constant 0 : index
    %3 = vector.load %arg9[%c0_2, %c0_3] : memref<384x128xf32, #tpu.memory_space<vmem>>, vector<384x128xf32>
    tpu.vector_store %arg9[%c0_2, %c0_3], %2 {strides = array<i32>} : memref<384x128xf32, #tpu.memory_space<vmem>>, vector<384x128xf32>,
    %cst_4 = arith.constant 0xFF800000 : f32
    %4 = vector.broadcast %cst_4 : f32 to vector<4x66xf32>
    %c0_5 = arith.constant 0 : index
    %c0_6 = arith.constant 0 : index
    %5 = vector.load %arg10[%c0_5, %c0_6] : memref<4x66xf32, #tpu.memory_space<vmem>>, vector<4x66xf32>
    tpu.vector_store %arg10[%c0_5, %c0_6], %4 {strides = array<i32>} : memref<4x66xf32, #tpu.memory_space<vmem>>, vector<4x66xf32>,
    %c0_7 = arith.constant 0 : index
    %c0_8 = arith.constant 0 : index
    %6 = vector.load %arg1[%c0_7, %c0_8] : memref<4x128xf32, #tpu.memory_space<vmem>>, vector<4x128xf32>
    %c0_9 = arith.constant 0 : index
    %c0_10 = arith.constant 0 : index
    %7 = vector.load %arg2[%c0_9, %c0_10] : memref<8x4xf32, #tpu.memory_space<vmem>>, vector<8x4xf32>
    %cst_11 = arith.constant dense<0.000000e+00> : vector<8x128xf32>
    %8 = tpu.matmul %7, %6, %cst_11 {dimension_numbers = #tpu.dot_dimension_numbers<[1], [0], [0], [1], [0, 0, 1, 1], [], []>} : vector<8x4xf32>, vector<4x128xf32>, vector<8x128xf32> -> vector<8x128xf32>
    %9 = vector.extract_strided_slice %8 {offsets = [0, 0], sizes = [8, 64], strides = [1, 1]} : vector<8x128xf32> to vector<8x64xf32>
    %c0_12 = arith.constant 0 : index
    %c19 = arith.constant 19 : index
    %10 = vector.load %arg8[%c0_12, %c19] : memref<8x204xf32, #tpu.memory_space<vmem>>, vector<8x64xf32>
    tpu.vector_store %arg8[%c0_12, %c19], %9 {strides = array<i32>} : memref<8x204xf32, #tpu.memory_space<vmem>>, vector<8x64xf32>,
    %11 = vector.extract_strided_slice %8 {offsets = [0, 64], sizes = [8, 64], strides = [1, 1]} : vector<8x128xf32> to vector<8x64xf32>
    %c0_13 = arith.constant 0 : index
    %c121 = arith.constant 121 : index
    %12 = vector.load %arg8[%c0_13, %c121] : memref<8x204xf32, #tpu.memory_space<vmem>>, vector<8x64xf32>
    tpu.vector_store %arg8[%c0_13, %c121], %11 {strides = array<i32>} : memref<8x204xf32, #tpu.memory_space<vmem>>, vector<8x64xf32>,
    %c0_14 = arith.constant 0 : index
    %c0_15 = arith.constant 0 : index
    %13 = vector.load %arg8[%c0_14, %c0_15] : memref<8x204xf32, #tpu.memory_space<vmem>>, vector<8x64xf32>
    %c0_16 = arith.constant 0 : index
    %c0_17 = arith.constant 0 : index
    %14 = vector.load %arg9[%c0_16, %c0_17] : memref<384x128xf32, #tpu.memory_space<vmem>>, vector<8x64xf32>
    tpu.vector_store %arg9[%c0_16, %c0_17], %13 {strides = array<i32>} : memref<384x128xf32, #tpu.memory_space<vmem>>, vector<8x64xf32>,
    %c0_18 = arith.constant 0 : index
    %c1 = arith.constant 1 : index
    %15 = vector.load %arg8[%c0_18, %c1] : memref<8x204xf32, #tpu.memory_space<vmem>>, vector<8x64xf32>
    %c8 = arith.constant 8 : index
    %c0_19 = arith.constant 0 : index
    %16 = vector.load %arg9[%c8, %c0_19] : memref<384x128xf32, #tpu.memory_space<vmem>>, vector<8x64xf32>
    tpu.vector_store %arg9[%c8, %c0_19], %15 {strides = array<i32>} : memref<384x128xf32, #tpu.memory_space<vmem>>, vector<8x64xf32>,
    %c0_20 = arith.constant 0 : index
    %c2 = arith.constant 2 : index
    %17 = vector.load %arg8[%c0_20, %c2] : memref<8x204xf32, #tpu.memory_space<vmem>>, vector<8x64xf32>
    %c16 = arith.constant 16 : index
    %c0_21 = arith.constant 0 : index
    %18 = vector.load %arg9[%c16, %c0_21] : memref<384x128xf32, #tpu.memory_space<vmem>>, vector<8x64xf32>
    tpu.vector_store %arg9[%c16, %c0_21], %17 {strides = array<i32>} : memref<384x128xf32, #tpu.memory_space<vmem>>, vector<8x64xf32>,
    %c0_22 = arith.constant 0 : index
    %c3 = arith.constant 3 : index
    %19 = vector.load %arg8[%c0_22, %c3] : memref<8x204xf32, #tpu.memory_space<vmem>>, vector<8x64xf32>
    %c24 = arith.constant 24 : index
    %c0_23 = arith.constant 0 : index
    %20 = vector.load %arg9[%c24, %c0_23] : memref<384x128xf32, #tpu.memory_space<vmem>>, vector<8x64xf32>
    tpu.vector_store %arg9[%c24, %c0_23], %19 {strides = array<i32>} : memref<384x128xf32, #tpu.memory_space<vmem>>, vector<8x64xf32>,
    %c0_24 = arith.constant 0 : index
    %c4 = arith.constant 4 : index
    %21 = vector.load %arg8[%c0_24, %c4] : memref<8x204xf32, #tpu.memory_space<vmem>>, vector<8x64xf32>
    %c32 = arith.constant 32 : index
    %c0_25 = arith.constant 0 : index
    %22 = vector.load %arg9[%c32, %c0_25] : memref<384x128xf32, #tpu.memory_space<vmem>>, vector<8x64xf32>
    tpu.vector_store %arg9[%c32, %c0_25], %21 {strides = array<i32>} : memref<384x128xf32, #tpu.memory_space<vmem>>, vector<8x64xf32>,
    %c0_26 = arith.constant 0 : index
    %c5 = arith.constant 5 : index
    %23 = vector.load %arg8[%c0_26, %c5] : memref<8x204xf32, #tpu.memory_space<vmem>>, vector<8x64xf32>
    %c40 = arith.constant 40 : index
    %c0_27 = arith.constant 0 : index
    %24 = vector.load %arg9[%c40, %c0_27] : memref<384x128xf32, #tpu.memory_space<vmem>>, vector<8x64xf32>
    tpu.vector_store %arg9[%c40, %c0_27], %23 {strides = array<i32>} : memref<384x128xf32, #tpu.memory_space<vmem>>, vector<8x64xf32>,
    %c0_28 = arith.constant 0 : index
    %c6 = arith.constant 6 : index
    %25 = vector.load %arg8[%c0_28, %c6] : memref<8x204xf32, #tpu.memory_space<vmem>>, vector<8x64xf32>
    %c48 = arith.constant 48 : index
    %c0_29 = arith.constant 0 : index
    %26 = vector.load %arg9[%c48, %c0_29] : memref<384x128xf32, #tpu.memory_space<vmem>>, vector<8x64xf32>
    tpu.vector_store %arg9[%c48, %c0_29], %25 {strides = array<i32>} : memref<384x128xf32, #tpu.memory_space<vmem>>, vector<8x64xf32>,
    %c0_30 = arith.constant 0 : index
    %c7 = arith.constant 7 : index
    %27 = vector.load %arg8[%c0_30, %c7] : memref<8x204xf32, #tpu.memory_space<vmem>>, vector<8x64xf32>
    %c56 = arith.constant 56 : index
    %c0_31 = arith.constant 0 : index
    %28 = vector.load %arg9[%c56, %c0_31] : memref<384x128xf32, #tpu.memory_space<vmem>>, vector<8x64xf32>
    tpu.vector_store %arg9[%c56, %c0_31], %27 {strides = array<i32>} : memref<384x128xf32, #tpu.memory_space<vmem>>, vector<8x64xf32>,
    %c0_32 = arith.constant 0 : index
    %c8_33 = arith.constant 8 : index
    %29 = vector.load %arg8[%c0_32, %c8_33] : memref<8x204xf32, #tpu.memory_space<vmem>>, vector<8x64xf32>
    %c64 = arith.constant 64 : index
    %c0_34 = arith.constant 0 : index
    %30 = vector.load %arg9[%c64, %c0_34] : memref<384x128xf32, #tpu.memory_space<vmem>>, vector<8x64xf32>
    tpu.vector_store %arg9[%c64, %c0_34], %29 {strides = array<i32>} : memref<384x128xf32, #tpu.memory_space<vmem>>, vector<8x64xf32>,
    %c0_35 = arith.constant 0 : index
    %c9 = arith.constant 9 : index
    %31 = vector.load %arg8[%c0_35, %c9] : memref<8x204xf32, #tpu.memory_space<vmem>>, vector<8x64xf32>
    %c72 = arith.constant 72 : index
    %c0_36 = arith.constant 0 : index
    %32 = vector.load %arg9[%c72, %c0_36] : memref<384x128xf32, #tpu.memory_space<vmem>>, vector<8x64xf32>
    tpu.vector_store %arg9[%c72, %c0_36], %31 {strides = array<i32>} : memref<384x128xf32, #tpu.memory_space<vmem>>, vector<8x64xf32>,
    %c0_37 = arith.constant 0 : index
    %c10 = arith.constant 10 : index
    %33 = vector.load %arg8[%c0_37, %c10] : memref<8x204xf32, #tpu.memory_space<vmem>>, vector<8x64xf32>
    %c80 = arith.constant 80 : index
    %c0_38 = arith.constant 0 : index
    %34 = vector.load %arg9[%c80, %c0_38] : memref<384x128xf32, #tpu.memory_space<vmem>>, vector<8x64xf32>
    tpu.vector_store %arg9[%c80, %c0_38], %33 {strides = array<i32>} : memref<384x128xf32, #tpu.memory_space<vmem>>, vector<8x64xf32>,
    %c0_39 = arith.constant 0 : index
    %c11 = arith.constant 11 : index
    %35 = vector.load %arg8[%c0_39, %c11] : memref<8x204xf32, #tpu.memory_space<vmem>>, vector<8x64xf32>
    %c88 = arith.constant 88 : index
    %c0_40 = arith.constant 0 : index
    %36 = vector.load %arg9[%c88, %c0_40] : memref<384x128xf32, #tpu.memory_space<vmem>>, vector<8x64xf32>
    tpu.vector_store %arg9[%c88, %c0_40], %35 {strides = array<i32>} : memref<384x128xf32, #tpu.memory_space<vmem>>, vector<8x64xf32>,
    %c0_41 = arith.constant 0 : index
    %c12 = arith.constant 12 : index
    %37 = vector.load %arg8[%c0_41, %c12] : memref<8x204xf32, #tpu.memory_space<vmem>>, vector<8x64xf32>
    %c96 = arith.constant 96 : index
    %c0_42 = arith.constant 0 : index
    %38 = vector.load %arg9[%c96, %c0_42] : memref<384x128xf32, #tpu.memory_space<vmem>>, vector<8x64xf32>
    tpu.vector_store %arg9[%c96, %c0_42], %37 {strides = array<i32>} : memref<384x128xf32, #tpu.memory_space<vmem>>, vector<8x64xf32>,
    %c0_43 = arith.constant 0 : index
    %c13 = arith.constant 13 : index
    %39 = vector.load %arg8[%c0_43, %c13] : memref<8x204xf32, #tpu.memory_space<vmem>>, vector<8x64xf32>
    %c104 = arith.constant 104 : index
    %c0_44 = arith.constant 0 : index
    %40 = vector.load %arg9[%c104, %c0_44] : memref<384x128xf32, #tpu.memory_space<vmem>>, vector<8x64xf32>
    tpu.vector_store %arg9[%c104, %c0_44], %39 {strides = array<i32>} : memref<384x128xf32, #tpu.memory_space<vmem>>, vector<8x64xf32>,
    %c0_45 = arith.constant 0 : index
    %c14 = arith.constant 14 : index
    %41 = vector.load %arg8[%c0_45, %c14] : memref<8x204xf32, #tpu.memory_space<vmem>>, vector<8x64xf32>
    %c112 = arith.constant 112 : index
    %c0_46 = arith.constant 0 : index
    %42 = vector.load %arg9[%c112, %c0_46] : memref<384x128xf32, #tpu.memory_space<vmem>>, vector<8x64xf32>
    tpu.vector_store %arg9[%c112, %c0_46], %41 {strides = array<i32>} : memref<384x128xf32, #tpu.memory_space<vmem>>, vector<8x64xf32>,
    %c0_47 = arith.constant 0 : index
    %c15 = arith.constant 15 : index
    %43 = vector.load %arg8[%c0_47, %c15] : memref<8x204xf32, #tpu.memory_space<vmem>>, vector<8x64xf32>
    %c120 = arith.constant 120 : index
    %c0_48 = arith.constant 0 : index
    %44 = vector.load %arg9[%c120, %c0_48] : memref<384x128xf32, #tpu.memory_space<vmem>>, vector<8x64xf32>
    tpu.vector_store %arg9[%c120, %c0_48], %43 {strides = array<i32>} : memref<384x128xf32, #tpu.memory_space<vmem>>, vector<8x64xf32>,
    %c0_49 = arith.constant 0 : index
    %c16_50 = arith.constant 16 : index
    %45 = vector.load %arg8[%c0_49, %c16_50] : memref<8x204xf32, #tpu.memory_space<vmem>>, vector<8x64xf32>
    %c128 = arith.constant 128 : index
    %c0_51 = arith.constant 0 : index
    %46 = vector.load %arg9[%c128, %c0_51] : memref<384x128xf32, #tpu.memory_space<vmem>>, vector<8x64xf32>
    tpu.vector_store %arg9[%c128, %c0_51], %45 {strides = array<i32>} : memref<384x128xf32, #tpu.memory_space<vmem>>, vector<8x64xf32>,
    %c0_52 = arith.constant 0 : index
    %c17 = arith.constant 17 : index
    %47 = vector.load %arg8[%c0_52, %c17] : memref<8x204xf32, #tpu.memory_space<vmem>>, vector<8x64xf32>
    %c136 = arith.constant 136 : index
    %c0_53 = arith.constant 0 : index
    %48 = vector.load %arg9[%c136, %c0_53] : memref<384x128xf32, #tpu.memory_space<vmem>>, vector<8x64xf32>
    tpu.vector_store %arg9[%c136, %c0_53], %47 {strides = array<i32>} : memref<384x128xf32, #tpu.memory_space<vmem>>, vector<8x64xf32>,
    %c0_54 = arith.constant 0 : index
    %c18 = arith.constant 18 : index
    %49 = vector.load %arg8[%c0_54, %c18] : memref<8x204xf32, #tpu.memory_space<vmem>>, vector<8x64xf32>
    %c144 = arith.constant 144 : index
    %c0_55 = arith.constant 0 : index
    %50 = vector.load %arg9[%c144, %c0_55] : memref<384x128xf32, #tpu.memory_space<vmem>>, vector<8x64xf32>
    tpu.vector_store %arg9[%c144, %c0_55], %49 {strides = array<i32>} : memref<384x128xf32, #tpu.memory_space<vmem>>, vector<8x64xf32>,
    %c0_56 = arith.constant 0 : index
    %c19_57 = arith.constant 19 : index
    %51 = vector.load %arg8[%c0_56, %c19_57] : memref<8x204xf32, #tpu.memory_space<vmem>>, vector<8x64xf32>
    %c152 = arith.constant 152 : index
    %c0_58 = arith.constant 0 : index
    %52 = vector.load %arg9[%c152, %c0_58] : memref<384x128xf32, #tpu.memory_space<vmem>>, vector<8x64xf32>
    tpu.vector_store %arg9[%c152, %c0_58], %51 {strides = array<i32>} : memref<384x128xf32, #tpu.memory_space<vmem>>, vector<8x64xf32>,
    %c0_59 = arith.constant 0 : index
    %c20 = arith.constant 20 : index
    %53 = vector.load %arg8[%c0_59, %c20] : memref<8x204xf32, #tpu.memory_space<vmem>>, vector<8x64xf32>
    %c160 = arith.constant 160 : index
    %c0_60 = arith.constant 0 : index
    %54 = vector.load %arg9[%c160, %c0_60] : memref<384x128xf32, #tpu.memory_space<vmem>>, vector<8x64xf32>
    tpu.vector_store %arg9[%c160, %c0_60], %53 {strides = array<i32>} : memref<384x128xf32, #tpu.memory_space<vmem>>, vector<8x64xf32>,
    %c0_61 = arith.constant 0 : index
    %c21 = arith.constant 21 : index
    %55 = vector.load %arg8[%c0_61, %c21] : memref<8x204xf32, #tpu.memory_space<vmem>>, vector<8x64xf32>
    %c168 = arith.constant 168 : index
    %c0_62 = arith.constant 0 : index
    %56 = vector.load %arg9[%c168, %c0_62] : memref<384x128xf32, #tpu.memory_space<vmem>>, vector<8x64xf32>
    tpu.vector_store %arg9[%c168, %c0_62], %55 {strides = array<i32>} : memref<384x128xf32, #tpu.memory_space<vmem>>, vector<8x64xf32>,
    %c0_63 = arith.constant 0 : index
    %c22 = arith.constant 22 : index
    %57 = vector.load %arg8[%c0_63, %c22] : memref<8x204xf32, #tpu.memory_space<vmem>>, vector<8x64xf32>
    %c176 = arith.constant 176 : index
    %c0_64 = arith.constant 0 : index
    %58 = vector.load %arg9[%c176, %c0_64] : memref<384x128xf32, #tpu.memory_space<vmem>>, vector<8x64xf32>
    tpu.vector_store %arg9[%c176, %c0_64], %57 {strides = array<i32>} : memref<384x128xf32, #tpu.memory_space<vmem>>, vector<8x64xf32>,
    %c0_65 = arith.constant 0 : index
    %c23 = arith.constant 23 : index
    %59 = vector.load %arg8[%c0_65, %c23] : memref<8x204xf32, #tpu.memory_space<vmem>>, vector<8x64xf32>
    %c184 = arith.constant 184 : index
    %c0_66 = arith.constant 0 : index
    %60 = vector.load %arg9[%c184, %c0_66] : memref<384x128xf32, #tpu.memory_space<vmem>>, vector<8x64xf32>
    tpu.vector_store %arg9[%c184, %c0_66], %59 {strides = array<i32>} : memref<384x128xf32, #tpu.memory_space<vmem>>, vector<8x64xf32>,
    %c0_67 = arith.constant 0 : index
    %c24_68 = arith.constant 24 : index
    %61 = vector.load %arg8[%c0_67, %c24_68] : memref<8x204xf32, #tpu.memory_space<vmem>>, vector<8x64xf32>
    %c192 = arith.constant 192 : index
    %c0_69 = arith.constant 0 : index
    %62 = vector.load %arg9[%c192, %c0_69] : memref<384x128xf32, #tpu.memory_space<vmem>>, vector<8x64xf32>
    tpu.vector_store %arg9[%c192, %c0_69], %61 {strides = array<i32>} : memref<384x128xf32, #tpu.memory_space<vmem>>, vector<8x64xf32>,
    %c0_70 = arith.constant 0 : index
    %c25 = arith.constant 25 : index
    %63 = vector.load %arg8[%c0_70, %c25] : memref<8x204xf32, #tpu.memory_space<vmem>>, vector<8x64xf32>
    %c200 = arith.constant 200 : index
    %c0_71 = arith.constant 0 : index
    %64 = vector.load %arg9[%c200, %c0_71] : memref<384x128xf32, #tpu.memory_space<vmem>>, vector<8x64xf32>
    tpu.vector_store %arg9[%c200, %c0_71], %63 {strides = array<i32>} : memref<384x128xf32, #tpu.memory_space<vmem>>, vector<8x64xf32>,
    %c0_72 = arith.constant 0 : index
    %c26 = arith.constant 26 : index
    %65 = vector.load %arg8[%c0_72, %c26] : memref<8x204xf32, #tpu.memory_space<vmem>>, vector<8x64xf32>
    %c208 = arith.constant 208 : index
    %c0_73 = arith.constant 0 : index
    %66 = vector.load %arg9[%c208, %c0_73] : memref<384x128xf32, #tpu.memory_space<vmem>>, vector<8x64xf32>
    tpu.vector_store %arg9[%c208, %c0_73], %65 {strides = array<i32>} : memref<384x128xf32, #tpu.memory_space<vmem>>, vector<8x64xf32>,
    %c0_74 = arith.constant 0 : index
    %c27 = arith.constant 27 : index
    %67 = vector.load %arg8[%c0_74, %c27] : memref<8x204xf32, #tpu.memory_space<vmem>>, vector<8x64xf32>
    %c216 = arith.constant 216 : index
    %c0_75 = arith.constant 0 : index
    %68 = vector.load %arg9[%c216, %c0_75] : memref<384x128xf32, #tpu.memory_space<vmem>>, vector<8x64xf32>
    tpu.vector_store %arg9[%c216, %c0_75], %67 {strides = array<i32>} : memref<384x128xf32, #tpu.memory_space<vmem>>, vector<8x64xf32>,
    %c0_76 = arith.constant 0 : index
    %c28 = arith.constant 28 : index
    %69 = vector.load %arg8[%c0_76, %c28] : memref<8x204xf32, #tpu.memory_space<vmem>>, vector<8x64xf32>
    %c224 = arith.constant 224 : index
    %c0_77 = arith.constant 0 : index
    %70 = vector.load %arg9[%c224, %c0_77] : memref<384x128xf32, #tpu.memory_space<vmem>>, vector<8x64xf32>
    tpu.vector_store %arg9[%c224, %c0_77], %69 {strides = array<i32>} : memref<384x128xf32, #tpu.memory_space<vmem>>, vector<8x64xf32>,
    %c0_78 = arith.constant 0 : index
    %c29 = arith.constant 29 : index
    %71 = vector.load %arg8[%c0_78, %c29] : memref<8x204xf32, #tpu.memory_space<vmem>>, vector<8x64xf32>
    %c232 = arith.constant 232 : index
    %c0_79 = arith.constant 0 : index
    %72 = vector.load %arg9[%c232, %c0_79] : memref<384x128xf32, #tpu.memory_space<vmem>>, vector<8x64xf32>
    tpu.vector_store %arg9[%c232, %c0_79], %71 {strides = array<i32>} : memref<384x128xf32, #tpu.memory_space<vmem>>, vector<8x64xf32>,
    %c0_80 = arith.constant 0 : index
    %c30 = arith.constant 30 : index
    %73 = vector.load %arg8[%c0_80, %c30] : memref<8x204xf32, #tpu.memory_space<vmem>>, vector<8x64xf32>
    %c240 = arith.constant 240 : index
    %c0_81 = arith.constant 0 : index
    %74 = vector.load %arg9[%c240, %c0_81] : memref<384x128xf32, #tpu.memory_space<vmem>>, vector<8x64xf32>
    tpu.vector_store %arg9[%c240, %c0_81], %73 {strides = array<i32>} : memref<384x128xf32, #tpu.memory_space<vmem>>, vector<8x64xf32>,
    %c0_82 = arith.constant 0 : index
    %c31 = arith.constant 31 : index
    %75 = vector.load %arg8[%c0_82, %c31] : memref<8x204xf32, #tpu.memory_space<vmem>>, vector<8x64xf32>
    %c248 = arith.constant 248 : index
    %c0_83 = arith.constant 0 : index
    %76 = vector.load %arg9[%c248, %c0_83] : memref<384x128xf32, #tpu.memory_space<vmem>>, vector<8x64xf32>
    tpu.vector_store %arg9[%c248, %c0_83], %75 {strides = array<i32>} : memref<384x128xf32, #tpu.memory_space<vmem>>, vector<8x64xf32>,
    %c0_84 = arith.constant 0 : index
    %c32_85 = arith.constant 32 : index
    %77 = vector.load %arg8[%c0_84, %c32_85] : memref<8x204xf32, #tpu.memory_space<vmem>>, vector<8x64xf32>
    %c256 = arith.constant 256 : index
    %c0_86 = arith.constant 0 : index
    %78 = vector.load %arg9[%c256, %c0_86] : memref<384x128xf32, #tpu.memory_space<vmem>>, vector<8x64xf32>
    tpu.vector_store %arg9[%c256, %c0_86], %77 {strides = array<i32>} : memref<384x128xf32, #tpu.memory_space<vmem>>, vector<8x64xf32>,
    %c0_87 = arith.constant 0 : index
    %c33 = arith.constant 33 : index
    %79 = vector.load %arg8[%c0_87, %c33] : memref<8x204xf32, #tpu.memory_space<vmem>>, vector<8x64xf32>
    %c264 = arith.constant 264 : index
    %c0_88 = arith.constant 0 : index
    %80 = vector.load %arg9[%c264, %c0_88] : memref<384x128xf32, #tpu.memory_space<vmem>>, vector<8x64xf32>
    tpu.vector_store %arg9[%c264, %c0_88], %79 {strides = array<i32>} : memref<384x128xf32, #tpu.memory_space<vmem>>, vector<8x64xf32>,
    %c0_89 = arith.constant 0 : index
    %c34 = arith.constant 34 : index
    %81 = vector.load %arg8[%c0_89, %c34] : memref<8x204xf32, #tpu.memory_space<vmem>>, vector<8x64xf32>
    %c272 = arith.constant 272 : index
    %c0_90 = arith.constant 0 : index
    %82 = vector.load %arg9[%c272, %c0_90] : memref<384x128xf32, #tpu.memory_space<vmem>>, vector<8x64xf32>
    tpu.vector_store %arg9[%c272, %c0_90], %81 {strides = array<i32>} : memref<384x128xf32, #tpu.memory_space<vmem>>, vector<8x64xf32>,
    %c0_91 = arith.constant 0 : index
    %c35 = arith.constant 35 : index
    %83 = vector.load %arg8[%c0_91, %c35] : memref<8x204xf32, #tpu.memory_space<vmem>>, vector<8x64xf32>
    %c280 = arith.constant 280 : index
    %c0_92 = arith.constant 0 : index
    %84 = vector.load %arg9[%c280, %c0_92] : memref<384x128xf32, #tpu.memory_space<vmem>>, vector<8x64xf32>
    tpu.vector_store %arg9[%c280, %c0_92], %83 {strides = array<i32>} : memref<384x128xf32, #tpu.memory_space<vmem>>, vector<8x64xf32>,
    %c0_93 = arith.constant 0 : index
    %c36 = arith.constant 36 : index
    %85 = vector.load %arg8[%c0_93, %c36] : memref<8x204xf32, #tpu.memory_space<vmem>>, vector<8x64xf32>
    %c288 = arith.constant 288 : index
    %c0_94 = arith.constant 0 : index
    %86 = vector.load %arg9[%c288, %c0_94] : memref<384x128xf32, #tpu.memory_space<vmem>>, vector<8x64xf32>
    tpu.vector_store %arg9[%c288, %c0_94], %85 {strides = array<i32>} : memref<384x128xf32, #tpu.memory_space<vmem>>, vector<8x64xf32>,
    %c0_95 = arith.constant 0 : index
    %c37 = arith.constant 37 : index
    %87 = vector.load %arg8[%c0_95, %c37] : memref<8x204xf32, #tpu.memory_space<vmem>>, vector<8x64xf32>
    %c296 = arith.constant 296 : index
    %c0_96 = arith.constant 0 : index
    %88 = vector.load %arg9[%c296, %c0_96] : memref<384x128xf32, #tpu.memory_space<vmem>>, vector<8x64xf32>
    tpu.vector_store %arg9[%c296, %c0_96], %87 {strides = array<i32>} : memref<384x128xf32, #tpu.memory_space<vmem>>, vector<8x64xf32>,
    %c0_97 = arith.constant 0 : index
    %c38 = arith.constant 38 : index
    %89 = vector.load %arg8[%c0_97, %c38] : memref<8x204xf32, #tpu.memory_space<vmem>>, vector<8x64xf32>
    %c304 = arith.constant 304 : index
    %c0_98 = arith.constant 0 : index
    %90 = vector.load %arg9[%c304, %c0_98] : memref<384x128xf32, #tpu.memory_space<vmem>>, vector<8x64xf32>
    tpu.vector_store %arg9[%c304, %c0_98], %89 {strides = array<i32>} : memref<384x128xf32, #tpu.memory_space<vmem>>, vector<8x64xf32>,
    %c0_99 = arith.constant 0 : index
    %c102 = arith.constant 102 : index
    %91 = vector.load %arg8[%c0_99, %c102] : memref<8x204xf32, #tpu.memory_space<vmem>>, vector<8x64xf32>
    %c0_100 = arith.constant 0 : index
    %c64_101 = arith.constant 64 : index
    %92 = vector.load %arg9[%c0_100, %c64_101] : memref<384x128xf32, #tpu.memory_space<vmem>>, vector<8x64xf32>
    tpu.vector_store %arg9[%c0_100, %c64_101], %91 {strides = array<i32>} : memref<384x128xf32, #tpu.memory_space<vmem>>, vector<8x64xf32>,
    %c0_102 = arith.constant 0 : index
    %c103 = arith.constant 103 : index
    %93 = vector.load %arg8[%c0_102, %c103] : memref<8x204xf32, #tpu.memory_space<vmem>>, vector<8x64xf32>
    %c8_103 = arith.constant 8 : index
    %c64_104 = arith.constant 64 : index
    %94 = vector.load %arg9[%c8_103, %c64_104] : memref<384x128xf32, #tpu.memory_space<vmem>>, vector<8x64xf32>
    tpu.vector_store %arg9[%c8_103, %c64_104], %93 {strides = array<i32>} : memref<384x128xf32, #tpu.memory_space<vmem>>, vector<8x64xf32>,
    %c0_105 = arith.constant 0 : index
    %c104_106 = arith.constant 104 : index
    %95 = vector.load %arg8[%c0_105, %c104_106] : memref<8x204xf32, #tpu.memory_space<vmem>>, vector<8x64xf32>
    %c16_107 = arith.constant 16 : index
    %c64_108 = arith.constant 64 : index
    %96 = vector.load %arg9[%c16_107, %c64_108] : memref<384x128xf32, #tpu.memory_space<vmem>>, vector<8x64xf32>
    tpu.vector_store %arg9[%c16_107, %c64_108], %95 {strides = array<i32>} : memref<384x128xf32, #tpu.memory_space<vmem>>, vector<8x64xf32>,
    %c0_109 = arith.constant 0 : index
    %c105 = arith.constant 105 : index
    %97 = vector.load %arg8[%c0_109, %c105] : memref<8x204xf32, #tpu.memory_space<vmem>>, vector<8x64xf32>
    %c24_110 = arith.constant 24 : index
    %c64_111 = arith.constant 64 : index
    %98 = vector.load %arg9[%c24_110, %c64_111] : memref<384x128xf32, #tpu.memory_space<vmem>>, vector<8x64xf32>
    tpu.vector_store %arg9[%c24_110, %c64_111], %97 {strides = array<i32>} : memref<384x128xf32, #tpu.memory_space<vmem>>, vector<8x64xf32>,
    %c0_112 = arith.constant 0 : index
    %c106 = arith.constant 106 : index
    %99 = vector.load %arg8[%c0_112, %c106] : memref<8x204xf32, #tpu.memory_space<vmem>>, vector<8x64xf32>
    %c32_113 = arith.constant 32 : index
    %c64_114 = arith.constant 64 : index
    %100 = vector.load %arg9[%c32_113, %c64_114] : memref<384x128xf32, #tpu.memory_space<vmem>>, vector<8x64xf32>
    tpu.vector_store %arg9[%c32_113, %c64_114], %99 {strides = array<i32>} : memref<384x128xf32, #tpu.memory_space<vmem>>, vector<8x64xf32>,
    %c0_115 = arith.constant 0 : index
    %c107 = arith.constant 107 : index
    %101 = vector.load %arg8[%c0_115, %c107] : memref<8x204xf32, #tpu.memory_space<vmem>>, vector<8x64xf32>
    %c40_116 = arith.constant 40 : index
    %c64_117 = arith.constant 64 : index
    %102 = vector.load %arg9[%c40_116, %c64_117] : memref<384x128xf32, #tpu.memory_space<vmem>>, vector<8x64xf32>
    tpu.vector_store %arg9[%c40_116, %c64_117], %101 {strides = array<i32>} : memref<384x128xf32, #tpu.memory_space<vmem>>, vector<8x64xf32>,
    %c0_118 = arith.constant 0 : index
    %c108 = arith.constant 108 : index
    %103 = vector.load %arg8[%c0_118, %c108] : memref<8x204xf32, #tpu.memory_space<vmem>>, vector<8x64xf32>
    %c48_119 = arith.constant 48 : index
    %c64_120 = arith.constant 64 : index
    %104 = vector.load %arg9[%c48_119, %c64_120] : memref<384x128xf32, #tpu.memory_space<vmem>>, vector<8x64xf32>
    tpu.vector_store %arg9[%c48_119, %c64_120], %103 {strides = array<i32>} : memref<384x128xf32, #tpu.memory_space<vmem>>, vector<8x64xf32>,
    %c0_121 = arith.constant 0 : index
    %c109 = arith.constant 109 : index
    %105 = vector.load %arg8[%c0_121, %c109] : memref<8x204xf32, #tpu.memory_space<vmem>>, vector<8x64xf32>
    %c56_122 = arith.constant 56 : index
    %c64_123 = arith.constant 64 : index
    %106 = vector.load %arg9[%c56_122, %c64_123] : memref<384x128xf32, #tpu.memory_space<vmem>>, vector<8x64xf32>
    tpu.vector_store %arg9[%c56_122, %c64_123], %105 {strides = array<i32>} : memref<384x128xf32, #tpu.memory_space<vmem>>, vector<8x64xf32>,
    %c0_124 = arith.constant 0 : index
    %c110 = arith.constant 110 : index
    %107 = vector.load %arg8[%c0_124, %c110] : memref<8x204xf32, #tpu.memory_space<vmem>>, vector<8x64xf32>
    %c64_125 = arith.constant 64 : index
    %c64_126 = arith.constant 64 : index
    %108 = vector.load %arg9[%c64_125, %c64_126] : memref<384x128xf32, #tpu.memory_space<vmem>>, vector<8x64xf32>
    tpu.vector_store %arg9[%c64_125, %c64_126], %107 {strides = array<i32>} : memref<384x128xf32, #tpu.memory_space<vmem>>, vector<8x64xf32>,
    %c0_127 = arith.constant 0 : index
    %c111 = arith.constant 111 : index
    %109 = vector.load %arg8[%c0_127, %c111] : memref<8x204xf32, #tpu.memory_space<vmem>>, vector<8x64xf32>
    %c72_128 = arith.constant 72 : index
    %c64_129 = arith.constant 64 : index
    %110 = vector.load %arg9[%c72_128, %c64_129] : memref<384x128xf32, #tpu.memory_space<vmem>>, vector<8x64xf32>
    tpu.vector_store %arg9[%c72_128, %c64_129], %109 {strides = array<i32>} : memref<384x128xf32, #tpu.memory_space<vmem>>, vector<8x64xf32>,
    %c0_130 = arith.constant 0 : index
    %c112_131 = arith.constant 112 : index
    %111 = vector.load %arg8[%c0_130, %c112_131] : memref<8x204xf32, #tpu.memory_space<vmem>>, vector<8x64xf32>
    %c80_132 = arith.constant 80 : index
    %c64_133 = arith.constant 64 : index
    %112 = vector.load %arg9[%c80_132, %c64_133] : memref<384x128xf32, #tpu.memory_space<vmem>>, vector<8x64xf32>
    tpu.vector_store %arg9[%c80_132, %c64_133], %111 {strides = array<i32>} : memref<384x128xf32, #tpu.memory_space<vmem>>, vector<8x64xf32>,
    %c0_134 = arith.constant 0 : index
    %c113 = arith.constant 113 : index
    %113 = vector.load %arg8[%c0_134, %c113] : memref<8x204xf32, #tpu.memory_space<vmem>>, vector<8x64xf32>
    %c88_135 = arith.constant 88 : index
    %c64_136 = arith.constant 64 : index
    %114 = vector.load %arg9[%c88_135, %c64_136] : memref<384x128xf32, #tpu.memory_space<vmem>>, vector<8x64xf32>
    tpu.vector_store %arg9[%c88_135, %c64_136], %113 {strides = array<i32>} : memref<384x128xf32, #tpu.memory_space<vmem>>, vector<8x64xf32>,
    %c0_137 = arith.constant 0 : index
    %c114 = arith.constant 114 : index
    %115 = vector.load %arg8[%c0_137, %c114] : memref<8x204xf32, #tpu.memory_space<vmem>>, vector<8x64xf32>
    %c96_138 = arith.constant 96 : index
    %c64_139 = arith.constant 64 : index
    %116 = vector.load %arg9[%c96_138, %c64_139] : memref<384x128xf32, #tpu.memory_space<vmem>>, vector<8x64xf32>
    tpu.vector_store %arg9[%c96_138, %c64_139], %115 {strides = array<i32>} : memref<384x128xf32, #tpu.memory_space<vmem>>, vector<8x64xf32>,
    %c0_140 = arith.constant 0 : index
    %c115 = arith.constant 115 : index
    %117 = vector.load %arg8[%c0_140, %c115] : memref<8x204xf32, #tpu.memory_space<vmem>>, vector<8x64xf32>
    %c104_141 = arith.constant 104 : index
    %c64_142 = arith.constant 64 : index
    %118 = vector.load %arg9[%c104_141, %c64_142] : memref<384x128xf32, #tpu.memory_space<vmem>>, vector<8x64xf32>
    tpu.vector_store %arg9[%c104_141, %c64_142], %117 {strides = array<i32>} : memref<384x128xf32, #tpu.memory_space<vmem>>, vector<8x64xf32>,
    %c0_143 = arith.constant 0 : index
    %c116 = arith.constant 116 : index
    %119 = vector.load %arg8[%c0_143, %c116] : memref<8x204xf32, #tpu.memory_space<vmem>>, vector<8x64xf32>
    %c112_144 = arith.constant 112 : index
    %c64_145 = arith.constant 64 : index
    %120 = vector.load %arg9[%c112_144, %c64_145] : memref<384x128xf32, #tpu.memory_space<vmem>>, vector<8x64xf32>
    tpu.vector_store %arg9[%c112_144, %c64_145], %119 {strides = array<i32>} : memref<384x128xf32, #tpu.memory_space<vmem>>, vector<8x64xf32>,
    %c0_146 = arith.constant 0 : index
    %c117 = arith.constant 117 : index
    %121 = vector.load %arg8[%c0_146, %c117] : memref<8x204xf32, #tpu.memory_space<vmem>>, vector<8x64xf32>
    %c120_147 = arith.constant 120 : index
    %c64_148 = arith.constant 64 : index
    %122 = vector.load %arg9[%c120_147, %c64_148] : memref<384x128xf32, #tpu.memory_space<vmem>>, vector<8x64xf32>
    tpu.vector_store %arg9[%c120_147, %c64_148], %121 {strides = array<i32>} : memref<384x128xf32, #tpu.memory_space<vmem>>, vector<8x64xf32>,
    %c0_149 = arith.constant 0 : index
    %c118 = arith.constant 118 : index
    %123 = vector.load %arg8[%c0_149, %c118] : memref<8x204xf32, #tpu.memory_space<vmem>>, vector<8x64xf32>
    %c128_150 = arith.constant 128 : index
    %c64_151 = arith.constant 64 : index
    %124 = vector.load %arg9[%c128_150, %c64_151] : memref<384x128xf32, #tpu.memory_space<vmem>>, vector<8x64xf32>
    tpu.vector_store %arg9[%c128_150, %c64_151], %123 {strides = array<i32>} : memref<384x128xf32, #tpu.memory_space<vmem>>, vector<8x64xf32>,
    %c0_152 = arith.constant 0 : index
    %c119 = arith.constant 119 : index
    %125 = vector.load %arg8[%c0_152, %c119] : memref<8x204xf32, #tpu.memory_space<vmem>>, vector<8x64xf32>
    %c136_153 = arith.constant 136 : index
    %c64_154 = arith.constant 64 : index
    %126 = vector.load %arg9[%c136_153, %c64_154] : memref<384x128xf32, #tpu.memory_space<vmem>>, vector<8x64xf32>
    tpu.vector_store %arg9[%c136_153, %c64_154], %125 {strides = array<i32>} : memref<384x128xf32, #tpu.memory_space<vmem>>, vector<8x64xf32>,
    %c0_155 = arith.constant 0 : index
    %c120_156 = arith.constant 120 : index
    %127 = vector.load %arg8[%c0_155, %c120_156] : memref<8x204xf32, #tpu.memory_space<vmem>>, vector<8x64xf32>
    %c144_157 = arith.constant 144 : index
    %c64_158 = arith.constant 64 : index
    %128 = vector.load %arg9[%c144_157, %c64_158] : memref<384x128xf32, #tpu.memory_space<vmem>>, vector<8x64xf32>
    tpu.vector_store %arg9[%c144_157, %c64_158], %127 {strides = array<i32>} : memref<384x128xf32, #tpu.memory_space<vmem>>, vector<8x64xf32>,
    %c0_159 = arith.constant 0 : index
    %c121_160 = arith.constant 121 : index
    %129 = vector.load %arg8[%c0_159, %c121_160] : memref<8x204xf32, #tpu.memory_space<vmem>>, vector<8x64xf32>
    %c152_161 = arith.constant 152 : index
    %c64_162 = arith.constant 64 : index
    %130 = vector.load %arg9[%c152_161, %c64_162] : memref<384x128xf32, #tpu.memory_space<vmem>>, vector<8x64xf32>
    tpu.vector_store %arg9[%c152_161, %c64_162], %129 {strides = array<i32>} : memref<384x128xf32, #tpu.memory_space<vmem>>, vector<8x64xf32>,
    %c0_163 = arith.constant 0 : index
    %c122 = arith.constant 122 : index
    %131 = vector.load %arg8[%c0_163, %c122] : memref<8x204xf32, #tpu.memory_space<vmem>>, vector<8x64xf32>
    %c160_164 = arith.constant 160 : index
    %c64_165 = arith.constant 64 : index
    %132 = vector.load %arg9[%c160_164, %c64_165] : memref<384x128xf32, #tpu.memory_space<vmem>>, vector<8x64xf32>
    tpu.vector_store %arg9[%c160_164, %c64_165], %131 {strides = array<i32>} : memref<384x128xf32, #tpu.memory_space<vmem>>, vector<8x64xf32>,
    %c0_166 = arith.constant 0 : index
    %c123 = arith.constant 123 : index
    %133 = vector.load %arg8[%c0_166, %c123] : memref<8x204xf32, #tpu.memory_space<vmem>>, vector<8x64xf32>
    %c168_167 = arith.constant 168 : index
    %c64_168 = arith.constant 64 : index
    %134 = vector.load %arg9[%c168_167, %c64_168] : memref<384x128xf32, #tpu.memory_space<vmem>>, vector<8x64xf32>
    tpu.vector_store %arg9[%c168_167, %c64_168], %133 {strides = array<i32>} : memref<384x128xf32, #tpu.memory_space<vmem>>, vector<8x64xf32>,
    %c0_169 = arith.constant 0 : index
    %c124 = arith.constant 124 : index
    %135 = vector.load %arg8[%c0_169, %c124] : memref<8x204xf32, #tpu.memory_space<vmem>>, vector<8x64xf32>
    %c176_170 = arith.constant 176 : index
    %c64_171 = arith.constant 64 : index
    %136 = vector.load %arg9[%c176_170, %c64_171] : memref<384x128xf32, #tpu.memory_space<vmem>>, vector<8x64xf32>
    tpu.vector_store %arg9[%c176_170, %c64_171], %135 {strides = array<i32>} : memref<384x128xf32, #tpu.memory_space<vmem>>, vector<8x64xf32>,
    %c0_172 = arith.constant 0 : index
    %c125 = arith.constant 125 : index
    %137 = vector.load %arg8[%c0_172, %c125] : memref<8x204xf32, #tpu.memory_space<vmem>>, vector<8x64xf32>
    %c184_173 = arith.constant 184 : index
    %c64_174 = arith.constant 64 : index
    %138 = vector.load %arg9[%c184_173, %c64_174] : memref<384x128xf32, #tpu.memory_space<vmem>>, vector<8x64xf32>
    tpu.vector_store %arg9[%c184_173, %c64_174], %137 {strides = array<i32>} : memref<384x128xf32, #tpu.memory_space<vmem>>, vector<8x64xf32>,
    %c0_175 = arith.constant 0 : index
    %c126 = arith.constant 126 : index
    %139 = vector.load %arg8[%c0_175, %c126] : memref<8x204xf32, #tpu.memory_space<vmem>>, vector<8x64xf32>
    %c192_176 = arith.constant 192 : index
    %c64_177 = arith.constant 64 : index
    %140 = vector.load %arg9[%c192_176, %c64_177] : memref<384x128xf32, #tpu.memory_space<vmem>>, vector<8x64xf32>
    tpu.vector_store %arg9[%c192_176, %c64_177], %139 {strides = array<i32>} : memref<384x128xf32, #tpu.memory_space<vmem>>, vector<8x64xf32>,
    %c0_178 = arith.constant 0 : index
    %c127 = arith.constant 127 : index
    %141 = vector.load %arg8[%c0_178, %c127] : memref<8x204xf32, #tpu.memory_space<vmem>>, vector<8x64xf32>
    %c200_179 = arith.constant 200 : index
    %c64_180 = arith.constant 64 : index
    %142 = vector.load %arg9[%c200_179, %c64_180] : memref<384x128xf32, #tpu.memory_space<vmem>>, vector<8x64xf32>
    tpu.vector_store %arg9[%c200_179, %c64_180], %141 {strides = array<i32>} : memref<384x128xf32, #tpu.memory_space<vmem>>, vector<8x64xf32>,
    %c0_181 = arith.constant 0 : index
    %c128_182 = arith.constant 128 : index
    %143 = vector.load %arg8[%c0_181, %c128_182] : memref<8x204xf32, #tpu.memory_space<vmem>>, vector<8x64xf32>
    %c208_183 = arith.constant 208 : index
    %c64_184 = arith.constant 64 : index
    %144 = vector.load %arg9[%c208_183, %c64_184] : memref<384x128xf32, #tpu.memory_space<vmem>>, vector<8x64xf32>
    tpu.vector_store %arg9[%c208_183, %c64_184], %143 {strides = array<i32>} : memref<384x128xf32, #tpu.memory_space<vmem>>, vector<8x64xf32>,
    %c0_185 = arith.constant 0 : index
    %c129 = arith.constant 129 : index
    %145 = vector.load %arg8[%c0_185, %c129] : memref<8x204xf32, #tpu.memory_space<vmem>>, vector<8x64xf32>
    %c216_186 = arith.constant 216 : index
    %c64_187 = arith.constant 64 : index
    %146 = vector.load %arg9[%c216_186, %c64_187] : memref<384x128xf32, #tpu.memory_space<vmem>>, vector<8x64xf32>
    tpu.vector_store %arg9[%c216_186, %c64_187], %145 {strides = array<i32>} : memref<384x128xf32, #tpu.memory_space<vmem>>, vector<8x64xf32>,
    %c0_188 = arith.constant 0 : index
    %c130 = arith.constant 130 : index
    %147 = vector.load %arg8[%c0_188, %c130] : memref<8x204xf32, #tpu.memory_space<vmem>>, vector<8x64xf32>
    %c224_189 = arith.constant 224 : index
    %c64_190 = arith.constant 64 : index
    %148 = vector.load %arg9[%c224_189, %c64_190] : memref<384x128xf32, #tpu.memory_space<vmem>>, vector<8x64xf32>
    tpu.vector_store %arg9[%c224_189, %c64_190], %147 {strides = array<i32>} : memref<384x128xf32, #tpu.memory_space<vmem>>, vector<8x64xf32>,
    %c0_191 = arith.constant 0 : index
    %c131 = arith.constant 131 : index
    %149 = vector.load %arg8[%c0_191, %c131] : memref<8x204xf32, #tpu.memory_space<vmem>>, vector<8x64xf32>
    %c232_192 = arith.constant 232 : index
    %c64_193 = arith.constant 64 : index
    %150 = vector.load %arg9[%c232_192, %c64_193] : memref<384x128xf32, #tpu.memory_space<vmem>>, vector<8x64xf32>
    tpu.vector_store %arg9[%c232_192, %c64_193], %149 {strides = array<i32>} : memref<384x128xf32, #tpu.memory_space<vmem>>, vector<8x64xf32>,
    %c0_194 = arith.constant 0 : index
    %c132 = arith.constant 132 : index
    %151 = vector.load %arg8[%c0_194, %c132] : memref<8x204xf32, #tpu.memory_space<vmem>>, vector<8x64xf32>
    %c240_195 = arith.constant 240 : index
    %c64_196 = arith.constant 64 : index
    %152 = vector.load %arg9[%c240_195, %c64_196] : memref<384x128xf32, #tpu.memory_space<vmem>>, vector<8x64xf32>
    tpu.vector_store %arg9[%c240_195, %c64_196], %151 {strides = array<i32>} : memref<384x128xf32, #tpu.memory_space<vmem>>, vector<8x64xf32>,
    %c0_197 = arith.constant 0 : index
    %c133 = arith.constant 133 : index
    %153 = vector.load %arg8[%c0_197, %c133] : memref<8x204xf32, #tpu.memory_space<vmem>>, vector<8x64xf32>
    %c248_198 = arith.constant 248 : index
    %c64_199 = arith.constant 64 : index
    %154 = vector.load %arg9[%c248_198, %c64_199] : memref<384x128xf32, #tpu.memory_space<vmem>>, vector<8x64xf32>
    tpu.vector_store %arg9[%c248_198, %c64_199], %153 {strides = array<i32>} : memref<384x128xf32, #tpu.memory_space<vmem>>, vector<8x64xf32>,
    %c0_200 = arith.constant 0 : index
    %c134 = arith.constant 134 : index
    %155 = vector.load %arg8[%c0_200, %c134] : memref<8x204xf32, #tpu.memory_space<vmem>>, vector<8x64xf32>
    %c256_201 = arith.constant 256 : index
    %c64_202 = arith.constant 64 : index
    %156 = vector.load %arg9[%c256_201, %c64_202] : memref<384x128xf32, #tpu.memory_space<vmem>>, vector<8x64xf32>
    tpu.vector_store %arg9[%c256_201, %c64_202], %155 {strides = array<i32>} : memref<384x128xf32, #tpu.memory_space<vmem>>, vector<8x64xf32>,
    %c0_203 = arith.constant 0 : index
    %c135 = arith.constant 135 : index
    %157 = vector.load %arg8[%c0_203, %c135] : memref<8x204xf32, #tpu.memory_space<vmem>>, vector<8x64xf32>
    %c264_204 = arith.constant 264 : index
    %c64_205 = arith.constant 64 : index
    %158 = vector.load %arg9[%c264_204, %c64_205] : memref<384x128xf32, #tpu.memory_space<vmem>>, vector<8x64xf32>
    tpu.vector_store %arg9[%c264_204, %c64_205], %157 {strides = array<i32>} : memref<384x128xf32, #tpu.memory_space<vmem>>, vector<8x64xf32>,
    %c0_206 = arith.constant 0 : index
    %c136_207 = arith.constant 136 : index
    %159 = vector.load %arg8[%c0_206, %c136_207] : memref<8x204xf32, #tpu.memory_space<vmem>>, vector<8x64xf32>
    %c272_208 = arith.constant 272 : index
    %c64_209 = arith.constant 64 : index
    %160 = vector.load %arg9[%c272_208, %c64_209] : memref<384x128xf32, #tpu.memory_space<vmem>>, vector<8x64xf32>
    tpu.vector_store %arg9[%c272_208, %c64_209], %159 {strides = array<i32>} : memref<384x128xf32, #tpu.memory_space<vmem>>, vector<8x64xf32>,
    %c0_210 = arith.constant 0 : index
    %c137 = arith.constant 137 : index
    %161 = vector.load %arg8[%c0_210, %c137] : memref<8x204xf32, #tpu.memory_space<vmem>>, vector<8x64xf32>
    %c280_211 = arith.constant 280 : index
    %c64_212 = arith.constant 64 : index
    %162 = vector.load %arg9[%c280_211, %c64_212] : memref<384x128xf32, #tpu.memory_space<vmem>>, vector<8x64xf32>
    tpu.vector_store %arg9[%c280_211, %c64_212], %161 {strides = array<i32>} : memref<384x128xf32, #tpu.memory_space<vmem>>, vector<8x64xf32>,
    %c0_213 = arith.constant 0 : index
    %c138 = arith.constant 138 : index
    %163 = vector.load %arg8[%c0_213, %c138] : memref<8x204xf32, #tpu.memory_space<vmem>>, vector<8x64xf32>
    %c288_214 = arith.constant 288 : index
    %c64_215 = arith.constant 64 : index
    %164 = vector.load %arg9[%c288_214, %c64_215] : memref<384x128xf32, #tpu.memory_space<vmem>>, vector<8x64xf32>
    tpu.vector_store %arg9[%c288_214, %c64_215], %163 {strides = array<i32>} : memref<384x128xf32, #tpu.memory_space<vmem>>, vector<8x64xf32>,
    %c0_216 = arith.constant 0 : index
    %c139 = arith.constant 139 : index
    %165 = vector.load %arg8[%c0_216, %c139] : memref<8x204xf32, #tpu.memory_space<vmem>>, vector<8x64xf32>
    %c296_217 = arith.constant 296 : index
    %c64_218 = arith.constant 64 : index
    %166 = vector.load %arg9[%c296_217, %c64_218] : memref<384x128xf32, #tpu.memory_space<vmem>>, vector<8x64xf32>
    tpu.vector_store %arg9[%c296_217, %c64_218], %165 {strides = array<i32>} : memref<384x128xf32, #tpu.memory_space<vmem>>, vector<8x64xf32>,
    %c0_219 = arith.constant 0 : index
    %c140 = arith.constant 140 : index
    %167 = vector.load %arg8[%c0_219, %c140] : memref<8x204xf32, #tpu.memory_space<vmem>>, vector<8x64xf32>
    %c304_220 = arith.constant 304 : index
    %c64_221 = arith.constant 64 : index
    %168 = vector.load %arg9[%c304_220, %c64_221] : memref<384x128xf32, #tpu.memory_space<vmem>>, vector<8x64xf32>
    tpu.vector_store %arg9[%c304_220, %c64_221], %167 {strides = array<i32>} : memref<384x128xf32, #tpu.memory_space<vmem>>, vector<8x64xf32>,
    %c0_222 = arith.constant 0 : index
    %c0_223 = arith.constant 0 : index
    %169 = vector.load %arg3[%c0_222, %c0_223] : memref<24x384xf32, #tpu.memory_space<vmem>>, vector<24x384xf32>
    %c0_224 = arith.constant 0 : index
    %c0_225 = arith.constant 0 : index
    %170 = vector.load %arg9[%c0_224, %c0_225] : memref<384x128xf32, #tpu.memory_space<vmem>>, vector<384x128xf32>
    %cst_226 = arith.constant dense<0.000000e+00> : vector<24x128xf32>
    %171 = tpu.matmul %169, %170, %cst_226 {dimension_numbers = #tpu.dot_dimension_numbers<[1], [0], [0], [1], [0, 0, 1, 1], [], []>} : vector<24x384xf32>, vector<384x128xf32>, vector<24x128xf32> -> vector<24x128xf32>
    %172 = vector.extract_strided_slice %6 {offsets = [0, 0], sizes = [4, 64], strides = [1, 1]} : vector<4x128xf32> to vector<4x64xf32>
    %c0_227 = arith.constant 0 : index
    %c1_228 = arith.constant 1 : index
    %173 = vector.load %arg10[%c0_227, %c1_228] : memref<4x66xf32, #tpu.memory_space<vmem>>, vector<4x64xf32>
    tpu.vector_store %arg10[%c0_227, %c1_228], %172 {strides = array<i32>} : memref<4x66xf32, #tpu.memory_space<vmem>>, vector<4x64xf32>,
    %c0_229 = arith.constant 0 : index
    %c0_230 = arith.constant 0 : index
    %174 = vector.load %arg10[%c0_229, %c0_230] : memref<4x66xf32, #tpu.memory_space<vmem>>, vector<4x64xf32>
    %c0_231 = arith.constant 0 : index
    %c1_232 = arith.constant 1 : index
    %175 = vector.load %arg10[%c0_231, %c1_232] : memref<4x66xf32, #tpu.memory_space<vmem>>, vector<4x64xf32>
    %176 = arith.maximumf %174, %175 : vector<4x64xf32>
    %c0_233 = arith.constant 0 : index
    %c2_234 = arith.constant 2 : index
    %177 = vector.load %arg10[%c0_233, %c2_234] : memref<4x66xf32, #tpu.memory_space<vmem>>, vector<4x64xf32>
    %178 = arith.maximumf %176, %177 : vector<4x64xf32>
    %c0_235 = arith.constant 0 : index
    %c0_236 = arith.constant 0 : index
    %179 = vector.load %arg11[%c0_235, %c0_236] : memref<4x128xf32, #tpu.memory_space<vmem>>, vector<4x64xf32>
    tpu.vector_store %arg11[%c0_235, %c0_236], %178 {strides = array<i32>} : memref<4x128xf32, #tpu.memory_space<vmem>>, vector<4x64xf32>,
    %180 = vector.extract_strided_slice %6 {offsets = [0, 64], sizes = [4, 64], strides = [1, 1]} : vector<4x128xf32> to vector<4x64xf32>
    %c0_237 = arith.constant 0 : index
    %c1_238 = arith.constant 1 : index
    %181 = vector.load %arg10[%c0_237, %c1_238] : memref<4x66xf32, #tpu.memory_space<vmem>>, vector<4x64xf32>
    tpu.vector_store %arg10[%c0_237, %c1_238], %180 {strides = array<i32>} : memref<4x66xf32, #tpu.memory_space<vmem>>, vector<4x64xf32>,
    %c0_239 = arith.constant 0 : index
    %c0_240 = arith.constant 0 : index
    %182 = vector.load %arg10[%c0_239, %c0_240] : memref<4x66xf32, #tpu.memory_space<vmem>>, vector<4x64xf32>
    %c0_241 = arith.constant 0 : index
    %c1_242 = arith.constant 1 : index
    %183 = vector.load %arg10[%c0_241, %c1_242] : memref<4x66xf32, #tpu.memory_space<vmem>>, vector<4x64xf32>
    %184 = arith.maximumf %182, %183 : vector<4x64xf32>
    %c0_243 = arith.constant 0 : index
    %c2_244 = arith.constant 2 : index
    %185 = vector.load %arg10[%c0_243, %c2_244] : memref<4x66xf32, #tpu.memory_space<vmem>>, vector<4x64xf32>
    %186 = arith.maximumf %184, %185 : vector<4x64xf32>
    %c0_245 = arith.constant 0 : index
    %c64_246 = arith.constant 64 : index
    %187 = vector.load %arg11[%c0_245, %c64_246] : memref<4x128xf32, #tpu.memory_space<vmem>>, vector<4x64xf32>
    tpu.vector_store %arg11[%c0_245, %c64_246], %186 {strides = array<i32>} : memref<4x128xf32, #tpu.memory_space<vmem>>, vector<4x64xf32>,
    %c0_247 = arith.constant 0 : index
    %c0_248 = arith.constant 0 : index
    %188 = vector.load %arg4[%c0_247, %c0_248] : memref<8x4xf32, #tpu.memory_space<vmem>>, vector<8x4xf32>
    %c0_249 = arith.constant 0 : index
    %c0_250 = arith.constant 0 : index
    %189 = vector.load %arg11[%c0_249, %c0_250] : memref<4x128xf32, #tpu.memory_space<vmem>>, vector<4x128xf32>
    %cst_251 = arith.constant dense<0.000000e+00> : vector<8x128xf32>
    %190 = tpu.matmul %188, %189, %cst_251 {dimension_numbers = #tpu.dot_dimension_numbers<[1], [0], [0], [1], [0, 0, 1, 1], [], []>} : vector<8x4xf32>, vector<4x128xf32>, vector<8x128xf32> -> vector<8x128xf32>
    %c0_252 = arith.constant 0 : index
    %c0_253 = arith.constant 0 : index
    %191 = vector.load %arg5[%c0_252, %c0_253] : memref<32x1xf32, #tpu.memory_space<vmem>>, vector<32x1xf32>
    %c0_254 = arith.constant 0 : index
    %c0_255 = arith.constant 0 : index
    %192 = vector.load %arg6[%c0_254, %c0_255] : memref<32x1xf32, #tpu.memory_space<vmem>>, vector<32x1xf32>
    %193 = vector.extract_strided_slice %191 {offsets = [0, 0], sizes = [24, 1], strides = [1, 1]} : vector<32x1xf32> to vector<24x1xf32>
    %194 = vector.extract_strided_slice %192 {offsets = [0, 0], sizes = [24, 1], strides = [1, 1]} : vector<32x1xf32> to vector<24x1xf32>
    %cst_256 = arith.constant dense<0.000000e+00> : vector<24xf32>
    %195 = vector.multi_reduction <add>, %171, %cst_256 [1] : vector<24x128xf32> to vector<24xf32>
    %196 = vector.shape_cast %195 : vector<24xf32> to vector<24x1xf32>
    %cst_257 = arith.constant 1.280000e+02 : f32
    %197 = vector.broadcast %cst_257 : f32 to vector<24x1xf32>
    %198 = arith.divf %196, %197 : vector<24x1xf32>
    %199 = vector.broadcast %198 : vector<24x1xf32> to vector<24x128xf32>
    %200 = arith.subf %171, %199 : vector<24x128xf32>
    %201 = arith.mulf %200, %200 : vector<24x128xf32>
    %cst_258 = arith.constant dense<0.000000e+00> : vector<24xf32>
    %202 = vector.multi_reduction <add>, %201, %cst_258 [1] : vector<24x128xf32> to vector<24xf32>
    %203 = vector.shape_cast %202 : vector<24xf32> to vector<24x1xf32>
    %cst_259 = arith.constant 1.280000e+02 : f32
    %204 = vector.broadcast %cst_259 : f32 to vector<24x1xf32>
    %205 = arith.divf %203, %204 : vector<24x1xf32>
    %206 = vector.broadcast %198 : vector<24x1xf32> to vector<24x128xf32>
    %207 = arith.subf %171, %206 : vector<24x128xf32>
    %cst_260 = arith.constant 9.99999974E-6 : f32
    %208 = vector.broadcast %cst_260 : f32 to vector<24x1xf32>
    %209 = arith.addf %205, %208 : vector<24x1xf32>
    %210 = math.rsqrt %209 : vector<24x1xf32>
    %211 = vector.broadcast %210 : vector<24x1xf32> to vector<24x128xf32>
    %212 = arith.mulf %207, %211 : vector<24x128xf32>
    %213 = vector.broadcast %193 : vector<24x1xf32> to vector<24x128xf32>
    %214 = arith.mulf %212, %213 : vector<24x128xf32>
    %215 = vector.broadcast %194 : vector<24x1xf32> to vector<24x128xf32>
    %216 = arith.addf %214, %215 : vector<24x128xf32>
    %cst_261 = arith.constant 0.000000e+00 : f32
    %217 = vector.broadcast %cst_261 : f32 to vector<24x128xf32>
    %218 = arith.maximumf %216, %217 : vector<24x128xf32>
    %c0_262 = arith.constant 0 : index
    %c0_263 = arith.constant 0 : index
    %219 = vector.load %arg7[%c0_262, %c0_263] : memref<32x128xf32, #tpu.memory_space<vmem>>, vector<24x128xf32>
    tpu.vector_store %arg7[%c0_262, %c0_263], %218 {strides = array<i32>} : memref<32x128xf32, #tpu.memory_space<vmem>>, vector<24x128xf32>,
    %220 = vector.extract_strided_slice %191 {offsets = [24, 0], sizes = [8, 1], strides = [1, 1]} : vector<32x1xf32> to vector<8x1xf32>
    %221 = vector.extract_strided_slice %192 {offsets = [24, 0], sizes = [8, 1], strides = [1, 1]} : vector<32x1xf32> to vector<8x1xf32>
    %cst_264 = arith.constant dense<0.000000e+00> : vector<8xf32>
    %222 = vector.multi_reduction <add>, %190, %cst_264 [1] : vector<8x128xf32> to vector<8xf32>
    %223 = vector.shape_cast %222 : vector<8xf32> to vector<8x1xf32>
    %cst_265 = arith.constant 1.280000e+02 : f32
    %224 = vector.broadcast %cst_265 : f32 to vector<8x1xf32>
    %225 = arith.divf %223, %224 : vector<8x1xf32>
    %226 = vector.broadcast %225 : vector<8x1xf32> to vector<8x128xf32>
    %227 = arith.subf %190, %226 : vector<8x128xf32>
    %228 = arith.mulf %227, %227 : vector<8x128xf32>
    %cst_266 = arith.constant dense<0.000000e+00> : vector<8xf32>
    %229 = vector.multi_reduction <add>, %228, %cst_266 [1] : vector<8x128xf32> to vector<8xf32>
    %230 = vector.shape_cast %229 : vector<8xf32> to vector<8x1xf32>
    %cst_267 = arith.constant 1.280000e+02 : f32
    %231 = vector.broadcast %cst_267 : f32 to vector<8x1xf32>
    %232 = arith.divf %230, %231 : vector<8x1xf32>
    %233 = vector.broadcast %225 : vector<8x1xf32> to vector<8x128xf32>
    %234 = arith.subf %190, %233 : vector<8x128xf32>
    %cst_268 = arith.constant 9.99999974E-6 : f32
    %235 = vector.broadcast %cst_268 : f32 to vector<8x1xf32>
    %236 = arith.addf %232, %235 : vector<8x1xf32>
    %237 = math.rsqrt %236 : vector<8x1xf32>
    %238 = vector.broadcast %237 : vector<8x1xf32> to vector<8x128xf32>
    %239 = arith.mulf %234, %238 : vector<8x128xf32>
    %240 = vector.broadcast %220 : vector<8x1xf32> to vector<8x128xf32>
    %241 = arith.mulf %239, %240 : vector<8x128xf32>
    %242 = vector.broadcast %221 : vector<8x1xf32> to vector<8x128xf32>
    %243 = arith.addf %241, %242 : vector<8x128xf32>
    %cst_269 = arith.constant 0.000000e+00 : f32
    %244 = vector.broadcast %cst_269 : f32 to vector<8x128xf32>
    %245 = arith.maximumf %243, %244 : vector<8x128xf32>
    %c24_270 = arith.constant 24 : index
    %c0_271 = arith.constant 0 : index
    %246 = vector.load %arg7[%c24_270, %c0_271] : memref<32x128xf32, #tpu.memory_space<vmem>>, vector<8x128xf32>
    tpu.vector_store %arg7[%c24_270, %c0_271], %245 {strides = array<i32>} : memref<32x128xf32, #tpu.memory_space<vmem>>, vector<8x128xf32>,
    return
  }
  func.func @transform_0(%arg0: i32) -> (i32, i32) {
    %c0_i32 = arith.constant 0 : i32
    %c0_i32_0 = arith.constant 0 : i32
    %c0_i32_1 = arith.constant 0 : i32
    return %c0_i32, %c0_i32_0 : i32, i32
  }
  func.func @transform_1(%arg0: i32) -> (i32, i32) {
    %c0_i32 = arith.constant 0 : i32
    %c0_i32_0 = arith.constant 0 : i32
    %c0_i32_1 = arith.constant 0 : i32
    return %c0_i32, %c0_i32_0 : i32, i32
  }
  func.func @transform_2(%arg0: i32) -> (i32, i32) {
    %c0_i32 = arith.constant 0 : i32
    %c0_i32_0 = arith.constant 0 : i32
    %c0_i32_1 = arith.constant 0 : i32
    return %c0_i32, %c0_i32_0 : i32, i32
  }
  func.func @transform_3(%arg0: i32) -> (i32, i32) {
    %c0_i32 = arith.constant 0 : i32
    %c0_i32_0 = arith.constant 0 : i32
    %c0_i32_1 = arith.constant 0 : i32
    return %c0_i32, %c0_i32_0 : i32, i32
  }
  func.func @transform_4(%arg0: i32) -> (i32, i32) {
    %c0_i32 = arith.constant 0 : i32
    %c0_i32_0 = arith.constant 0 : i32
    %c0_i32_1 = arith.constant 0 : i32
    return %c0_i32, %c0_i32_0 : i32, i32
  }
  func.func @transform_5(%arg0: i32) -> (i32, i32) {
    %c0_i32 = arith.constant 0 : i32
    %c0_i32_0 = arith.constant 0 : i32
    %c0_i32_1 = arith.constant 0 : i32
    return %c0_i32, %c0_i32_0 : i32, i32
  }
  func.func @transform_6(%arg0: i32) -> (i32, i32) {
    %c0_i32 = arith.constant 0 : i32
    %c0_i32_0 = arith.constant 0 : i32
    %c0_i32_1 = arith.constant 0 : i32
    return %c0_i32, %c0_i32_0 : i32, i32
  }
}

module attributes {stable_mosaic.version = 11 : i64} {
  func.func @inception_kernel(%arg0: i32, %arg1: memref<32x128xf32, #tpu.memory_space<vmem>>, %arg2: memref<8x32xf32, #tpu.memory_space<vmem>>, %arg3: memref<24x384xf32, #tpu.memory_space<vmem>>, %arg4: memref<8x32xf32, #tpu.memory_space<vmem>>, %arg5: memref<32x1xf32, #tpu.memory_space<vmem>>, %arg6: memref<32x1xf32, #tpu.memory_space<vmem>>, %arg7: memref<32x128xf32, #tpu.memory_space<vmem>>, %arg8: memref<8x204xf32, #tpu.memory_space<vmem>>, %arg9: memref<384x128xf32, #tpu.memory_space<vmem>>, %arg10: memref<32x66xf32, #tpu.memory_space<vmem>>, %arg11: memref<32x128xf32, #tpu.memory_space<vmem>>) attributes {dimension_semantics = [#tpu.dimension_semantics<arbitrary>], iteration_bounds = array<i64: 1>, scalar_prefetch = 0 : i64, scratch_operands = 4 : i64, tpu.core_type = #tpu.core_type<tc>, window_params = [{pipeline_mode = #tpu.pipeline_mode<synchronous>, transform_indices = @transform_0, window_bounds = array<i64: 32, 128>}, {pipeline_mode = #tpu.pipeline_mode<synchronous>, transform_indices = @transform_1, window_bounds = array<i64: 8, 32>}, {pipeline_mode = #tpu.pipeline_mode<synchronous>, transform_indices = @transform_2, window_bounds = array<i64: 24, 384>}, {pipeline_mode = #tpu.pipeline_mode<synchronous>, transform_indices = @transform_3, window_bounds = array<i64: 8, 32>}, {pipeline_mode = #tpu.pipeline_mode<synchronous>, transform_indices = @transform_4, window_bounds = array<i64: 32, 1>}, {pipeline_mode = #tpu.pipeline_mode<synchronous>, transform_indices = @transform_5, window_bounds = array<i64: 32, 1>}, {pipeline_mode = #tpu.pipeline_mode<synchronous>, transform_indices = @transform_6, window_bounds = array<i64: 32, 128>}]} {
    %cst = arith.constant 0.000000e+00 : f32
    %0 = vector.broadcast %cst : f32 to vector<8x204xf32>
    %c0 = arith.constant 0 : index
    %c0_0 = arith.constant 0 : index
    %1 = vector.load %arg8[%c0, %c0_0] : memref<8x204xf32, #tpu.memory_space<vmem>>, vector<8x204xf32>
    tpu.vector_store %arg8[%c0, %c0_0], %0 {strides = array<i32>} : memref<8x204xf32, #tpu.memory_space<vmem>>, vector<8x204xf32>,
    %cst_1 = arith.constant 0.000000e+00 : f32
    %2 = vector.broadcast %cst_1 : f32 to vector<384x128xf32>
    %c0_2 = arith.constant 0 : index
    %c0_3 = arith.constant 0 : index
    %3 = vector.load %arg9[%c0_2, %c0_3] : memref<384x128xf32, #tpu.memory_space<vmem>>, vector<384x128xf32>
    tpu.vector_store %arg9[%c0_2, %c0_3], %2 {strides = array<i32>} : memref<384x128xf32, #tpu.memory_space<vmem>>, vector<384x128xf32>,
    %cst_4 = arith.constant 0xFF800000 : f32
    %4 = vector.broadcast %cst_4 : f32 to vector<32x66xf32>
    %c0_5 = arith.constant 0 : index
    %c0_6 = arith.constant 0 : index
    %5 = vector.load %arg10[%c0_5, %c0_6] : memref<32x66xf32, #tpu.memory_space<vmem>>, vector<32x66xf32>
    tpu.vector_store %arg10[%c0_5, %c0_6], %4 {strides = array<i32>} : memref<32x66xf32, #tpu.memory_space<vmem>>, vector<32x66xf32>,
    %c0_7 = arith.constant 0 : index
    %c0_8 = arith.constant 0 : index
    %6 = vector.load %arg1[%c0_7, %c0_8] : memref<32x128xf32, #tpu.memory_space<vmem>>, vector<32x128xf32>
    %c0_9 = arith.constant 0 : index
    %c0_10 = arith.constant 0 : index
    %7 = vector.load %arg2[%c0_9, %c0_10] : memref<8x32xf32, #tpu.memory_space<vmem>>, vector<8x32xf32>
    %cst_11 = arith.constant dense<0.000000e+00> : vector<8x128xf32>
    %8 = tpu.matmul %7, %6, %cst_11 {dimension_numbers = #tpu.dot_dimension_numbers<[1], [0], [0], [1], [0, 0, 1, 1], [], []>} : vector<8x32xf32>, vector<32x128xf32>, vector<8x128xf32> -> vector<8x128xf32>
    %9 = vector.extract_strided_slice %8 {offsets = [0, 0], sizes = [8, 64], strides = [1, 1]} : vector<8x128xf32> to vector<8x64xf32>
    %c0_12 = arith.constant 0 : index
    %c19 = arith.constant 19 : index
    %10 = vector.load %arg8[%c0_12, %c19] : memref<8x204xf32, #tpu.memory_space<vmem>>, vector<8x64xf32>
    tpu.vector_store %arg8[%c0_12, %c19], %9 {strides = array<i32>} : memref<8x204xf32, #tpu.memory_space<vmem>>, vector<8x64xf32>,
    %11 = vector.extract_strided_slice %8 {offsets = [0, 64], sizes = [8, 64], strides = [1, 1]} : vector<8x128xf32> to vector<8x64xf32>
    %c0_13 = arith.constant 0 : index
    %c121 = arith.constant 121 : index
    %12 = vector.load %arg8[%c0_13, %c121] : memref<8x204xf32, #tpu.memory_space<vmem>>, vector<8x64xf32>
    tpu.vector_store %arg8[%c0_13, %c121], %11 {strides = array<i32>} : memref<8x204xf32, #tpu.memory_space<vmem>>, vector<8x64xf32>,
    %c0_14 = arith.constant 0 : index
    %c0_15 = arith.constant 0 : index
    %13 = vector.load %arg8[%c0_14, %c0_15] : memref<8x204xf32, #tpu.memory_space<vmem>>, vector<8x64xf32>
    %c0_16 = arith.constant 0 : index
    %c0_17 = arith.constant 0 : index
    %14 = vector.load %arg9[%c0_16, %c0_17] : memref<384x128xf32, #tpu.memory_space<vmem>>, vector<8x64xf32>
    tpu.vector_store %arg9[%c0_16, %c0_17], %13 {strides = array<i32>} : memref<384x128xf32, #tpu.memory_space<vmem>>, vector<8x64xf32>,
    %c0_18 = arith.constant 0 : index
    %c1 = arith.constant 1 : index
    %15 = vector.load %arg8[%c0_18, %c1] : memref<8x204xf32, #tpu.memory_space<vmem>>, vector<8x64xf32>
    %c8 = arith.constant 8 : index
    %c0_19 = arith.constant 0 : index
    %16 = vector.load %arg9[%c8, %c0_19] : memref<384x128xf32, #tpu.memory_space<vmem>>, vector<8x64xf32>
    tpu.vector_store %arg9[%c8, %c0_19], %15 {strides = array<i32>} : memref<384x128xf32, #tpu.memory_space<vmem>>, vector<8x64xf32>,
    %c0_20 = arith.constant 0 : index
    %c2 = arith.constant 2 : index
    %17 = vector.load %arg8[%c0_20, %c2] : memref<8x204xf32, #tpu.memory_space<vmem>>, vector<8x64xf32>
    %c16 = arith.constant 16 : index
    %c0_21 = arith.constant 0 : index
    %18 = vector.load %arg9[%c16, %c0_21] : memref<384x128xf32, #tpu.memory_space<vmem>>, vector<8x64xf32>
    tpu.vector_store %arg9[%c16, %c0_21], %17 {strides = array<i32>} : memref<384x128xf32, #tpu.memory_space<vmem>>, vector<8x64xf32>,
    %c0_22 = arith.constant 0 : index
    %c3 = arith.constant 3 : index
    %19 = vector.load %arg8[%c0_22, %c3] : memref<8x204xf32, #tpu.memory_space<vmem>>, vector<8x64xf32>
    %c24 = arith.constant 24 : index
    %c0_23 = arith.constant 0 : index
    %20 = vector.load %arg9[%c24, %c0_23] : memref<384x128xf32, #tpu.memory_space<vmem>>, vector<8x64xf32>
    tpu.vector_store %arg9[%c24, %c0_23], %19 {strides = array<i32>} : memref<384x128xf32, #tpu.memory_space<vmem>>, vector<8x64xf32>,
    %c0_24 = arith.constant 0 : index
    %c4 = arith.constant 4 : index
    %21 = vector.load %arg8[%c0_24, %c4] : memref<8x204xf32, #tpu.memory_space<vmem>>, vector<8x64xf32>
    %c32 = arith.constant 32 : index
    %c0_25 = arith.constant 0 : index
    %22 = vector.load %arg9[%c32, %c0_25] : memref<384x128xf32, #tpu.memory_space<vmem>>, vector<8x64xf32>
    tpu.vector_store %arg9[%c32, %c0_25], %21 {strides = array<i32>} : memref<384x128xf32, #tpu.memory_space<vmem>>, vector<8x64xf32>,
    %c0_26 = arith.constant 0 : index
    %c5 = arith.constant 5 : index
    %23 = vector.load %arg8[%c0_26, %c5] : memref<8x204xf32, #tpu.memory_space<vmem>>, vector<8x64xf32>
    %c40 = arith.constant 40 : index
    %c0_27 = arith.constant 0 : index
    %24 = vector.load %arg9[%c40, %c0_27] : memref<384x128xf32, #tpu.memory_space<vmem>>, vector<8x64xf32>
    tpu.vector_store %arg9[%c40, %c0_27], %23 {strides = array<i32>} : memref<384x128xf32, #tpu.memory_space<vmem>>, vector<8x64xf32>,
    %c0_28 = arith.constant 0 : index
    %c6 = arith.constant 6 : index
    %25 = vector.load %arg8[%c0_28, %c6] : memref<8x204xf32, #tpu.memory_space<vmem>>, vector<8x64xf32>
    %c48 = arith.constant 48 : index
    %c0_29 = arith.constant 0 : index
    %26 = vector.load %arg9[%c48, %c0_29] : memref<384x128xf32, #tpu.memory_space<vmem>>, vector<8x64xf32>
    tpu.vector_store %arg9[%c48, %c0_29], %25 {strides = array<i32>} : memref<384x128xf32, #tpu.memory_space<vmem>>, vector<8x64xf32>,
    %c0_30 = arith.constant 0 : index
    %c7 = arith.constant 7 : index
    %27 = vector.load %arg8[%c0_30, %c7] : memref<8x204xf32, #tpu.memory_space<vmem>>, vector<8x64xf32>
    %c56 = arith.constant 56 : index
    %c0_31 = arith.constant 0 : index
    %28 = vector.load %arg9[%c56, %c0_31] : memref<384x128xf32, #tpu.memory_space<vmem>>, vector<8x64xf32>
    tpu.vector_store %arg9[%c56, %c0_31], %27 {strides = array<i32>} : memref<384x128xf32, #tpu.memory_space<vmem>>, vector<8x64xf32>,
    %c0_32 = arith.constant 0 : index
    %c8_33 = arith.constant 8 : index
    %29 = vector.load %arg8[%c0_32, %c8_33] : memref<8x204xf32, #tpu.memory_space<vmem>>, vector<8x64xf32>
    %c64 = arith.constant 64 : index
    %c0_34 = arith.constant 0 : index
    %30 = vector.load %arg9[%c64, %c0_34] : memref<384x128xf32, #tpu.memory_space<vmem>>, vector<8x64xf32>
    tpu.vector_store %arg9[%c64, %c0_34], %29 {strides = array<i32>} : memref<384x128xf32, #tpu.memory_space<vmem>>, vector<8x64xf32>,
    %c0_35 = arith.constant 0 : index
    %c9 = arith.constant 9 : index
    %31 = vector.load %arg8[%c0_35, %c9] : memref<8x204xf32, #tpu.memory_space<vmem>>, vector<8x64xf32>
    %c72 = arith.constant 72 : index
    %c0_36 = arith.constant 0 : index
    %32 = vector.load %arg9[%c72, %c0_36] : memref<384x128xf32, #tpu.memory_space<vmem>>, vector<8x64xf32>
    tpu.vector_store %arg9[%c72, %c0_36], %31 {strides = array<i32>} : memref<384x128xf32, #tpu.memory_space<vmem>>, vector<8x64xf32>,
    %c0_37 = arith.constant 0 : index
    %c10 = arith.constant 10 : index
    %33 = vector.load %arg8[%c0_37, %c10] : memref<8x204xf32, #tpu.memory_space<vmem>>, vector<8x64xf32>
    %c80 = arith.constant 80 : index
    %c0_38 = arith.constant 0 : index
    %34 = vector.load %arg9[%c80, %c0_38] : memref<384x128xf32, #tpu.memory_space<vmem>>, vector<8x64xf32>
    tpu.vector_store %arg9[%c80, %c0_38], %33 {strides = array<i32>} : memref<384x128xf32, #tpu.memory_space<vmem>>, vector<8x64xf32>,
    %c0_39 = arith.constant 0 : index
    %c11 = arith.constant 11 : index
    %35 = vector.load %arg8[%c0_39, %c11] : memref<8x204xf32, #tpu.memory_space<vmem>>, vector<8x64xf32>
    %c88 = arith.constant 88 : index
    %c0_40 = arith.constant 0 : index
    %36 = vector.load %arg9[%c88, %c0_40] : memref<384x128xf32, #tpu.memory_space<vmem>>, vector<8x64xf32>
    tpu.vector_store %arg9[%c88, %c0_40], %35 {strides = array<i32>} : memref<384x128xf32, #tpu.memory_space<vmem>>, vector<8x64xf32>,
    %c0_41 = arith.constant 0 : index
    %c12 = arith.constant 12 : index
    %37 = vector.load %arg8[%c0_41, %c12] : memref<8x204xf32, #tpu.memory_space<vmem>>, vector<8x64xf32>
    %c96 = arith.constant 96 : index
    %c0_42 = arith.constant 0 : index
    %38 = vector.load %arg9[%c96, %c0_42] : memref<384x128xf32, #tpu.memory_space<vmem>>, vector<8x64xf32>
    tpu.vector_store %arg9[%c96, %c0_42], %37 {strides = array<i32>} : memref<384x128xf32, #tpu.memory_space<vmem>>, vector<8x64xf32>,
    %c0_43 = arith.constant 0 : index
    %c13 = arith.constant 13 : index
    %39 = vector.load %arg8[%c0_43, %c13] : memref<8x204xf32, #tpu.memory_space<vmem>>, vector<8x64xf32>
    %c104 = arith.constant 104 : index
    %c0_44 = arith.constant 0 : index
    %40 = vector.load %arg9[%c104, %c0_44] : memref<384x128xf32, #tpu.memory_space<vmem>>, vector<8x64xf32>
    tpu.vector_store %arg9[%c104, %c0_44], %39 {strides = array<i32>} : memref<384x128xf32, #tpu.memory_space<vmem>>, vector<8x64xf32>,
    %c0_45 = arith.constant 0 : index
    %c14 = arith.constant 14 : index
    %41 = vector.load %arg8[%c0_45, %c14] : memref<8x204xf32, #tpu.memory_space<vmem>>, vector<8x64xf32>
    %c112 = arith.constant 112 : index
    %c0_46 = arith.constant 0 : index
    %42 = vector.load %arg9[%c112, %c0_46] : memref<384x128xf32, #tpu.memory_space<vmem>>, vector<8x64xf32>
    tpu.vector_store %arg9[%c112, %c0_46], %41 {strides = array<i32>} : memref<384x128xf32, #tpu.memory_space<vmem>>, vector<8x64xf32>,
    %c0_47 = arith.constant 0 : index
    %c15 = arith.constant 15 : index
    %43 = vector.load %arg8[%c0_47, %c15] : memref<8x204xf32, #tpu.memory_space<vmem>>, vector<8x64xf32>
    %c120 = arith.constant 120 : index
    %c0_48 = arith.constant 0 : index
    %44 = vector.load %arg9[%c120, %c0_48] : memref<384x128xf32, #tpu.memory_space<vmem>>, vector<8x64xf32>
    tpu.vector_store %arg9[%c120, %c0_48], %43 {strides = array<i32>} : memref<384x128xf32, #tpu.memory_space<vmem>>, vector<8x64xf32>,
    %c0_49 = arith.constant 0 : index
    %c16_50 = arith.constant 16 : index
    %45 = vector.load %arg8[%c0_49, %c16_50] : memref<8x204xf32, #tpu.memory_space<vmem>>, vector<8x64xf32>
    %c128 = arith.constant 128 : index
    %c0_51 = arith.constant 0 : index
    %46 = vector.load %arg9[%c128, %c0_51] : memref<384x128xf32, #tpu.memory_space<vmem>>, vector<8x64xf32>
    tpu.vector_store %arg9[%c128, %c0_51], %45 {strides = array<i32>} : memref<384x128xf32, #tpu.memory_space<vmem>>, vector<8x64xf32>,
    %c0_52 = arith.constant 0 : index
    %c17 = arith.constant 17 : index
    %47 = vector.load %arg8[%c0_52, %c17] : memref<8x204xf32, #tpu.memory_space<vmem>>, vector<8x64xf32>
    %c136 = arith.constant 136 : index
    %c0_53 = arith.constant 0 : index
    %48 = vector.load %arg9[%c136, %c0_53] : memref<384x128xf32, #tpu.memory_space<vmem>>, vector<8x64xf32>
    tpu.vector_store %arg9[%c136, %c0_53], %47 {strides = array<i32>} : memref<384x128xf32, #tpu.memory_space<vmem>>, vector<8x64xf32>,
    %c0_54 = arith.constant 0 : index
    %c18 = arith.constant 18 : index
    %49 = vector.load %arg8[%c0_54, %c18] : memref<8x204xf32, #tpu.memory_space<vmem>>, vector<8x64xf32>
    %c144 = arith.constant 144 : index
    %c0_55 = arith.constant 0 : index
    %50 = vector.load %arg9[%c144, %c0_55] : memref<384x128xf32, #tpu.memory_space<vmem>>, vector<8x64xf32>
    tpu.vector_store %arg9[%c144, %c0_55], %49 {strides = array<i32>} : memref<384x128xf32, #tpu.memory_space<vmem>>, vector<8x64xf32>,
    %c0_56 = arith.constant 0 : index
    %c19_57 = arith.constant 19 : index
    %51 = vector.load %arg8[%c0_56, %c19_57] : memref<8x204xf32, #tpu.memory_space<vmem>>, vector<8x64xf32>
    %c152 = arith.constant 152 : index
    %c0_58 = arith.constant 0 : index
    %52 = vector.load %arg9[%c152, %c0_58] : memref<384x128xf32, #tpu.memory_space<vmem>>, vector<8x64xf32>
    tpu.vector_store %arg9[%c152, %c0_58], %51 {strides = array<i32>} : memref<384x128xf32, #tpu.memory_space<vmem>>, vector<8x64xf32>,
    %c0_59 = arith.constant 0 : index
    %c20 = arith.constant 20 : index
    %53 = vector.load %arg8[%c0_59, %c20] : memref<8x204xf32, #tpu.memory_space<vmem>>, vector<8x64xf32>
    %c160 = arith.constant 160 : index
    %c0_60 = arith.constant 0 : index
    %54 = vector.load %arg9[%c160, %c0_60] : memref<384x128xf32, #tpu.memory_space<vmem>>, vector<8x64xf32>
    tpu.vector_store %arg9[%c160, %c0_60], %53 {strides = array<i32>} : memref<384x128xf32, #tpu.memory_space<vmem>>, vector<8x64xf32>,
    %c0_61 = arith.constant 0 : index
    %c21 = arith.constant 21 : index
    %55 = vector.load %arg8[%c0_61, %c21] : memref<8x204xf32, #tpu.memory_space<vmem>>, vector<8x64xf32>
    %c168 = arith.constant 168 : index
    %c0_62 = arith.constant 0 : index
    %56 = vector.load %arg9[%c168, %c0_62] : memref<384x128xf32, #tpu.memory_space<vmem>>, vector<8x64xf32>
    tpu.vector_store %arg9[%c168, %c0_62], %55 {strides = array<i32>} : memref<384x128xf32, #tpu.memory_space<vmem>>, vector<8x64xf32>,
    %c0_63 = arith.constant 0 : index
    %c22 = arith.constant 22 : index
    %57 = vector.load %arg8[%c0_63, %c22] : memref<8x204xf32, #tpu.memory_space<vmem>>, vector<8x64xf32>
    %c176 = arith.constant 176 : index
    %c0_64 = arith.constant 0 : index
    %58 = vector.load %arg9[%c176, %c0_64] : memref<384x128xf32, #tpu.memory_space<vmem>>, vector<8x64xf32>
    tpu.vector_store %arg9[%c176, %c0_64], %57 {strides = array<i32>} : memref<384x128xf32, #tpu.memory_space<vmem>>, vector<8x64xf32>,
    %c0_65 = arith.constant 0 : index
    %c23 = arith.constant 23 : index
    %59 = vector.load %arg8[%c0_65, %c23] : memref<8x204xf32, #tpu.memory_space<vmem>>, vector<8x64xf32>
    %c184 = arith.constant 184 : index
    %c0_66 = arith.constant 0 : index
    %60 = vector.load %arg9[%c184, %c0_66] : memref<384x128xf32, #tpu.memory_space<vmem>>, vector<8x64xf32>
    tpu.vector_store %arg9[%c184, %c0_66], %59 {strides = array<i32>} : memref<384x128xf32, #tpu.memory_space<vmem>>, vector<8x64xf32>,
    %c0_67 = arith.constant 0 : index
    %c24_68 = arith.constant 24 : index
    %61 = vector.load %arg8[%c0_67, %c24_68] : memref<8x204xf32, #tpu.memory_space<vmem>>, vector<8x64xf32>
    %c192 = arith.constant 192 : index
    %c0_69 = arith.constant 0 : index
    %62 = vector.load %arg9[%c192, %c0_69] : memref<384x128xf32, #tpu.memory_space<vmem>>, vector<8x64xf32>
    tpu.vector_store %arg9[%c192, %c0_69], %61 {strides = array<i32>} : memref<384x128xf32, #tpu.memory_space<vmem>>, vector<8x64xf32>,
    %c0_70 = arith.constant 0 : index
    %c25 = arith.constant 25 : index
    %63 = vector.load %arg8[%c0_70, %c25] : memref<8x204xf32, #tpu.memory_space<vmem>>, vector<8x64xf32>
    %c200 = arith.constant 200 : index
    %c0_71 = arith.constant 0 : index
    %64 = vector.load %arg9[%c200, %c0_71] : memref<384x128xf32, #tpu.memory_space<vmem>>, vector<8x64xf32>
    tpu.vector_store %arg9[%c200, %c0_71], %63 {strides = array<i32>} : memref<384x128xf32, #tpu.memory_space<vmem>>, vector<8x64xf32>,
    %c0_72 = arith.constant 0 : index
    %c26 = arith.constant 26 : index
    %65 = vector.load %arg8[%c0_72, %c26] : memref<8x204xf32, #tpu.memory_space<vmem>>, vector<8x64xf32>
    %c208 = arith.constant 208 : index
    %c0_73 = arith.constant 0 : index
    %66 = vector.load %arg9[%c208, %c0_73] : memref<384x128xf32, #tpu.memory_space<vmem>>, vector<8x64xf32>
    tpu.vector_store %arg9[%c208, %c0_73], %65 {strides = array<i32>} : memref<384x128xf32, #tpu.memory_space<vmem>>, vector<8x64xf32>,
    %c0_74 = arith.constant 0 : index
    %c27 = arith.constant 27 : index
    %67 = vector.load %arg8[%c0_74, %c27] : memref<8x204xf32, #tpu.memory_space<vmem>>, vector<8x64xf32>
    %c216 = arith.constant 216 : index
    %c0_75 = arith.constant 0 : index
    %68 = vector.load %arg9[%c216, %c0_75] : memref<384x128xf32, #tpu.memory_space<vmem>>, vector<8x64xf32>
    tpu.vector_store %arg9[%c216, %c0_75], %67 {strides = array<i32>} : memref<384x128xf32, #tpu.memory_space<vmem>>, vector<8x64xf32>,
    %c0_76 = arith.constant 0 : index
    %c28 = arith.constant 28 : index
    %69 = vector.load %arg8[%c0_76, %c28] : memref<8x204xf32, #tpu.memory_space<vmem>>, vector<8x64xf32>
    %c224 = arith.constant 224 : index
    %c0_77 = arith.constant 0 : index
    %70 = vector.load %arg9[%c224, %c0_77] : memref<384x128xf32, #tpu.memory_space<vmem>>, vector<8x64xf32>
    tpu.vector_store %arg9[%c224, %c0_77], %69 {strides = array<i32>} : memref<384x128xf32, #tpu.memory_space<vmem>>, vector<8x64xf32>,
    %c0_78 = arith.constant 0 : index
    %c29 = arith.constant 29 : index
    %71 = vector.load %arg8[%c0_78, %c29] : memref<8x204xf32, #tpu.memory_space<vmem>>, vector<8x64xf32>
    %c232 = arith.constant 232 : index
    %c0_79 = arith.constant 0 : index
    %72 = vector.load %arg9[%c232, %c0_79] : memref<384x128xf32, #tpu.memory_space<vmem>>, vector<8x64xf32>
    tpu.vector_store %arg9[%c232, %c0_79], %71 {strides = array<i32>} : memref<384x128xf32, #tpu.memory_space<vmem>>, vector<8x64xf32>,
    %c0_80 = arith.constant 0 : index
    %c30 = arith.constant 30 : index
    %73 = vector.load %arg8[%c0_80, %c30] : memref<8x204xf32, #tpu.memory_space<vmem>>, vector<8x64xf32>
    %c240 = arith.constant 240 : index
    %c0_81 = arith.constant 0 : index
    %74 = vector.load %arg9[%c240, %c0_81] : memref<384x128xf32, #tpu.memory_space<vmem>>, vector<8x64xf32>
    tpu.vector_store %arg9[%c240, %c0_81], %73 {strides = array<i32>} : memref<384x128xf32, #tpu.memory_space<vmem>>, vector<8x64xf32>,
    %c0_82 = arith.constant 0 : index
    %c31 = arith.constant 31 : index
    %75 = vector.load %arg8[%c0_82, %c31] : memref<8x204xf32, #tpu.memory_space<vmem>>, vector<8x64xf32>
    %c248 = arith.constant 248 : index
    %c0_83 = arith.constant 0 : index
    %76 = vector.load %arg9[%c248, %c0_83] : memref<384x128xf32, #tpu.memory_space<vmem>>, vector<8x64xf32>
    tpu.vector_store %arg9[%c248, %c0_83], %75 {strides = array<i32>} : memref<384x128xf32, #tpu.memory_space<vmem>>, vector<8x64xf32>,
    %c0_84 = arith.constant 0 : index
    %c32_85 = arith.constant 32 : index
    %77 = vector.load %arg8[%c0_84, %c32_85] : memref<8x204xf32, #tpu.memory_space<vmem>>, vector<8x64xf32>
    %c256 = arith.constant 256 : index
    %c0_86 = arith.constant 0 : index
    %78 = vector.load %arg9[%c256, %c0_86] : memref<384x128xf32, #tpu.memory_space<vmem>>, vector<8x64xf32>
    tpu.vector_store %arg9[%c256, %c0_86], %77 {strides = array<i32>} : memref<384x128xf32, #tpu.memory_space<vmem>>, vector<8x64xf32>,
    %c0_87 = arith.constant 0 : index
    %c33 = arith.constant 33 : index
    %79 = vector.load %arg8[%c0_87, %c33] : memref<8x204xf32, #tpu.memory_space<vmem>>, vector<8x64xf32>
    %c264 = arith.constant 264 : index
    %c0_88 = arith.constant 0 : index
    %80 = vector.load %arg9[%c264, %c0_88] : memref<384x128xf32, #tpu.memory_space<vmem>>, vector<8x64xf32>
    tpu.vector_store %arg9[%c264, %c0_88], %79 {strides = array<i32>} : memref<384x128xf32, #tpu.memory_space<vmem>>, vector<8x64xf32>,
    %c0_89 = arith.constant 0 : index
    %c34 = arith.constant 34 : index
    %81 = vector.load %arg8[%c0_89, %c34] : memref<8x204xf32, #tpu.memory_space<vmem>>, vector<8x64xf32>
    %c272 = arith.constant 272 : index
    %c0_90 = arith.constant 0 : index
    %82 = vector.load %arg9[%c272, %c0_90] : memref<384x128xf32, #tpu.memory_space<vmem>>, vector<8x64xf32>
    tpu.vector_store %arg9[%c272, %c0_90], %81 {strides = array<i32>} : memref<384x128xf32, #tpu.memory_space<vmem>>, vector<8x64xf32>,
    %c0_91 = arith.constant 0 : index
    %c35 = arith.constant 35 : index
    %83 = vector.load %arg8[%c0_91, %c35] : memref<8x204xf32, #tpu.memory_space<vmem>>, vector<8x64xf32>
    %c280 = arith.constant 280 : index
    %c0_92 = arith.constant 0 : index
    %84 = vector.load %arg9[%c280, %c0_92] : memref<384x128xf32, #tpu.memory_space<vmem>>, vector<8x64xf32>
    tpu.vector_store %arg9[%c280, %c0_92], %83 {strides = array<i32>} : memref<384x128xf32, #tpu.memory_space<vmem>>, vector<8x64xf32>,
    %c0_93 = arith.constant 0 : index
    %c36 = arith.constant 36 : index
    %85 = vector.load %arg8[%c0_93, %c36] : memref<8x204xf32, #tpu.memory_space<vmem>>, vector<8x64xf32>
    %c288 = arith.constant 288 : index
    %c0_94 = arith.constant 0 : index
    %86 = vector.load %arg9[%c288, %c0_94] : memref<384x128xf32, #tpu.memory_space<vmem>>, vector<8x64xf32>
    tpu.vector_store %arg9[%c288, %c0_94], %85 {strides = array<i32>} : memref<384x128xf32, #tpu.memory_space<vmem>>, vector<8x64xf32>,
    %c0_95 = arith.constant 0 : index
    %c37 = arith.constant 37 : index
    %87 = vector.load %arg8[%c0_95, %c37] : memref<8x204xf32, #tpu.memory_space<vmem>>, vector<8x64xf32>
    %c296 = arith.constant 296 : index
    %c0_96 = arith.constant 0 : index
    %88 = vector.load %arg9[%c296, %c0_96] : memref<384x128xf32, #tpu.memory_space<vmem>>, vector<8x64xf32>
    tpu.vector_store %arg9[%c296, %c0_96], %87 {strides = array<i32>} : memref<384x128xf32, #tpu.memory_space<vmem>>, vector<8x64xf32>,
    %c0_97 = arith.constant 0 : index
    %c38 = arith.constant 38 : index
    %89 = vector.load %arg8[%c0_97, %c38] : memref<8x204xf32, #tpu.memory_space<vmem>>, vector<8x64xf32>
    %c304 = arith.constant 304 : index
    %c0_98 = arith.constant 0 : index
    %90 = vector.load %arg9[%c304, %c0_98] : memref<384x128xf32, #tpu.memory_space<vmem>>, vector<8x64xf32>
    tpu.vector_store %arg9[%c304, %c0_98], %89 {strides = array<i32>} : memref<384x128xf32, #tpu.memory_space<vmem>>, vector<8x64xf32>,
    %c0_99 = arith.constant 0 : index
    %c102 = arith.constant 102 : index
    %91 = vector.load %arg8[%c0_99, %c102] : memref<8x204xf32, #tpu.memory_space<vmem>>, vector<8x64xf32>
    %c0_100 = arith.constant 0 : index
    %c64_101 = arith.constant 64 : index
    %92 = vector.load %arg9[%c0_100, %c64_101] : memref<384x128xf32, #tpu.memory_space<vmem>>, vector<8x64xf32>
    tpu.vector_store %arg9[%c0_100, %c64_101], %91 {strides = array<i32>} : memref<384x128xf32, #tpu.memory_space<vmem>>, vector<8x64xf32>,
    %c0_102 = arith.constant 0 : index
    %c103 = arith.constant 103 : index
    %93 = vector.load %arg8[%c0_102, %c103] : memref<8x204xf32, #tpu.memory_space<vmem>>, vector<8x64xf32>
    %c8_103 = arith.constant 8 : index
    %c64_104 = arith.constant 64 : index
    %94 = vector.load %arg9[%c8_103, %c64_104] : memref<384x128xf32, #tpu.memory_space<vmem>>, vector<8x64xf32>
    tpu.vector_store %arg9[%c8_103, %c64_104], %93 {strides = array<i32>} : memref<384x128xf32, #tpu.memory_space<vmem>>, vector<8x64xf32>,
    %c0_105 = arith.constant 0 : index
    %c104_106 = arith.constant 104 : index
    %95 = vector.load %arg8[%c0_105, %c104_106] : memref<8x204xf32, #tpu.memory_space<vmem>>, vector<8x64xf32>
    %c16_107 = arith.constant 16 : index
    %c64_108 = arith.constant 64 : index
    %96 = vector.load %arg9[%c16_107, %c64_108] : memref<384x128xf32, #tpu.memory_space<vmem>>, vector<8x64xf32>
    tpu.vector_store %arg9[%c16_107, %c64_108], %95 {strides = array<i32>} : memref<384x128xf32, #tpu.memory_space<vmem>>, vector<8x64xf32>,
    %c0_109 = arith.constant 0 : index
    %c105 = arith.constant 105 : index
    %97 = vector.load %arg8[%c0_109, %c105] : memref<8x204xf32, #tpu.memory_space<vmem>>, vector<8x64xf32>
    %c24_110 = arith.constant 24 : index
    %c64_111 = arith.constant 64 : index
    %98 = vector.load %arg9[%c24_110, %c64_111] : memref<384x128xf32, #tpu.memory_space<vmem>>, vector<8x64xf32>
    tpu.vector_store %arg9[%c24_110, %c64_111], %97 {strides = array<i32>} : memref<384x128xf32, #tpu.memory_space<vmem>>, vector<8x64xf32>,
    %c0_112 = arith.constant 0 : index
    %c106 = arith.constant 106 : index
    %99 = vector.load %arg8[%c0_112, %c106] : memref<8x204xf32, #tpu.memory_space<vmem>>, vector<8x64xf32>
    %c32_113 = arith.constant 32 : index
    %c64_114 = arith.constant 64 : index
    %100 = vector.load %arg9[%c32_113, %c64_114] : memref<384x128xf32, #tpu.memory_space<vmem>>, vector<8x64xf32>
    tpu.vector_store %arg9[%c32_113, %c64_114], %99 {strides = array<i32>} : memref<384x128xf32, #tpu.memory_space<vmem>>, vector<8x64xf32>,
    %c0_115 = arith.constant 0 : index
    %c107 = arith.constant 107 : index
    %101 = vector.load %arg8[%c0_115, %c107] : memref<8x204xf32, #tpu.memory_space<vmem>>, vector<8x64xf32>
    %c40_116 = arith.constant 40 : index
    %c64_117 = arith.constant 64 : index
    %102 = vector.load %arg9[%c40_116, %c64_117] : memref<384x128xf32, #tpu.memory_space<vmem>>, vector<8x64xf32>
    tpu.vector_store %arg9[%c40_116, %c64_117], %101 {strides = array<i32>} : memref<384x128xf32, #tpu.memory_space<vmem>>, vector<8x64xf32>,
    %c0_118 = arith.constant 0 : index
    %c108 = arith.constant 108 : index
    %103 = vector.load %arg8[%c0_118, %c108] : memref<8x204xf32, #tpu.memory_space<vmem>>, vector<8x64xf32>
    %c48_119 = arith.constant 48 : index
    %c64_120 = arith.constant 64 : index
    %104 = vector.load %arg9[%c48_119, %c64_120] : memref<384x128xf32, #tpu.memory_space<vmem>>, vector<8x64xf32>
    tpu.vector_store %arg9[%c48_119, %c64_120], %103 {strides = array<i32>} : memref<384x128xf32, #tpu.memory_space<vmem>>, vector<8x64xf32>,
    %c0_121 = arith.constant 0 : index
    %c109 = arith.constant 109 : index
    %105 = vector.load %arg8[%c0_121, %c109] : memref<8x204xf32, #tpu.memory_space<vmem>>, vector<8x64xf32>
    %c56_122 = arith.constant 56 : index
    %c64_123 = arith.constant 64 : index
    %106 = vector.load %arg9[%c56_122, %c64_123] : memref<384x128xf32, #tpu.memory_space<vmem>>, vector<8x64xf32>
    tpu.vector_store %arg9[%c56_122, %c64_123], %105 {strides = array<i32>} : memref<384x128xf32, #tpu.memory_space<vmem>>, vector<8x64xf32>,
    %c0_124 = arith.constant 0 : index
    %c110 = arith.constant 110 : index
    %107 = vector.load %arg8[%c0_124, %c110] : memref<8x204xf32, #tpu.memory_space<vmem>>, vector<8x64xf32>
    %c64_125 = arith.constant 64 : index
    %c64_126 = arith.constant 64 : index
    %108 = vector.load %arg9[%c64_125, %c64_126] : memref<384x128xf32, #tpu.memory_space<vmem>>, vector<8x64xf32>
    tpu.vector_store %arg9[%c64_125, %c64_126], %107 {strides = array<i32>} : memref<384x128xf32, #tpu.memory_space<vmem>>, vector<8x64xf32>,
    %c0_127 = arith.constant 0 : index
    %c111 = arith.constant 111 : index
    %109 = vector.load %arg8[%c0_127, %c111] : memref<8x204xf32, #tpu.memory_space<vmem>>, vector<8x64xf32>
    %c72_128 = arith.constant 72 : index
    %c64_129 = arith.constant 64 : index
    %110 = vector.load %arg9[%c72_128, %c64_129] : memref<384x128xf32, #tpu.memory_space<vmem>>, vector<8x64xf32>
    tpu.vector_store %arg9[%c72_128, %c64_129], %109 {strides = array<i32>} : memref<384x128xf32, #tpu.memory_space<vmem>>, vector<8x64xf32>,
    %c0_130 = arith.constant 0 : index
    %c112_131 = arith.constant 112 : index
    %111 = vector.load %arg8[%c0_130, %c112_131] : memref<8x204xf32, #tpu.memory_space<vmem>>, vector<8x64xf32>
    %c80_132 = arith.constant 80 : index
    %c64_133 = arith.constant 64 : index
    %112 = vector.load %arg9[%c80_132, %c64_133] : memref<384x128xf32, #tpu.memory_space<vmem>>, vector<8x64xf32>
    tpu.vector_store %arg9[%c80_132, %c64_133], %111 {strides = array<i32>} : memref<384x128xf32, #tpu.memory_space<vmem>>, vector<8x64xf32>,
    %c0_134 = arith.constant 0 : index
    %c113 = arith.constant 113 : index
    %113 = vector.load %arg8[%c0_134, %c113] : memref<8x204xf32, #tpu.memory_space<vmem>>, vector<8x64xf32>
    %c88_135 = arith.constant 88 : index
    %c64_136 = arith.constant 64 : index
    %114 = vector.load %arg9[%c88_135, %c64_136] : memref<384x128xf32, #tpu.memory_space<vmem>>, vector<8x64xf32>
    tpu.vector_store %arg9[%c88_135, %c64_136], %113 {strides = array<i32>} : memref<384x128xf32, #tpu.memory_space<vmem>>, vector<8x64xf32>,
    %c0_137 = arith.constant 0 : index
    %c114 = arith.constant 114 : index
    %115 = vector.load %arg8[%c0_137, %c114] : memref<8x204xf32, #tpu.memory_space<vmem>>, vector<8x64xf32>
    %c96_138 = arith.constant 96 : index
    %c64_139 = arith.constant 64 : index
    %116 = vector.load %arg9[%c96_138, %c64_139] : memref<384x128xf32, #tpu.memory_space<vmem>>, vector<8x64xf32>
    tpu.vector_store %arg9[%c96_138, %c64_139], %115 {strides = array<i32>} : memref<384x128xf32, #tpu.memory_space<vmem>>, vector<8x64xf32>,
    %c0_140 = arith.constant 0 : index
    %c115 = arith.constant 115 : index
    %117 = vector.load %arg8[%c0_140, %c115] : memref<8x204xf32, #tpu.memory_space<vmem>>, vector<8x64xf32>
    %c104_141 = arith.constant 104 : index
    %c64_142 = arith.constant 64 : index
    %118 = vector.load %arg9[%c104_141, %c64_142] : memref<384x128xf32, #tpu.memory_space<vmem>>, vector<8x64xf32>
    tpu.vector_store %arg9[%c104_141, %c64_142], %117 {strides = array<i32>} : memref<384x128xf32, #tpu.memory_space<vmem>>, vector<8x64xf32>,
    %c0_143 = arith.constant 0 : index
    %c116 = arith.constant 116 : index
    %119 = vector.load %arg8[%c0_143, %c116] : memref<8x204xf32, #tpu.memory_space<vmem>>, vector<8x64xf32>
    %c112_144 = arith.constant 112 : index
    %c64_145 = arith.constant 64 : index
    %120 = vector.load %arg9[%c112_144, %c64_145] : memref<384x128xf32, #tpu.memory_space<vmem>>, vector<8x64xf32>
    tpu.vector_store %arg9[%c112_144, %c64_145], %119 {strides = array<i32>} : memref<384x128xf32, #tpu.memory_space<vmem>>, vector<8x64xf32>,
    %c0_146 = arith.constant 0 : index
    %c117 = arith.constant 117 : index
    %121 = vector.load %arg8[%c0_146, %c117] : memref<8x204xf32, #tpu.memory_space<vmem>>, vector<8x64xf32>
    %c120_147 = arith.constant 120 : index
    %c64_148 = arith.constant 64 : index
    %122 = vector.load %arg9[%c120_147, %c64_148] : memref<384x128xf32, #tpu.memory_space<vmem>>, vector<8x64xf32>
    tpu.vector_store %arg9[%c120_147, %c64_148], %121 {strides = array<i32>} : memref<384x128xf32, #tpu.memory_space<vmem>>, vector<8x64xf32>,
    %c0_149 = arith.constant 0 : index
    %c118 = arith.constant 118 : index
    %123 = vector.load %arg8[%c0_149, %c118] : memref<8x204xf32, #tpu.memory_space<vmem>>, vector<8x64xf32>
    %c128_150 = arith.constant 128 : index
    %c64_151 = arith.constant 64 : index
    %124 = vector.load %arg9[%c128_150, %c64_151] : memref<384x128xf32, #tpu.memory_space<vmem>>, vector<8x64xf32>
    tpu.vector_store %arg9[%c128_150, %c64_151], %123 {strides = array<i32>} : memref<384x128xf32, #tpu.memory_space<vmem>>, vector<8x64xf32>,
    %c0_152 = arith.constant 0 : index
    %c119 = arith.constant 119 : index
    %125 = vector.load %arg8[%c0_152, %c119] : memref<8x204xf32, #tpu.memory_space<vmem>>, vector<8x64xf32>
    %c136_153 = arith.constant 136 : index
    %c64_154 = arith.constant 64 : index
    %126 = vector.load %arg9[%c136_153, %c64_154] : memref<384x128xf32, #tpu.memory_space<vmem>>, vector<8x64xf32>
    tpu.vector_store %arg9[%c136_153, %c64_154], %125 {strides = array<i32>} : memref<384x128xf32, #tpu.memory_space<vmem>>, vector<8x64xf32>,
    %c0_155 = arith.constant 0 : index
    %c120_156 = arith.constant 120 : index
    %127 = vector.load %arg8[%c0_155, %c120_156] : memref<8x204xf32, #tpu.memory_space<vmem>>, vector<8x64xf32>
    %c144_157 = arith.constant 144 : index
    %c64_158 = arith.constant 64 : index
    %128 = vector.load %arg9[%c144_157, %c64_158] : memref<384x128xf32, #tpu.memory_space<vmem>>, vector<8x64xf32>
    tpu.vector_store %arg9[%c144_157, %c64_158], %127 {strides = array<i32>} : memref<384x128xf32, #tpu.memory_space<vmem>>, vector<8x64xf32>,
    %c0_159 = arith.constant 0 : index
    %c121_160 = arith.constant 121 : index
    %129 = vector.load %arg8[%c0_159, %c121_160] : memref<8x204xf32, #tpu.memory_space<vmem>>, vector<8x64xf32>
    %c152_161 = arith.constant 152 : index
    %c64_162 = arith.constant 64 : index
    %130 = vector.load %arg9[%c152_161, %c64_162] : memref<384x128xf32, #tpu.memory_space<vmem>>, vector<8x64xf32>
    tpu.vector_store %arg9[%c152_161, %c64_162], %129 {strides = array<i32>} : memref<384x128xf32, #tpu.memory_space<vmem>>, vector<8x64xf32>,
    %c0_163 = arith.constant 0 : index
    %c122 = arith.constant 122 : index
    %131 = vector.load %arg8[%c0_163, %c122] : memref<8x204xf32, #tpu.memory_space<vmem>>, vector<8x64xf32>
    %c160_164 = arith.constant 160 : index
    %c64_165 = arith.constant 64 : index
    %132 = vector.load %arg9[%c160_164, %c64_165] : memref<384x128xf32, #tpu.memory_space<vmem>>, vector<8x64xf32>
    tpu.vector_store %arg9[%c160_164, %c64_165], %131 {strides = array<i32>} : memref<384x128xf32, #tpu.memory_space<vmem>>, vector<8x64xf32>,
    %c0_166 = arith.constant 0 : index
    %c123 = arith.constant 123 : index
    %133 = vector.load %arg8[%c0_166, %c123] : memref<8x204xf32, #tpu.memory_space<vmem>>, vector<8x64xf32>
    %c168_167 = arith.constant 168 : index
    %c64_168 = arith.constant 64 : index
    %134 = vector.load %arg9[%c168_167, %c64_168] : memref<384x128xf32, #tpu.memory_space<vmem>>, vector<8x64xf32>
    tpu.vector_store %arg9[%c168_167, %c64_168], %133 {strides = array<i32>} : memref<384x128xf32, #tpu.memory_space<vmem>>, vector<8x64xf32>,
    %c0_169 = arith.constant 0 : index
    %c124 = arith.constant 124 : index
    %135 = vector.load %arg8[%c0_169, %c124] : memref<8x204xf32, #tpu.memory_space<vmem>>, vector<8x64xf32>
    %c176_170 = arith.constant 176 : index
    %c64_171 = arith.constant 64 : index
    %136 = vector.load %arg9[%c176_170, %c64_171] : memref<384x128xf32, #tpu.memory_space<vmem>>, vector<8x64xf32>
    tpu.vector_store %arg9[%c176_170, %c64_171], %135 {strides = array<i32>} : memref<384x128xf32, #tpu.memory_space<vmem>>, vector<8x64xf32>,
    %c0_172 = arith.constant 0 : index
    %c125 = arith.constant 125 : index
    %137 = vector.load %arg8[%c0_172, %c125] : memref<8x204xf32, #tpu.memory_space<vmem>>, vector<8x64xf32>
    %c184_173 = arith.constant 184 : index
    %c64_174 = arith.constant 64 : index
    %138 = vector.load %arg9[%c184_173, %c64_174] : memref<384x128xf32, #tpu.memory_space<vmem>>, vector<8x64xf32>
    tpu.vector_store %arg9[%c184_173, %c64_174], %137 {strides = array<i32>} : memref<384x128xf32, #tpu.memory_space<vmem>>, vector<8x64xf32>,
    %c0_175 = arith.constant 0 : index
    %c126 = arith.constant 126 : index
    %139 = vector.load %arg8[%c0_175, %c126] : memref<8x204xf32, #tpu.memory_space<vmem>>, vector<8x64xf32>
    %c192_176 = arith.constant 192 : index
    %c64_177 = arith.constant 64 : index
    %140 = vector.load %arg9[%c192_176, %c64_177] : memref<384x128xf32, #tpu.memory_space<vmem>>, vector<8x64xf32>
    tpu.vector_store %arg9[%c192_176, %c64_177], %139 {strides = array<i32>} : memref<384x128xf32, #tpu.memory_space<vmem>>, vector<8x64xf32>,
    %c0_178 = arith.constant 0 : index
    %c127 = arith.constant 127 : index
    %141 = vector.load %arg8[%c0_178, %c127] : memref<8x204xf32, #tpu.memory_space<vmem>>, vector<8x64xf32>
    %c200_179 = arith.constant 200 : index
    %c64_180 = arith.constant 64 : index
    %142 = vector.load %arg9[%c200_179, %c64_180] : memref<384x128xf32, #tpu.memory_space<vmem>>, vector<8x64xf32>
    tpu.vector_store %arg9[%c200_179, %c64_180], %141 {strides = array<i32>} : memref<384x128xf32, #tpu.memory_space<vmem>>, vector<8x64xf32>,
    %c0_181 = arith.constant 0 : index
    %c128_182 = arith.constant 128 : index
    %143 = vector.load %arg8[%c0_181, %c128_182] : memref<8x204xf32, #tpu.memory_space<vmem>>, vector<8x64xf32>
    %c208_183 = arith.constant 208 : index
    %c64_184 = arith.constant 64 : index
    %144 = vector.load %arg9[%c208_183, %c64_184] : memref<384x128xf32, #tpu.memory_space<vmem>>, vector<8x64xf32>
    tpu.vector_store %arg9[%c208_183, %c64_184], %143 {strides = array<i32>} : memref<384x128xf32, #tpu.memory_space<vmem>>, vector<8x64xf32>,
    %c0_185 = arith.constant 0 : index
    %c129 = arith.constant 129 : index
    %145 = vector.load %arg8[%c0_185, %c129] : memref<8x204xf32, #tpu.memory_space<vmem>>, vector<8x64xf32>
    %c216_186 = arith.constant 216 : index
    %c64_187 = arith.constant 64 : index
    %146 = vector.load %arg9[%c216_186, %c64_187] : memref<384x128xf32, #tpu.memory_space<vmem>>, vector<8x64xf32>
    tpu.vector_store %arg9[%c216_186, %c64_187], %145 {strides = array<i32>} : memref<384x128xf32, #tpu.memory_space<vmem>>, vector<8x64xf32>,
    %c0_188 = arith.constant 0 : index
    %c130 = arith.constant 130 : index
    %147 = vector.load %arg8[%c0_188, %c130] : memref<8x204xf32, #tpu.memory_space<vmem>>, vector<8x64xf32>
    %c224_189 = arith.constant 224 : index
    %c64_190 = arith.constant 64 : index
    %148 = vector.load %arg9[%c224_189, %c64_190] : memref<384x128xf32, #tpu.memory_space<vmem>>, vector<8x64xf32>
    tpu.vector_store %arg9[%c224_189, %c64_190], %147 {strides = array<i32>} : memref<384x128xf32, #tpu.memory_space<vmem>>, vector<8x64xf32>,
    %c0_191 = arith.constant 0 : index
    %c131 = arith.constant 131 : index
    %149 = vector.load %arg8[%c0_191, %c131] : memref<8x204xf32, #tpu.memory_space<vmem>>, vector<8x64xf32>
    %c232_192 = arith.constant 232 : index
    %c64_193 = arith.constant 64 : index
    %150 = vector.load %arg9[%c232_192, %c64_193] : memref<384x128xf32, #tpu.memory_space<vmem>>, vector<8x64xf32>
    tpu.vector_store %arg9[%c232_192, %c64_193], %149 {strides = array<i32>} : memref<384x128xf32, #tpu.memory_space<vmem>>, vector<8x64xf32>,
    %c0_194 = arith.constant 0 : index
    %c132 = arith.constant 132 : index
    %151 = vector.load %arg8[%c0_194, %c132] : memref<8x204xf32, #tpu.memory_space<vmem>>, vector<8x64xf32>
    %c240_195 = arith.constant 240 : index
    %c64_196 = arith.constant 64 : index
    %152 = vector.load %arg9[%c240_195, %c64_196] : memref<384x128xf32, #tpu.memory_space<vmem>>, vector<8x64xf32>
    tpu.vector_store %arg9[%c240_195, %c64_196], %151 {strides = array<i32>} : memref<384x128xf32, #tpu.memory_space<vmem>>, vector<8x64xf32>,
    %c0_197 = arith.constant 0 : index
    %c133 = arith.constant 133 : index
    %153 = vector.load %arg8[%c0_197, %c133] : memref<8x204xf32, #tpu.memory_space<vmem>>, vector<8x64xf32>
    %c248_198 = arith.constant 248 : index
    %c64_199 = arith.constant 64 : index
    %154 = vector.load %arg9[%c248_198, %c64_199] : memref<384x128xf32, #tpu.memory_space<vmem>>, vector<8x64xf32>
    tpu.vector_store %arg9[%c248_198, %c64_199], %153 {strides = array<i32>} : memref<384x128xf32, #tpu.memory_space<vmem>>, vector<8x64xf32>,
    %c0_200 = arith.constant 0 : index
    %c134 = arith.constant 134 : index
    %155 = vector.load %arg8[%c0_200, %c134] : memref<8x204xf32, #tpu.memory_space<vmem>>, vector<8x64xf32>
    %c256_201 = arith.constant 256 : index
    %c64_202 = arith.constant 64 : index
    %156 = vector.load %arg9[%c256_201, %c64_202] : memref<384x128xf32, #tpu.memory_space<vmem>>, vector<8x64xf32>
    tpu.vector_store %arg9[%c256_201, %c64_202], %155 {strides = array<i32>} : memref<384x128xf32, #tpu.memory_space<vmem>>, vector<8x64xf32>,
    %c0_203 = arith.constant 0 : index
    %c135 = arith.constant 135 : index
    %157 = vector.load %arg8[%c0_203, %c135] : memref<8x204xf32, #tpu.memory_space<vmem>>, vector<8x64xf32>
    %c264_204 = arith.constant 264 : index
    %c64_205 = arith.constant 64 : index
    %158 = vector.load %arg9[%c264_204, %c64_205] : memref<384x128xf32, #tpu.memory_space<vmem>>, vector<8x64xf32>
    tpu.vector_store %arg9[%c264_204, %c64_205], %157 {strides = array<i32>} : memref<384x128xf32, #tpu.memory_space<vmem>>, vector<8x64xf32>,
    %c0_206 = arith.constant 0 : index
    %c136_207 = arith.constant 136 : index
    %159 = vector.load %arg8[%c0_206, %c136_207] : memref<8x204xf32, #tpu.memory_space<vmem>>, vector<8x64xf32>
    %c272_208 = arith.constant 272 : index
    %c64_209 = arith.constant 64 : index
    %160 = vector.load %arg9[%c272_208, %c64_209] : memref<384x128xf32, #tpu.memory_space<vmem>>, vector<8x64xf32>
    tpu.vector_store %arg9[%c272_208, %c64_209], %159 {strides = array<i32>} : memref<384x128xf32, #tpu.memory_space<vmem>>, vector<8x64xf32>,
    %c0_210 = arith.constant 0 : index
    %c137 = arith.constant 137 : index
    %161 = vector.load %arg8[%c0_210, %c137] : memref<8x204xf32, #tpu.memory_space<vmem>>, vector<8x64xf32>
    %c280_211 = arith.constant 280 : index
    %c64_212 = arith.constant 64 : index
    %162 = vector.load %arg9[%c280_211, %c64_212] : memref<384x128xf32, #tpu.memory_space<vmem>>, vector<8x64xf32>
    tpu.vector_store %arg9[%c280_211, %c64_212], %161 {strides = array<i32>} : memref<384x128xf32, #tpu.memory_space<vmem>>, vector<8x64xf32>,
    %c0_213 = arith.constant 0 : index
    %c138 = arith.constant 138 : index
    %163 = vector.load %arg8[%c0_213, %c138] : memref<8x204xf32, #tpu.memory_space<vmem>>, vector<8x64xf32>
    %c288_214 = arith.constant 288 : index
    %c64_215 = arith.constant 64 : index
    %164 = vector.load %arg9[%c288_214, %c64_215] : memref<384x128xf32, #tpu.memory_space<vmem>>, vector<8x64xf32>
    tpu.vector_store %arg9[%c288_214, %c64_215], %163 {strides = array<i32>} : memref<384x128xf32, #tpu.memory_space<vmem>>, vector<8x64xf32>,
    %c0_216 = arith.constant 0 : index
    %c139 = arith.constant 139 : index
    %165 = vector.load %arg8[%c0_216, %c139] : memref<8x204xf32, #tpu.memory_space<vmem>>, vector<8x64xf32>
    %c296_217 = arith.constant 296 : index
    %c64_218 = arith.constant 64 : index
    %166 = vector.load %arg9[%c296_217, %c64_218] : memref<384x128xf32, #tpu.memory_space<vmem>>, vector<8x64xf32>
    tpu.vector_store %arg9[%c296_217, %c64_218], %165 {strides = array<i32>} : memref<384x128xf32, #tpu.memory_space<vmem>>, vector<8x64xf32>,
    %c0_219 = arith.constant 0 : index
    %c140 = arith.constant 140 : index
    %167 = vector.load %arg8[%c0_219, %c140] : memref<8x204xf32, #tpu.memory_space<vmem>>, vector<8x64xf32>
    %c304_220 = arith.constant 304 : index
    %c64_221 = arith.constant 64 : index
    %168 = vector.load %arg9[%c304_220, %c64_221] : memref<384x128xf32, #tpu.memory_space<vmem>>, vector<8x64xf32>
    tpu.vector_store %arg9[%c304_220, %c64_221], %167 {strides = array<i32>} : memref<384x128xf32, #tpu.memory_space<vmem>>, vector<8x64xf32>,
    %c0_222 = arith.constant 0 : index
    %c0_223 = arith.constant 0 : index
    %169 = vector.load %arg3[%c0_222, %c0_223] : memref<24x384xf32, #tpu.memory_space<vmem>>, vector<24x384xf32>
    %c0_224 = arith.constant 0 : index
    %c0_225 = arith.constant 0 : index
    %170 = vector.load %arg9[%c0_224, %c0_225] : memref<384x128xf32, #tpu.memory_space<vmem>>, vector<384x128xf32>
    %cst_226 = arith.constant dense<0.000000e+00> : vector<24x128xf32>
    %171 = tpu.matmul %169, %170, %cst_226 {dimension_numbers = #tpu.dot_dimension_numbers<[1], [0], [0], [1], [0, 0, 1, 1], [], []>} : vector<24x384xf32>, vector<384x128xf32>, vector<24x128xf32> -> vector<24x128xf32>
    %172 = vector.extract_strided_slice %6 {offsets = [0, 0], sizes = [32, 64], strides = [1, 1]} : vector<32x128xf32> to vector<32x64xf32>
    %c0_227 = arith.constant 0 : index
    %c1_228 = arith.constant 1 : index
    %173 = vector.load %arg10[%c0_227, %c1_228] : memref<32x66xf32, #tpu.memory_space<vmem>>, vector<32x64xf32>
    tpu.vector_store %arg10[%c0_227, %c1_228], %172 {strides = array<i32>} : memref<32x66xf32, #tpu.memory_space<vmem>>, vector<32x64xf32>,
    %c0_229 = arith.constant 0 : index
    %c0_230 = arith.constant 0 : index
    %174 = vector.load %arg10[%c0_229, %c0_230] : memref<32x66xf32, #tpu.memory_space<vmem>>, vector<32x64xf32>
    %c0_231 = arith.constant 0 : index
    %c1_232 = arith.constant 1 : index
    %175 = vector.load %arg10[%c0_231, %c1_232] : memref<32x66xf32, #tpu.memory_space<vmem>>, vector<32x64xf32>
    %176 = arith.maximumf %174, %175 : vector<32x64xf32>
    %c0_233 = arith.constant 0 : index
    %c2_234 = arith.constant 2 : index
    %177 = vector.load %arg10[%c0_233, %c2_234] : memref<32x66xf32, #tpu.memory_space<vmem>>, vector<32x64xf32>
    %178 = arith.maximumf %176, %177 : vector<32x64xf32>
    %c0_235 = arith.constant 0 : index
    %c0_236 = arith.constant 0 : index
    %179 = vector.load %arg11[%c0_235, %c0_236] : memref<32x128xf32, #tpu.memory_space<vmem>>, vector<32x64xf32>
    tpu.vector_store %arg11[%c0_235, %c0_236], %178 {strides = array<i32>} : memref<32x128xf32, #tpu.memory_space<vmem>>, vector<32x64xf32>,
    %180 = vector.extract_strided_slice %6 {offsets = [0, 64], sizes = [32, 64], strides = [1, 1]} : vector<32x128xf32> to vector<32x64xf32>
    %c0_237 = arith.constant 0 : index
    %c1_238 = arith.constant 1 : index
    %181 = vector.load %arg10[%c0_237, %c1_238] : memref<32x66xf32, #tpu.memory_space<vmem>>, vector<32x64xf32>
    tpu.vector_store %arg10[%c0_237, %c1_238], %180 {strides = array<i32>} : memref<32x66xf32, #tpu.memory_space<vmem>>, vector<32x64xf32>,
    %c0_239 = arith.constant 0 : index
    %c0_240 = arith.constant 0 : index
    %182 = vector.load %arg10[%c0_239, %c0_240] : memref<32x66xf32, #tpu.memory_space<vmem>>, vector<32x64xf32>
    %c0_241 = arith.constant 0 : index
    %c1_242 = arith.constant 1 : index
    %183 = vector.load %arg10[%c0_241, %c1_242] : memref<32x66xf32, #tpu.memory_space<vmem>>, vector<32x64xf32>
    %184 = arith.maximumf %182, %183 : vector<32x64xf32>
    %c0_243 = arith.constant 0 : index
    %c2_244 = arith.constant 2 : index
    %185 = vector.load %arg10[%c0_243, %c2_244] : memref<32x66xf32, #tpu.memory_space<vmem>>, vector<32x64xf32>
    %186 = arith.maximumf %184, %185 : vector<32x64xf32>
    %c0_245 = arith.constant 0 : index
    %c64_246 = arith.constant 64 : index
    %187 = vector.load %arg11[%c0_245, %c64_246] : memref<32x128xf32, #tpu.memory_space<vmem>>, vector<32x64xf32>
    tpu.vector_store %arg11[%c0_245, %c64_246], %186 {strides = array<i32>} : memref<32x128xf32, #tpu.memory_space<vmem>>, vector<32x64xf32>,
    %c0_247 = arith.constant 0 : index
    %c0_248 = arith.constant 0 : index
    %188 = vector.load %arg4[%c0_247, %c0_248] : memref<8x32xf32, #tpu.memory_space<vmem>>, vector<8x32xf32>
    %c0_249 = arith.constant 0 : index
    %c0_250 = arith.constant 0 : index
    %189 = vector.load %arg11[%c0_249, %c0_250] : memref<32x128xf32, #tpu.memory_space<vmem>>, vector<32x128xf32>
    %cst_251 = arith.constant dense<0.000000e+00> : vector<8x128xf32>
    %190 = tpu.matmul %188, %189, %cst_251 {dimension_numbers = #tpu.dot_dimension_numbers<[1], [0], [0], [1], [0, 0, 1, 1], [], []>} : vector<8x32xf32>, vector<32x128xf32>, vector<8x128xf32> -> vector<8x128xf32>
    %c0_252 = arith.constant 0 : index
    %c0_253 = arith.constant 0 : index
    %191 = vector.load %arg5[%c0_252, %c0_253] : memref<32x1xf32, #tpu.memory_space<vmem>>, vector<32x1xf32>
    %c0_254 = arith.constant 0 : index
    %c0_255 = arith.constant 0 : index
    %192 = vector.load %arg6[%c0_254, %c0_255] : memref<32x1xf32, #tpu.memory_space<vmem>>, vector<32x1xf32>
    %193 = vector.extract_strided_slice %191 {offsets = [0, 0], sizes = [24, 1], strides = [1, 1]} : vector<32x1xf32> to vector<24x1xf32>
    %194 = vector.extract_strided_slice %192 {offsets = [0, 0], sizes = [24, 1], strides = [1, 1]} : vector<32x1xf32> to vector<24x1xf32>
    %cst_256 = arith.constant dense<0.000000e+00> : vector<24xf32>
    %195 = vector.multi_reduction <add>, %171, %cst_256 [1] : vector<24x128xf32> to vector<24xf32>
    %196 = vector.shape_cast %195 : vector<24xf32> to vector<24x1xf32>
    %cst_257 = arith.constant 1.280000e+02 : f32
    %197 = vector.broadcast %cst_257 : f32 to vector<24x1xf32>
    %198 = arith.divf %196, %197 : vector<24x1xf32>
    %199 = vector.broadcast %198 : vector<24x1xf32> to vector<24x128xf32>
    %200 = arith.subf %171, %199 : vector<24x128xf32>
    %201 = arith.mulf %200, %200 : vector<24x128xf32>
    %cst_258 = arith.constant dense<0.000000e+00> : vector<24xf32>
    %202 = vector.multi_reduction <add>, %201, %cst_258 [1] : vector<24x128xf32> to vector<24xf32>
    %203 = vector.shape_cast %202 : vector<24xf32> to vector<24x1xf32>
    %cst_259 = arith.constant 1.280000e+02 : f32
    %204 = vector.broadcast %cst_259 : f32 to vector<24x1xf32>
    %205 = arith.divf %203, %204 : vector<24x1xf32>
    %206 = vector.broadcast %198 : vector<24x1xf32> to vector<24x128xf32>
    %207 = arith.subf %171, %206 : vector<24x128xf32>
    %cst_260 = arith.constant 9.99999974E-6 : f32
    %208 = vector.broadcast %cst_260 : f32 to vector<24x1xf32>
    %209 = arith.addf %205, %208 : vector<24x1xf32>
    %210 = math.rsqrt %209 : vector<24x1xf32>
    %211 = vector.broadcast %210 : vector<24x1xf32> to vector<24x128xf32>
    %212 = arith.mulf %207, %211 : vector<24x128xf32>
    %213 = vector.broadcast %193 : vector<24x1xf32> to vector<24x128xf32>
    %214 = arith.mulf %212, %213 : vector<24x128xf32>
    %215 = vector.broadcast %194 : vector<24x1xf32> to vector<24x128xf32>
    %216 = arith.addf %214, %215 : vector<24x128xf32>
    %cst_261 = arith.constant 0.000000e+00 : f32
    %217 = vector.broadcast %cst_261 : f32 to vector<24x128xf32>
    %218 = arith.maximumf %216, %217 : vector<24x128xf32>
    %c0_262 = arith.constant 0 : index
    %c0_263 = arith.constant 0 : index
    %219 = vector.load %arg7[%c0_262, %c0_263] : memref<32x128xf32, #tpu.memory_space<vmem>>, vector<24x128xf32>
    tpu.vector_store %arg7[%c0_262, %c0_263], %218 {strides = array<i32>} : memref<32x128xf32, #tpu.memory_space<vmem>>, vector<24x128xf32>,
    %220 = vector.extract_strided_slice %191 {offsets = [24, 0], sizes = [8, 1], strides = [1, 1]} : vector<32x1xf32> to vector<8x1xf32>
    %221 = vector.extract_strided_slice %192 {offsets = [24, 0], sizes = [8, 1], strides = [1, 1]} : vector<32x1xf32> to vector<8x1xf32>
    %cst_264 = arith.constant dense<0.000000e+00> : vector<8xf32>
    %222 = vector.multi_reduction <add>, %190, %cst_264 [1] : vector<8x128xf32> to vector<8xf32>
    %223 = vector.shape_cast %222 : vector<8xf32> to vector<8x1xf32>
    %cst_265 = arith.constant 1.280000e+02 : f32
    %224 = vector.broadcast %cst_265 : f32 to vector<8x1xf32>
    %225 = arith.divf %223, %224 : vector<8x1xf32>
    %226 = vector.broadcast %225 : vector<8x1xf32> to vector<8x128xf32>
    %227 = arith.subf %190, %226 : vector<8x128xf32>
    %228 = arith.mulf %227, %227 : vector<8x128xf32>
    %cst_266 = arith.constant dense<0.000000e+00> : vector<8xf32>
    %229 = vector.multi_reduction <add>, %228, %cst_266 [1] : vector<8x128xf32> to vector<8xf32>
    %230 = vector.shape_cast %229 : vector<8xf32> to vector<8x1xf32>
    %cst_267 = arith.constant 1.280000e+02 : f32
    %231 = vector.broadcast %cst_267 : f32 to vector<8x1xf32>
    %232 = arith.divf %230, %231 : vector<8x1xf32>
    %233 = vector.broadcast %225 : vector<8x1xf32> to vector<8x128xf32>
    %234 = arith.subf %190, %233 : vector<8x128xf32>
    %cst_268 = arith.constant 9.99999974E-6 : f32
    %235 = vector.broadcast %cst_268 : f32 to vector<8x1xf32>
    %236 = arith.addf %232, %235 : vector<8x1xf32>
    %237 = math.rsqrt %236 : vector<8x1xf32>
    %238 = vector.broadcast %237 : vector<8x1xf32> to vector<8x128xf32>
    %239 = arith.mulf %234, %238 : vector<8x128xf32>
    %240 = vector.broadcast %220 : vector<8x1xf32> to vector<8x128xf32>
    %241 = arith.mulf %239, %240 : vector<8x128xf32>
    %242 = vector.broadcast %221 : vector<8x1xf32> to vector<8x128xf32>
    %243 = arith.addf %241, %242 : vector<8x128xf32>
    %cst_269 = arith.constant 0.000000e+00 : f32
    %244 = vector.broadcast %cst_269 : f32 to vector<8x128xf32>
    %245 = arith.maximumf %243, %244 : vector<8x128xf32>
    %c24_270 = arith.constant 24 : index
    %c0_271 = arith.constant 0 : index
    %246 = vector.load %arg7[%c24_270, %c0_271] : memref<32x128xf32, #tpu.memory_space<vmem>>, vector<8x128xf32>
    tpu.vector_store %arg7[%c24_270, %c0_271], %245 {strides = array<i32>} : memref<32x128xf32, #tpu.memory_space<vmem>>, vector<8x128xf32>,
    return
  }
  func.func @transform_0(%arg0: i32) -> (i32, i32) {
    %c0_i32 = arith.constant 0 : i32
    %c0_i32_0 = arith.constant 0 : i32
    %c0_i32_1 = arith.constant 0 : i32
    return %c0_i32, %c0_i32_0 : i32, i32
  }
  func.func @transform_1(%arg0: i32) -> (i32, i32) {
    %c0_i32 = arith.constant 0 : i32
    %c0_i32_0 = arith.constant 0 : i32
    %c0_i32_1 = arith.constant 0 : i32
    return %c0_i32, %c0_i32_0 : i32, i32
  }
  func.func @transform_2(%arg0: i32) -> (i32, i32) {
    %c0_i32 = arith.constant 0 : i32
    %c0_i32_0 = arith.constant 0 : i32
    %c0_i32_1 = arith.constant 0 : i32
    return %c0_i32, %c0_i32_0 : i32, i32
  }
  func.func @transform_3(%arg0: i32) -> (i32, i32) {
    %c0_i32 = arith.constant 0 : i32
    %c0_i32_0 = arith.constant 0 : i32
    %c0_i32_1 = arith.constant 0 : i32
    return %c0_i32, %c0_i32_0 : i32, i32
  }
  func.func @transform_4(%arg0: i32) -> (i32, i32) {
    %c0_i32 = arith.constant 0 : i32
    %c0_i32_0 = arith.constant 0 : i32
    %c0_i32_1 = arith.constant 0 : i32
    return %c0_i32, %c0_i32_0 : i32, i32
  }
  func.func @transform_5(%arg0: i32) -> (i32, i32) {
    %c0_i32 = arith.constant 0 : i32
    %c0_i32_0 = arith.constant 0 : i32
    %c0_i32_1 = arith.constant 0 : i32
    return %c0_i32, %c0_i32_0 : i32, i32
  }
  func.func @transform_6(%arg0: i32) -> (i32, i32) {
    %c0_i32 = arith.constant 0 : i32
    %c0_i32_0 = arith.constant 0 : i32
    %c0_i32_1 = arith.constant 0 : i32
    return %c0_i32, %c0_i32_0 : i32, i32
  }
}

</mosaic_0001>

<llo_original>
// kernel: inception_block_forward.7
$region0: #{inception_block_forward.7}
  #allocation0 [shape = 'u32[]', space=smem, size = 0x4, offset = 0x4, fixed_abs, tag = 'smem constant byte address 0x4 - core index']
  #allocation1 [shape = 'u32[144,128]{1,0:T(1,128)}', space=vmem, size = 0x12000, scoped, tag = 'internal scratch']
  %s0 = inlined_call_operand.vmem [shape: f32[4,128], index: 0, kind: input, shape index: {}]
  %s1 = inlined_call_operand.vmem [shape: f32[32,128], index: 1, kind: input, shape index: {}]
  %s2 = inlined_call_operand.vmem [shape: f32[32,4], index: 2, kind: input, shape index: {}]
  %s3 = inlined_call_operand.vmem [shape: f32[32,1], index: 3, kind: input, shape index: {}]
  %s4 = inlined_call_operand.vmem [shape: f32[32,1], index: 4, kind: input, shape index: {}]
  %s5 = inlined_call_operand.vmem [shape: f32[32,1], index: 5, kind: input, shape index: {}]
  %s6 = inlined_call_operand.vmem [shape: f32[32,128], index: 6, kind: output, shape index: {}]
  %s7 = sld [smem:[#allocation0]]
  $region34: #{inception_block_forward.7} parent=0
    _
  %s9 = ssub.s32 1, %s7
  %s10 = scalar_select 0, %s9, %s7
  // Predicated region
  $region2: #{inception_block_forward.7} parent=0 // pred_check
    _
  $region3: #{inception_block_forward.7} parent=0 // pred_check_branch
    %12 = sbr.rel (0) target = $region5
  $region4: #{inception_block_forward.7} parent=0 // pred_region
    _
  $region5: #{inception_block_forward.7} parent=0 // pred_fallthru
    _
  // Predicated region
  $region6: #{inception_block_forward.7} parent=0 // pred_check
    _
  $region7: #{inception_block_forward.7} parent=0 // pred_check_branch
    %14 = sbr.rel (0) target = $region9
  $region8: #{inception_block_forward.7} parent=0 // pred_region
    _
  $region9: #{inception_block_forward.7} parent=0 // pred_fallthru
    _
  // Predicated region
  $region10: #{inception_block_forward.7} parent=0 // pred_check
    _
  $region11: #{inception_block_forward.7} parent=0 // pred_check_branch
    %16 = sbr.rel (0) target = $region13
  $region12: #{inception_block_forward.7} parent=0 // pred_region
    _
  $region13: #{inception_block_forward.7} parent=0 // pred_fallthru
    _
  // Predicated region
  $region14: #{inception_block_forward.7} parent=0 // pred_check
    _
  $region15: #{inception_block_forward.7} parent=0 // pred_check_branch
    %18 = sbr.rel (0) target = $region17
  $region16: #{inception_block_forward.7} parent=0 // pred_region
    _
  $region17: #{inception_block_forward.7} parent=0 // pred_fallthru
    _
  // Predicated region
  $region18: #{inception_block_forward.7} parent=0 // pred_check
    _
  $region19: #{inception_block_forward.7} parent=0 // pred_check_branch
    %20 = sbr.rel (0) target = $region21
  $region20: #{inception_block_forward.7} parent=0 // pred_region
    _
  $region21: #{inception_block_forward.7} parent=0 // pred_fallthru
    _
  // Predicated region
  $region22: #{inception_block_forward.7} parent=0 // pred_check
    _
  $region23: #{inception_block_forward.7} parent=0 // pred_check_branch
    %22 = sbr.rel (0) target = $region25
  $region24: #{inception_block_forward.7} parent=0 // pred_region
    _
  $region25: #{inception_block_forward.7} parent=0 // pred_fallthru
    _
  %v23 = vld [vmem:[%s2] sm:$0xff]
  %v24 = vld [vmem:[%s2 + $0x8] sm:$0xff]
  %v25 = vld [vmem:[%s2 + $0x10] sm:$0xff]
  %v26 = vld [vmem:[%s2 + $0x18] sm:$0xff]
  %v27 = vld [vmem:[%s0] sm:$0xf]
  %v28 = vld [vmem:[%s3] sm:$0xff]
  %v29 = vld [vmem:[%s3 + $0x8] sm:$0xff]
  %v30 = vld [vmem:[%s3 + $0x10] sm:$0xff]
  %v31 = vld [vmem:[%s3 + $0x18] sm:$0xff]
  %33 = vset.pattern.permute.xlu0 0
  %34 = vperm.xlu0 %33, %v28
  %v35 = vpop.permute.xlu0 %34
  %38 = vset.pattern.permute.xlu0 0
  %39 = vperm.xlu0 %38, %v29
  %v40 = vpop.permute.xlu0 %39
  %43 = vset.pattern.permute.xlu0 0
  %44 = vperm.xlu0 %43, %v30
  %v45 = vpop.permute.xlu0 %44
  %48 = vset.pattern.permute.xlu0 0
  %49 = vperm.xlu0 %48, %v31
  %v50 = vpop.permute.xlu0 %49
  %vm52 = vcmask 31744
  %v54 = vsel %vm52, %v23, 0
  %v57 = vsel %vm52, %v24, 0
  %v60 = vsel %vm52, %v25, 0
  %v63 = vsel %vm52, %v26, 0
  %vm65 = vcmask 1043456
  %v67 = vsel %vm65, %v27, 0
  %69 = vmatprep.subr.mxu0 0.0
  %70 = vmatpush1.msra.mxu0 %v67
  %71 = vmatprep.subr.mxu0 0.0
  %72 = vmatpush1.msra.mxu0 0.0
  %73 = vmatprep.subr.mxu0 0.0
  %74 = vmatpush1.msra.mxu0 0.0
  %75 = vmatprep.subr.mxu0 0.0
  %76 = vmatpush1.msra.mxu0 0.0
  %77 = vmatprep.subr.mxu0 0.0
  %78 = vmatpush1.msra.mxu0 0.0
  %79 = vmatprep.subr.mxu0 0.0
  %80 = vmatpush1.msra.mxu0 0.0
  %81 = vmatprep.subr.mxu0 0.0
  %82 = vmatpush1.msra.mxu0 0.0
  %83 = vmatprep.subr.mxu0 0.0
  %84 = vmatpush1.msra.mxu0 0.0
  %85 = vmatprep.subr.mxu0 0.0
  %86 = vmatpush1.msra.mxu0 0.0
  %87 = vmatprep.subr.mxu0 0.0
  %88 = vmatpush1.msra.mxu0 0.0
  %89 = vmatprep.subr.mxu0 0.0
  %90 = vmatpush1.msra.mxu0 0.0
  %91 = vmatprep.subr.mxu0 0.0
  %92 = vmatpush1.msra.mxu0 0.0
  %93 = vmatprep.subr.mxu0 0.0
  %94 = vmatpush1.msra.mxu0 0.0
  %95 = vmatprep.subr.mxu0 0.0
  %96 = vmatpush1.msra.mxu0 0.0
  %97 = vmatprep.subr.mxu0 0.0
  %98 = vmatpush1.msra.mxu0 0.0
  %99 = vmatprep.subr.mxu0 0.0
  %100 = vmatpush1.msra.mxu0 0.0
  %101 = vmatprep.subr.mxu0 0.0
  %102 = vmatpush1.msra.mxu0 0.0
  %103 = vmatprep.subr.mxu0 0.0
  %104 = vmatpush1.msra.mxu0 0.0
  %105 = vmatprep.subr.mxu0 0.0
  %106 = vmatpush1.msra.mxu0 0.0
  %107 = vmatprep.subr.mxu0 0.0
  %108 = vmatpush1.msra.mxu0 0.0
  %109 = vmatprep.subr.mxu0 0.0
  %110 = vmatpush1.msra.mxu0 0.0
  %111 = vmatprep.subr.mxu0 0.0
  %112 = vmatpush1.msra.mxu0 0.0
  %113 = vmatprep.subr.mxu0 0.0
  %114 = vmatpush1.msra.mxu0 0.0
  %115 = vmatprep.subr.mxu0 0.0
  %116 = vmatpush1.msra.mxu0 0.0
  %117 = vmatprep.subr.mxu0 0.0
  %118 = vmatpush1.msra.mxu0 0.0
  %119 = vmatprep.subr.mxu0 0.0
  %120 = vmatpush1.msra.mxu0 0.0
  %121 = vmatprep.subr.mxu0 0.0
  %122 = vmatpush1.msra.mxu0 0.0
  %123 = vmatprep.subr.mxu0 0.0
  %124 = vmatpush1.msra.mxu0 0.0
  %125 = vmatprep.subr.mxu0 0.0
  %126 = vmatpush1.msra.mxu0 0.0
  %127 = vmatprep.subr.mxu0 0.0
  %128 = vmatpush1.msra.mxu0 0.0
  %129 = vmatprep.subr.mxu0 0.0
  %130 = vmatpush1.msra.mxu0 0.0
  %131 = vmatprep.subr.mxu0 0.0
  %132 = vmatpush1.msra.mxu0 0.0
  %133 = vmatprep.mubr.f32.mxu0 0.0
  %134 = vmatmul.mubr.f32.gmra.mrb[0].mxu0 %v54
  %v135 = vpop.f32.mrb[0].mxu0
  %v136 = vadd.f32 %v35, %v135
  %v137 = vpop.f32.mrb[0].mxu0
  %138 = vmatprep.mubr.f32.mxu0 0.0
  %139 = vmatmul.mubr.f32.gmra.mrb[0].mxu0 %v57
  %v140 = vpop.f32.mrb[0].mxu0
  %v141 = vadd.f32 %v40, %v140
  %v142 = vpop.f32.mrb[0].mxu0
  %143 = vmatprep.mubr.f32.mxu0 0.0
  %144 = vmatmul.mubr.f32.gmra.mrb[0].mxu0 %v60
  %v145 = vpop.f32.mrb[0].mxu0
  %v146 = vadd.f32 %v45, %v145
  %v147 = vpop.f32.mrb[0].mxu0
  %148 = vmatprep.mubr.f32.mxu0 0.0
  %149 = vmatmul.mubr.f32.gmra.mrb[0].mxu0 %v63
  %v150 = vpop.f32.mrb[0].mxu0
  %v151 = vadd.f32 %v50, %v150
  %v152 = vpop.f32.mrb[0].mxu0
  %153 = vdwg.mxu0
  %154 = vadd.xlane.f32.xlu0 %v136
  %v155 = vpop.xlane.xlu0 %154
  %156 = vadd.xlane.f32.xlu0 %v141
  %v157 = vpop.xlane.xlu0 %156
  %158 = vadd.xlane.f32.xlu0 %v146
  %v159 = vpop.xlane.xlu0 %158
  %160 = vadd.xlane.f32.xlu0 %v151
  %v161 = vpop.xlane.xlu0 %160
  %v162 = vrcp.pop 128.0
  %v163 = vmul.f32 %v155, %v162
  %v164 = vmul.f32 %v157, %v162
  %v165 = vmul.f32 %v159, %v162
  %v166 = vmul.f32 %v161, %v162
  %v167 = vsub.f32 %v136, %v163
  %v168 = vsub.f32 %v141, %v164
  %v169 = vsub.f32 %v146, %v165
  %v170 = vsub.f32 %v151, %v166
  %v171 = vmul.f32 %v167, %v167
  %v172 = vmul.f32 %v168, %v168
  %v173 = vmul.f32 %v169, %v169
  %v174 = vmul.f32 %v170, %v170
  %175 = vadd.xlane.f32.xlu0 %v171
  %v176 = vpop.xlane.xlu0 %175
  %177 = vadd.xlane.f32.xlu0 %v172
  %v178 = vpop.xlane.xlu0 %177
  %179 = vadd.xlane.f32.xlu0 %v173
  %v180 = vpop.xlane.xlu0 %179
  %181 = vadd.xlane.f32.xlu0 %v174
  %v182 = vpop.xlane.xlu0 %181
  %v183 = vmul.f32 %v176, %v162
  %v184 = vmul.f32 %v178, %v162
  %v185 = vmul.f32 %v180, %v162
  %v186 = vmul.f32 %v182, %v162
  %v187 = vadd.f32 %v183, 1e-05
  %v188 = vadd.f32 %v184, 1e-05
  %v189 = vadd.f32 %v185, 1e-05
  %v190 = vadd.f32 %v186, 1e-05
  %v191 = vrsqrt.pop %v187
  %v192 = vrsqrt.pop %v188
  %v193 = vrsqrt.pop %v189
  %v194 = vrsqrt.pop %v190
  %v195 = vmul.f32 %v167, %v191
  %v196 = vmul.f32 %v168, %v192
  %v197 = vmul.f32 %v169, %v193
  %v198 = vmul.f32 %v170, %v194
  %v199 = vld [vmem:[%s4] sm:$0xff]
  %v200 = vld [vmem:[%s4 + $0x8] sm:$0xff]
  %v201 = vld [vmem:[%s4 + $0x10] sm:$0xff]
  %v202 = vld [vmem:[%s4 + $0x18] sm:$0xff]
  %204 = vset.pattern.permute.xlu0 0
  %205 = vperm.xlu0 %204, %v199
  %v206 = vpop.permute.xlu0 %205
  %209 = vset.pattern.permute.xlu0 0
  %210 = vperm.xlu0 %209, %v200
  %v211 = vpop.permute.xlu0 %210
  %214 = vset.pattern.permute.xlu0 0
  %215 = vperm.xlu0 %214, %v201
  %v216 = vpop.permute.xlu0 %215
  %219 = vset.pattern.permute.xlu0 0
  %220 = vperm.xlu0 %219, %v202
  %v221 = vpop.permute.xlu0 %220
  %v223 = vmul.f32 %v195, %v206
  %v224 = vmul.f32 %v196, %v211
  %v225 = vmul.f32 %v197, %v216
  %v226 = vmul.f32 %v198, %v221
  %v227 = vld [vmem:[%s5] sm:$0xff]
  %v228 = vld [vmem:[%s5 + $0x8] sm:$0xff]
  %v229 = vld [vmem:[%s5 + $0x10] sm:$0xff]
  %v230 = vld [vmem:[%s5 + $0x18] sm:$0xff]
  %232 = vset.pattern.permute.xlu0 0
  %233 = vperm.xlu0 %232, %v227
  %v234 = vpop.permute.xlu0 %233
  %237 = vset.pattern.permute.xlu0 0
  %238 = vperm.xlu0 %237, %v228
  %v239 = vpop.permute.xlu0 %238
  %242 = vset.pattern.permute.xlu0 0
  %243 = vperm.xlu0 %242, %v229
  %v244 = vpop.permute.xlu0 %243
  %247 = vset.pattern.permute.xlu0 0
  %248 = vperm.xlu0 %247, %v230
  %v249 = vpop.permute.xlu0 %248
  %v251 = vadd.f32 %v223, %v234
  %v252 = vadd.f32 %v224, %v239
  %v253 = vadd.f32 %v225, %v244
  %v254 = vadd.f32 %v226, %v249
  %v255 = vld [vmem:[%s1] sm:$0xff]
  %v256 = vld [vmem:[%s1 + $0x8] sm:$0xff]
  %v257 = vld [vmem:[%s1 + $0x10] sm:$0xff]
  %v258 = vld [vmem:[%s1 + $0x18] sm:$0xff]
  %v259 = vadd.f32 %v255, %v251
  %v260 = vadd.f32 %v256, %v252
  %v261 = vadd.f32 %v257, %v253
  %v262 = vadd.f32 %v258, %v254
  %v263 = vmax.f32 %v259, 0.0
  %v264 = vmax.f32 %v260, 0.0
  %v265 = vmax.f32 %v261, 0.0
  %v266 = vmax.f32 %v262, 0.0
  %267 = vst [vmem:[%s6] sm:$0xff] %v263
  %268 = vst [vmem:[%s6 + $0x8] sm:$0xff] %v264
  %269 = vst [vmem:[%s6 + $0x10] sm:$0xff] %v265
  %270 = vst [vmem:[%s6 + $0x18] sm:$0xff] %v266
  // Predicated region
  $region26: #{inception_block_forward.7} parent=0 // pred_check
    _
  $region27: #{inception_block_forward.7} parent=0 // pred_check_branch
    %272 = sbr.rel (0) target = $region29
  $region28: #{inception_block_forward.7} parent=0 // pred_region
    _
  $region29: #{inception_block_forward.7} parent=0 // pred_fallthru
    _
  // Predicated region
  $region30: #{inception_block_forward.7} parent=0 // pred_check
    _
  $region31: #{inception_block_forward.7} parent=0 // pred_check_branch
    %274 = sbr.rel (0) target = $region33
  $region32: #{inception_block_forward.7} parent=0 // pred_region
    _
  $region33: #{inception_block_forward.7} parent=0 // pred_fallthru
    _

// kernel: inception_block_forward.4
$region0: #{inception_block_forward.4}
  #allocation0 [shape = 'u32[]', space=smem, size = 0x4, offset = 0x4, fixed_abs, tag = 'smem constant byte address 0x4 - core index']
  #allocation1 [shape = 'u32[144,128]{1,0:T(1,128)}', space=vmem, size = 0x12000, scoped, tag = 'internal scratch']
  #allocation2 [shape = 'f32[8,204]{1,0:T(8,128)}', space=vmem, size = 0x2000, scoped, tag = 'scratch operand']
  #allocation3 [shape = 'f32[384,128]{1,0:T(8,128)}', space=vmem, size = 0x30000, scoped, tag = 'scratch operand']
  #allocation4 [shape = 'f32[4,66]{1,0:T(4,128)}', space=vmem, size = 0x800, scoped, tag = 'scratch operand']
  #allocation5 [shape = 'f32[4,128]{1,0:T(4,128)}', space=vmem, size = 0x800, scoped, tag = 'scratch operand']
  %s0 = inlined_call_operand.vmem [shape: f32[4,128], index: 0, kind: input, shape index: {}]
  %s1 = inlined_call_operand.vmem [shape: f32[8,4], index: 1, kind: input, shape index: {}]
  %s2 = inlined_call_operand.vmem [shape: f32[24,384], index: 2, kind: input, shape index: {}]
  %s3 = inlined_call_operand.vmem [shape: f32[8,4], index: 3, kind: input, shape index: {}]
  %s4 = inlined_call_operand.vmem [shape: f32[32,1], index: 4, kind: input, shape index: {}]
  %s5 = inlined_call_operand.vmem [shape: f32[32,1], index: 5, kind: input, shape index: {}]
  %s6 = inlined_call_operand.vmem [shape: f32[32,128], index: 6, kind: output, shape index: {}]
  %s7 = sld [smem:[#allocation0]]
  $region34: #{inception_block_forward.4} parent=0
    _
  %s9 = ssub.s32 1, %s7
  %s10 = scalar_select 0, %s9, %s7
  // Predicated region
  $region2: #{inception_block_forward.4} parent=0 // pred_check
    _
  $region3: #{inception_block_forward.4} parent=0 // pred_check_branch
    %12 = sbr.rel (0) target = $region5
  $region4: #{inception_block_forward.4} parent=0 // pred_region
    _
  $region5: #{inception_block_forward.4} parent=0 // pred_fallthru
    _
  // Predicated region
  $region6: #{inception_block_forward.4} parent=0 // pred_check
    _
  $region7: #{inception_block_forward.4} parent=0 // pred_check_branch
    %14 = sbr.rel (0) target = $region9
  $region8: #{inception_block_forward.4} parent=0 // pred_region
    _
  $region9: #{inception_block_forward.4} parent=0 // pred_fallthru
    _
  // Predicated region
  $region10: #{inception_block_forward.4} parent=0 // pred_check
    _
  $region11: #{inception_block_forward.4} parent=0 // pred_check_branch
    %16 = sbr.rel (0) target = $region13
  $region12: #{inception_block_forward.4} parent=0 // pred_region
    _
  $region13: #{inception_block_forward.4} parent=0 // pred_fallthru
    _
  // Predicated region
  $region14: #{inception_block_forward.4} parent=0 // pred_check
    _
  $region15: #{inception_block_forward.4} parent=0 // pred_check_branch
    %18 = sbr.rel (0) target = $region17
  $region16: #{inception_block_forward.4} parent=0 // pred_region
    _
  $region17: #{inception_block_forward.4} parent=0 // pred_fallthru
    _
  // Predicated region
  $region18: #{inception_block_forward.4} parent=0 // pred_check
    _
  $region19: #{inception_block_forward.4} parent=0 // pred_check_branch
    %20 = sbr.rel (0) target = $region21
  $region20: #{inception_block_forward.4} parent=0 // pred_region
    _
  $region21: #{inception_block_forward.4} parent=0 // pred_fallthru
    _
  // Predicated region
  $region22: #{inception_block_forward.4} parent=0 // pred_check
    _
  $region23: #{inception_block_forward.4} parent=0 // pred_check_branch
    %22 = sbr.rel (0) target = $region25
  $region24: #{inception_block_forward.4} parent=0 // pred_region
    _
  $region25: #{inception_block_forward.4} parent=0 // pred_fallthru
    _
  %23 = vst [vmem:[#allocation2] sm:$0xff] 0.0
  %vm24 = vcmask 621568
  %25 = vst.msk [vmem:[#allocation2 + $0x8] sm:$0xff] %vm24, 0.0
  %26 = vst [vmem:[#allocation3] sm:$0xff] 0.0
  %27 = vst [vmem:[#allocation3 + $0x8] sm:$0xff] 0.0
  %28 = vst [vmem:[#allocation3 + $0x10] sm:$0xff] 0.0
  %29 = vst [vmem:[#allocation3 + $0x18] sm:$0xff] 0.0
  %30 = vst [vmem:[#allocation3 + $0x20] sm:$0xff] 0.0
  %31 = vst [vmem:[#allocation3 + $0x28] sm:$0xff] 0.0
  %32 = vst [vmem:[#allocation3 + $0x30] sm:$0xff] 0.0
  %33 = vst [vmem:[#allocation3 + $0x38] sm:$0xff] 0.0
  %34 = vst [vmem:[#allocation3 + $0x40] sm:$0xff] 0.0
  %35 = vst [vmem:[#allocation3 + $0x48] sm:$0xff] 0.0
  %36 = vst [vmem:[#allocation3 + $0x50] sm:$0xff] 0.0
  %37 = vst [vmem:[#allocation3 + $0x58] sm:$0xff] 0.0
  %38 = vst [vmem:[#allocation3 + $0x60] sm:$0xff] 0.0
  %39 = vst [vmem:[#allocation3 + $0x68] sm:$0xff] 0.0
  %40 = vst [vmem:[#allocation3 + $0x70] sm:$0xff] 0.0
  %41 = vst [vmem:[#allocation3 + $0x78] sm:$0xff] 0.0
  %42 = vst [vmem:[#allocation3 + $0x80] sm:$0xff] 0.0
  %43 = vst [vmem:[#allocation3 + $0x88] sm:$0xff] 0.0
  %44 = vst [vmem:[#allocation3 + $0x90] sm:$0xff] 0.0
  %45 = vst [vmem:[#allocation3 + $0x98] sm:$0xff] 0.0
  %46 = vst [vmem:[#allocation3 + $0xa0] sm:$0xff] 0.0
  %47 = vst [vmem:[#allocation3 + $0xa8] sm:$0xff] 0.0
  %48 = vst [vmem:[#allocation3 + $0xb0] sm:$0xff] 0.0
  %49 = vst [vmem:[#allocation3 + $0xb8] sm:$0xff] 0.0
  %50 = vst [vmem:[#allocation3 + $0xc0] sm:$0xff] 0.0
  %51 = vst [vmem:[#allocation3 + $0xc8] sm:$0xff] 0.0
  %52 = vst [vmem:[#allocation3 + $0xd0] sm:$0xff] 0.0
  %53 = vst [vmem:[#allocation3 + $0xd8] sm:$0xff] 0.0
  %54 = vst [vmem:[#allocation3 + $0xe0] sm:$0xff] 0.0
  %55 = vst [vmem:[#allocation3 + $0xe8] sm:$0xff] 0.0
  %56 = vst [vmem:[#allocation3 + $0xf0] sm:$0xff] 0.0
  %57 = vst [vmem:[#allocation3 + $0xf8] sm:$0xff] 0.0
  %58 = vst [vmem:[#allocation3 + $0x100] sm:$0xff] 0.0
  %59 = vst [vmem:[#allocation3 + $0x108] sm:$0xff] 0.0
  %60 = vst [vmem:[#allocation3 + $0x110] sm:$0xff] 0.0
  %61 = vst [vmem:[#allocation3 + $0x118] sm:$0xff] 0.0
  %62 = vst [vmem:[#allocation3 + $0x120] sm:$0xff] 0.0
  %63 = vst [vmem:[#allocation3 + $0x128] sm:$0xff] 0.0
  %64 = vst [vmem:[#allocation3 + $0x130] sm:$0xff] 0.0
  %65 = vst [vmem:[#allocation3 + $0x138] sm:$0xff] 0.0
  %66 = vst [vmem:[#allocation3 + $0x140] sm:$0xff] 0.0
  %67 = vst [vmem:[#allocation3 + $0x148] sm:$0xff] 0.0
  %68 = vst [vmem:[#allocation3 + $0x150] sm:$0xff] 0.0
  %69 = vst [vmem:[#allocation3 + $0x158] sm:$0xff] 0.0
  %70 = vst [vmem:[#allocation3 + $0x160] sm:$0xff] 0.0
  %71 = vst [vmem:[#allocation3 + $0x168] sm:$0xff] 0.0
  %72 = vst [vmem:[#allocation3 + $0x170] sm:$0xff] 0.0
  %73 = vst [vmem:[#allocation3 + $0x178] sm:$0xff] 0.0
  %vm74 = vcmask 535552
  %75 = vst.msk [vmem:[#allocation4] sm:$0xf] %vm74, -inf
  %v76 = vld [vmem:[%s0] sm:$0xf]
  %v77 = vld [vmem:[%s1] sm:$0xff]
  %vm78 = vcmask 31744
  %v80 = vsel %vm78, %v77, 0
  %vm82 = vcmask 1043456
  %v84 = vsel %vm82, %v76, 0
  %86 = vmatprep.subr.mxu0 0.0
  %87 = vmatpush1.msra.mxu0 %v84
  %88 = vmatprep.subr.mxu0 0.0
  %89 = vmatpush1.msra.mxu0 0.0
  %90 = vmatprep.subr.mxu0 0.0
  %91 = vmatpush1.msra.mxu0 0.0
  %92 = vmatprep.subr.mxu0 0.0
  %93 = vmatpush1.msra.mxu0 0.0
  %94 = vmatprep.subr.mxu0 0.0
  %95 = vmatpush1.msra.mxu0 0.0
  %96 = vmatprep.subr.mxu0 0.0
  %97 = vmatpush1.msra.mxu0 0.0
  %98 = vmatprep.subr.mxu0 0.0
  %99 = vmatpush1.msra.mxu0 0.0
  %100 = vmatprep.subr.mxu0 0.0
  %101 = vmatpush1.msra.mxu0 0.0
  %102 = vmatprep.subr.mxu0 0.0
  %103 = vmatpush1.msra.mxu0 0.0
  %104 = vmatprep.subr.mxu0 0.0
  %105 = vmatpush1.msra.mxu0 0.0
  %106 = vmatprep.subr.mxu0 0.0
  %107 = vmatpush1.msra.mxu0 0.0
  %108 = vmatprep.subr.mxu0 0.0
  %109 = vmatpush1.msra.mxu0 0.0
  %110 = vmatprep.subr.mxu0 0.0
  %111 = vmatpush1.msra.mxu0 0.0
  %112 = vmatprep.subr.mxu0 0.0
  %113 = vmatpush1.msra.mxu0 0.0
  %114 = vmatprep.subr.mxu0 0.0
  %115 = vmatpush1.msra.mxu0 0.0
  %116 = vmatprep.subr.mxu0 0.0
  %117 = vmatpush1.msra.mxu0 0.0
  %118 = vmatprep.subr.mxu0 0.0
  %119 = vmatpush1.msra.mxu0 0.0
  %120 = vmatprep.subr.mxu0 0.0
  %121 = vmatpush1.msra.mxu0 0.0
  %122 = vmatprep.subr.mxu0 0.0
  %123 = vmatpush1.msra.mxu0 0.0
  %124 = vmatprep.subr.mxu0 0.0
  %125 = vmatpush1.msra.mxu0 0.0
  %126 = vmatprep.subr.mxu0 0.0
  %127 = vmatpush1.msra.mxu0 0.0
  %128 = vmatprep.subr.mxu0 0.0
  %129 = vmatpush1.msra.mxu0 0.0
  %130 = vmatprep.subr.mxu0 0.0
  %131 = vmatpush1.msra.mxu0 0.0
  %132 = vmatprep.subr.mxu0 0.0
  %133 = vmatpush1.msra.mxu0 0.0
  %134 = vmatprep.subr.mxu0 0.0
  %135 = vmatpush1.msra.mxu0 0.0
  %136 = vmatprep.subr.mxu0 0.0
  %137 = vmatpush1.msra.mxu0 0.0
  %138 = vmatprep.subr.mxu0 0.0
  %139 = vmatpush1.msra.mxu0 0.0
  %140 = vmatprep.subr.mxu0 0.0
  %141 = vmatpush1.msra.mxu0 0.0
  %142 = vmatprep.subr.mxu0 0.0
  %143 = vmatpush1.msra.mxu0 0.0
  %144 = vmatprep.subr.mxu0 0.0
  %145 = vmatpush1.msra.mxu0 0.0
  %146 = vmatprep.subr.mxu0 0.0
  %147 = vmatpush1.msra.mxu0 0.0
  %148 = vmatprep.subr.mxu0 0.0
  %149 = vmatpush1.msra.mxu0 0.0
  %150 = vmatprep.mubr.f32.mxu0 0.0
  %151 = vmatmul.mubr.f32.gmra.mrb[0].mxu0 %v80
  %v152 = vpop.f32.mrb[0].mxu0
  %v153 = vadd.f32 0.0, %v152
  %v154 = vpop.f32.mrb[0].mxu0
  %155 = vdwg.mxu0
  %157 = vrot.lane.b32.xlu0 %v153, 19
  %v158 = vpop.permute.xlu0 %157
  %vm160 = vcmask 679064
  %161 = vst.msk [vmem:[#allocation2] sm:$0xff] %vm160, %v158
  %162 = vrot.lane.b32.xlu0 %v153, 57
  %v163 = vpop.permute.xlu0 %162
  %vm165 = vcmask 1048520
  %166 = vst.msk [vmem:[#allocation2] sm:$0xff] %vm165, %v163
  %vm167 = vcmask 465920
  %168 = vst.msk [vmem:[#allocation2 + $0x8] sm:$0xff] %vm167, %v163
  %v169 = vld [vmem:[#allocation2] sm:$0xff]
  %vm170 = vcmask 523264
  %171 = vst.msk [vmem:[#allocation3] sm:$0xff] %vm170, %v169
  %v172 = vld [vmem:[#allocation2] sm:$0xff]
  %174 = vrot.lane.b32.xlu0 %v172, 127
  %v175 = vpop.permute.xlu0 %174
  %177 = vst.msk [vmem:[#allocation3 + $0x8] sm:$0xff] %vm170, %v175
  %v178 = vld [vmem:[#allocation2] sm:$0xff]
  %180 = vrot.lane.b32.xlu0 %v178, 126
  %v181 = vpop.permute.xlu0 %180
  %183 = vst.msk [vmem:[#allocation3 + $0x10] sm:$0xff] %vm170, %v181
  %v184 = vld [vmem:[#allocation2] sm:$0xff]
  %186 = vrot.lane.b32.xlu0 %v184, 125
  %v187 = vpop.permute.xlu0 %186
  %189 = vst.msk [vmem:[#allocation3 + $0x18] sm:$0xff] %vm170, %v187
  %v190 = vld [vmem:[#allocation2] sm:$0xff]
  %192 = vrot.lane.b32.xlu0 %v190, 124
  %v193 = vpop.permute.xlu0 %192
  %195 = vst.msk [vmem:[#allocation3 + $0x20] sm:$0xff] %vm170, %v193
  %v196 = vld [vmem:[#allocation2] sm:$0xff]
  %198 = vrot.lane.b32.xlu0 %v196, 123
  %v199 = vpop.permute.xlu0 %198
  %201 = vst.msk [vmem:[#allocation3 + $0x28] sm:$0xff] %vm170, %v199
  %v202 = vld [vmem:[#allocation2] sm:$0xff]
  %204 = vrot.lane.b32.xlu0 %v202, 122
  %v205 = vpop.permute.xlu0 %204
  %207 = vst.msk [vmem:[#allocation3 + $0x30] sm:$0xff] %vm170, %v205
  %v208 = vld [vmem:[#allocation2] sm:$0xff]
  %210 = vrot.lane.b32.xlu0 %v208, 121
  %v211 = vpop.permute.xlu0 %210
  %213 = vst.msk [vmem:[#allocation3 + $0x38] sm:$0xff] %vm170, %v211
  %v214 = vld [vmem:[#allocation2] sm:$0xff]
  %216 = vrot.lane.b32.xlu0 %v214, 120
  %v217 = vpop.permute.xlu0 %216
  %219 = vst.msk [vmem:[#allocation3 + $0x40] sm:$0xff] %vm170, %v217
  %v220 = vld [vmem:[#allocation2] sm:$0xff]
  %222 = vrot.lane.b32.xlu0 %v220, 119
  %v223 = vpop.permute.xlu0 %222
  %225 = vst.msk [vmem:[#allocation3 + $0x48] sm:$0xff] %vm170, %v223
  %v226 = vld [vmem:[#allocation2] sm:$0xff]
  %228 = vrot.lane.b32.xlu0 %v226, 118
  %v229 = vpop.permute.xlu0 %228
  %231 = vst.msk [vmem:[#allocation3 + $0x50] sm:$0xff] %vm170, %v229
  %v232 = vld [vmem:[#allocation2] sm:$0xff]
  %234 = vrot.lane.b32.xlu0 %v232, 117
  %v235 = vpop.permute.xlu0 %234
  %237 = vst.msk [vmem:[#allocation3 + $0x58] sm:$0xff] %vm170, %v235
  %v238 = vld [vmem:[#allocation2] sm:$0xff]
  %240 = vrot.lane.b32.xlu0 %v238, 116
  %v241 = vpop.permute.xlu0 %240
  %243 = vst.msk [vmem:[#allocation3 + $0x60] sm:$0xff] %vm170, %v241
  %v244 = vld [vmem:[#allocation2] sm:$0xff]
  %246 = vrot.lane.b32.xlu0 %v244, 115
  %v247 = vpop.permute.xlu0 %246
  %249 = vst.msk [vmem:[#allocation3 + $0x68] sm:$0xff] %vm170, %v247
  %v250 = vld [vmem:[#allocation2] sm:$0xff]
  %252 = vrot.lane.b32.xlu0 %v250, 114
  %v253 = vpop.permute.xlu0 %252
  %255 = vst.msk [vmem:[#allocation3 + $0x70] sm:$0xff] %vm170, %v253
  %v256 = vld [vmem:[#allocation2] sm:$0xff]
  %258 = vrot.lane.b32.xlu0 %v256, 113
  %v259 = vpop.permute.xlu0 %258
  %261 = vst.msk [vmem:[#allocation3 + $0x78] sm:$0xff] %vm170, %v259
  %v262 = vld [vmem:[#allocation2] sm:$0xff]
  %264 = vrot.lane.b32.xlu0 %v262, 112
  %v265 = vpop.permute.xlu0 %264
  %267 = vst.msk [vmem:[#allocation3 + $0x80] sm:$0xff] %vm170, %v265
  %v268 = vld [vmem:[#allocation2] sm:$0xff]
  %270 = vrot.lane.b32.xlu0 %v268, 111
  %v271 = vpop.permute.xlu0 %270
  %273 = vst.msk [vmem:[#allocation3 + $0x88] sm:$0xff] %vm170, %v271
  %v274 = vld [vmem:[#allocation2] sm:$0xff]
  %276 = vrot.lane.b32.xlu0 %v274, 110
  %v277 = vpop.permute.xlu0 %276
  %279 = vst.msk [vmem:[#allocation3 + $0x90] sm:$0xff] %vm170, %v277
  %v280 = vld [vmem:[#allocation2] sm:$0xff]
  %282 = vrot.lane.b32.xlu0 %v280, 109
  %v283 = vpop.permute.xlu0 %282
  %285 = vst.msk [vmem:[#allocation3 + $0x98] sm:$0xff] %vm170, %v283
  %v286 = vld [vmem:[#allocation2] sm:$0xff]
  %288 = vrot.lane.b32.xlu0 %v286, 108
  %v289 = vpop.permute.xlu0 %288
  %291 = vst.msk [vmem:[#allocation3 + $0xa0] sm:$0xff] %vm170, %v289
  %v292 = vld [vmem:[#allocation2] sm:$0xff]
  %294 = vrot.lane.b32.xlu0 %v292, 107
  %v295 = vpop.permute.xlu0 %294
  %297 = vst.msk [vmem:[#allocation3 + $0xa8] sm:$0xff] %vm170, %v295
  %v298 = vld [vmem:[#allocation2] sm:$0xff]
  %300 = vrot.lane.b32.xlu0 %v298, 106
  %v301 = vpop.permute.xlu0 %300
  %303 = vst.msk [vmem:[#allocation3 + $0xb0] sm:$0xff] %vm170, %v301
  %v304 = vld [vmem:[#allocation2] sm:$0xff]
  %306 = vrot.lane.b32.xlu0 %v304, 105
  %v307 = vpop.permute.xlu0 %306
  %309 = vst.msk [vmem:[#allocation3 + $0xb8] sm:$0xff] %vm170, %v307
  %v310 = vld [vmem:[#allocation2] sm:$0xff]
  %312 = vrot.lane.b32.xlu0 %v310, 104
  %v313 = vpop.permute.xlu0 %312
  %315 = vst.msk [vmem:[#allocation3 + $0xc0] sm:$0xff] %vm170, %v313
  %v316 = vld [vmem:[#allocation2] sm:$0xff]
  %318 = vrot.lane.b32.xlu0 %v316, 103
  %v319 = vpop.permute.xlu0 %318
  %321 = vst.msk [vmem:[#allocation3 + $0xc8] sm:$0xff] %vm170, %v319
  %v322 = vld [vmem:[#allocation2] sm:$0xff]
  %324 = vrot.lane.b32.xlu0 %v322, 102
  %v325 = vpop.permute.xlu0 %324
  %327 = vst.msk [vmem:[#allocation3 + $0xd0] sm:$0xff] %vm170, %v325
  %v328 = vld [vmem:[#allocation2] sm:$0xff]
  %330 = vrot.lane.b32.xlu0 %v328, 101
  %v331 = vpop.permute.xlu0 %330
  %333 = vst.msk [vmem:[#allocation3 + $0xd8] sm:$0xff] %vm170, %v331
  %v334 = vld [vmem:[#allocation2] sm:$0xff]
  %336 = vrot.lane.b32.xlu0 %v334, 100
  %v337 = vpop.permute.xlu0 %336
  %339 = vst.msk [vmem:[#allocation3 + $0xe0] sm:$0xff] %vm170, %v337
  %v340 = vld [vmem:[#allocation2] sm:$0xff]
  %342 = vrot.lane.b32.xlu0 %v340, 99
  %v343 = vpop.permute.xlu0 %342
  %345 = vst.msk [vmem:[#allocation3 + $0xe8] sm:$0xff] %vm170, %v343
  %v346 = vld [vmem:[#allocation2] sm:$0xff]
  %348 = vrot.lane.b32.xlu0 %v346, 98
  %v349 = vpop.permute.xlu0 %348
  %351 = vst.msk [vmem:[#allocation3 + $0xf0] sm:$0xff] %vm170, %v349
  %v352 = vld [vmem:[#allocation2] sm:$0xff]
  %354 = vrot.lane.b32.xlu0 %v352, 97
  %v355 = vpop.permute.xlu0 %354
  %357 = vst.msk [vmem:[#allocation3 + $0xf8] sm:$0xff] %vm170, %v355
  %v358 = vld [vmem:[#allocation2] sm:$0xff]
  %360 = vrot.lane.b32.xlu0 %v358, 96
  %v361 = vpop.permute.xlu0 %360
  %363 = vst.msk [vmem:[#allocation3 + $0x100] sm:$0xff] %vm170, %v361
  %v364 = vld [vmem:[#allocation2] sm:$0xff]
  %366 = vrot.lane.b32.xlu0 %v364, 95
  %v367 = vpop.permute.xlu0 %366
  %369 = vst.msk [vmem:[#allocation3 + $0x108] sm:$0xff] %vm170, %v367
  %v370 = vld [vmem:[#allocation2] sm:$0xff]
  %372 = vrot.lane.b32.xlu0 %v370, 94
  %v373 = vpop.permute.xlu0 %372
  %375 = vst.msk [vmem:[#allocation3 + $0x110] sm:$0xff] %vm170, %v373
  %v376 = vld [vmem:[#allocation2] sm:$0xff]
  %378 = vrot.lane.b32.xlu0 %v376, 93
  %v379 = vpop.permute.xlu0 %378
  %381 = vst.msk [vmem:[#allocation3 + $0x118] sm:$0xff] %vm170, %v379
  %v382 = vld [vmem:[#allocation2] sm:$0xff]
  %384 = vrot.lane.b32.xlu0 %v382, 92
  %v385 = vpop.permute.xlu0 %384
  %387 = vst.msk [vmem:[#allocation3 + $0x120] sm:$0xff] %vm170, %v385
  %v388 = vld [vmem:[#allocation2] sm:$0xff]
  %390 = vrot.lane.b32.xlu0 %v388, 91
  %v391 = vpop.permute.xlu0 %390
  %393 = vst.msk [vmem:[#allocation3 + $0x128] sm:$0xff] %vm170, %v391
  %v394 = vld [vmem:[#allocation2] sm:$0xff]
  %396 = vrot.lane.b32.xlu0 %v394, 90
  %v397 = vpop.permute.xlu0 %396
  %399 = vst.msk [vmem:[#allocation3 + $0x130] sm:$0xff] %vm170, %v397
  %v400 = vld [vmem:[#allocation2] sm:$0xff]
  %v401 = vld [vmem:[#allocation2 + $0x8] sm:$0xff]
  %404 = vrot.lane.b32.xlu0 %v400, 90
  %v405 = vpop.permute.xlu0 %404
  %406 = vrot.lane.b32.xlu0 %v401, 90
  %v407 = vpop.permute.xlu0 %406
  %vm408 = vcmask 736256
  %v409 = vsel %vm408, %v405, %v407
  %vm411 = vcmask 1048064
  %412 = vst.msk [vmem:[#allocation3] sm:$0xff] %vm411, %v409
  %v413 = vld [vmem:[#allocation2] sm:$0xff]
  %v414 = vld [vmem:[#allocation2 + $0x8] sm:$0xff]
  %417 = vrot.lane.b32.xlu0 %v413, 89
  %v418 = vpop.permute.xlu0 %417
  %419 = vrot.lane.b32.xlu0 %v414, 89
  %v420 = vpop.permute.xlu0 %419
  %vm421 = vcmask 728064
  %v422 = vsel %vm421, %v418, %v420
  %424 = vst.msk [vmem:[#allocation3 + $0x8] sm:$0xff] %vm411, %v422
  %v425 = vld [vmem:[#allocation2] sm:$0xff]
  %v426 = vld [vmem:[#allocation2 + $0x8] sm:$0xff]
  %429 = vrot.lane.b32.xlu0 %v425, 88
  %v430 = vpop.permute.xlu0 %429
  %431 = vrot.lane.b32.xlu0 %v426, 88
  %v432 = vpop.permute.xlu0 %431
  %vm433 = vcmask 719872
  %v434 = vsel %vm433, %v430, %v432
  %436 = vst.msk [vmem:[#allocation3 + $0x10] sm:$0xff] %vm411, %v434
  %v437 = vld [vmem:[#allocation2] sm:$0xff]
  %v438 = vld [vmem:[#allocation2 + $0x8] sm:$0xff]
  %441 = vrot.lane.b32.xlu0 %v437, 87
  %v442 = vpop.permute.xlu0 %441
  %443 = vrot.lane.b32.xlu0 %v438, 87
  %v444 = vpop.permute.xlu0 %443
  %vm445 = vcmask 711680
  %v446 = vsel %vm445, %v442, %v444
  %448 = vst.msk [vmem:[#allocation3 + $0x18] sm:$0xff] %vm411, %v446
  %v449 = vld [vmem:[#allocation2] sm:$0xff]
  %v450 = vld [vmem:[#allocation2 + $0x8] sm:$0xff]
  %453 = vrot.lane.b32.xlu0 %v449, 86
  %v454 = vpop.permute.xlu0 %453
  %455 = vrot.lane.b32.xlu0 %v450, 86
  %v456 = vpop.permute.xlu0 %455
  %vm457 = vcmask 703488
  %v458 = vsel %vm457, %v454, %v456
  %460 = vst.msk [vmem:[#allocation3 + $0x20] sm:$0xff] %vm411, %v458
  %v461 = vld [vmem:[#allocation2] sm:$0xff]
  %v462 = vld [vmem:[#allocation2 + $0x8] sm:$0xff]
  %465 = vrot.lane.b32.xlu0 %v461, 85
  %v466 = vpop.permute.xlu0 %465
  %467 = vrot.lane.b32.xlu0 %v462, 85
  %v468 = vpop.permute.xlu0 %467
  %vm469 = vcmask 695296
  %v470 = vsel %vm469, %v466, %v468
  %472 = vst.msk [vmem:[#allocation3 + $0x28] sm:$0xff] %vm411, %v470
  %v473 = vld [vmem:[#allocation2] sm:$0xff]
  %v474 = vld [vmem:[#allocation2 + $0x8] sm:$0xff]
  %477 = vrot.lane.b32.xlu0 %v473, 84
  %v478 = vpop.permute.xlu0 %477
  %479 = vrot.lane.b32.xlu0 %v474, 84
  %v480 = vpop.permute.xlu0 %479
  %vm481 = vcmask 687104
  %v482 = vsel %vm481, %v478, %v480
  %484 = vst.msk [vmem:[#allocation3 + $0x30] sm:$0xff] %vm411, %v482
  %v485 = vld [vmem:[#allocation2] sm:$0xff]
  %v486 = vld [vmem:[#allocation2 + $0x8] sm:$0xff]
  %489 = vrot.lane.b32.xlu0 %v485, 83
  %v490 = vpop.permute.xlu0 %489
  %491 = vrot.lane.b32.xlu0 %v486, 83
  %v492 = vpop.permute.xlu0 %491
  %vm493 = vcmask 678912
  %v494 = vsel %vm493, %v490, %v492
  %496 = vst.msk [vmem:[#allocation3 + $0x38] sm:$0xff] %vm411, %v494
  %v497 = vld [vmem:[#allocation2] sm:$0xff]
  %v498 = vld [vmem:[#allocation2 + $0x8] sm:$0xff]
  %501 = vrot.lane.b32.xlu0 %v497, 82
  %v502 = vpop.permute.xlu0 %501
  %503 = vrot.lane.b32.xlu0 %v498, 82
  %v504 = vpop.permute.xlu0 %503
  %vm505 = vcmask 670720
  %v506 = vsel %vm505, %v502, %v504
  %508 = vst.msk [vmem:[#allocation3 + $0x40] sm:$0xff] %vm411, %v506
  %v509 = vld [vmem:[#allocation2] sm:$0xff]
  %v510 = vld [vmem:[#allocation2 + $0x8] sm:$0xff]
  %513 = vrot.lane.b32.xlu0 %v509, 81
  %v514 = vpop.permute.xlu0 %513
  %515 = vrot.lane.b32.xlu0 %v510, 81
  %v516 = vpop.permute.xlu0 %515
  %vm517 = vcmask 662528
  %v518 = vsel %vm517, %v514, %v516
  %520 = vst.msk [vmem:[#allocation3 + $0x48] sm:$0xff] %vm411, %v518
  %v521 = vld [vmem:[#allocation2] sm:$0xff]
  %v522 = vld [vmem:[#allocation2 + $0x8] sm:$0xff]
  %525 = vrot.lane.b32.xlu0 %v521, 80
  %v526 = vpop.permute.xlu0 %525
  %527 = vrot.lane.b32.xlu0 %v522, 80
  %v528 = vpop.permute.xlu0 %527
  %vm529 = vcmask 654336
  %v530 = vsel %vm529, %v526, %v528
  %532 = vst.msk [vmem:[#allocation3 + $0x50] sm:$0xff] %vm411, %v530
  %v533 = vld [vmem:[#allocation2] sm:$0xff]
  %v534 = vld [vmem:[#allocation2 + $0x8] sm:$0xff]
  %537 = vrot.lane.b32.xlu0 %v533, 79
  %v538 = vpop.permute.xlu0 %537
  %539 = vrot.lane.b32.xlu0 %v534, 79
  %v540 = vpop.permute.xlu0 %539
  %vm541 = vcmask 646144
  %v542 = vsel %vm541, %v538, %v540
  %544 = vst.msk [vmem:[#allocation3 + $0x58] sm:$0xff] %vm411, %v542
  %v545 = vld [vmem:[#allocation2] sm:$0xff]
  %v546 = vld [vmem:[#allocation2 + $0x8] sm:$0xff]
  %549 = vrot.lane.b32.xlu0 %v545, 78
  %v550 = vpop.permute.xlu0 %549
  %551 = vrot.lane.b32.xlu0 %v546, 78
  %v552 = vpop.permute.xlu0 %551
  %vm553 = vcmask 637952
  %v554 = vsel %vm553, %v550, %v552
  %556 = vst.msk [vmem:[#allocation3 + $0x60] sm:$0xff] %vm411, %v554
  %v557 = vld [vmem:[#allocation2] sm:$0xff]
  %v558 = vld [vmem:[#allocation2 + $0x8] sm:$0xff]
  %561 = vrot.lane.b32.xlu0 %v557, 77
  %v562 = vpop.permute.xlu0 %561
  %563 = vrot.lane.b32.xlu0 %v558, 77
  %v564 = vpop.permute.xlu0 %563
  %vm565 = vcmask 629760
  %v566 = vsel %vm565, %v562, %v564
  %568 = vst.msk [vmem:[#allocation3 + $0x68] sm:$0xff] %vm411, %v566
  %v569 = vld [vmem:[#allocation2] sm:$0xff]
  %v570 = vld [vmem:[#allocation2 + $0x8] sm:$0xff]
  %573 = vrot.lane.b32.xlu0 %v569, 76
  %v574 = vpop.permute.xlu0 %573
  %575 = vrot.lane.b32.xlu0 %v570, 76
  %v576 = vpop.permute.xlu0 %575
  %v577 = vsel %vm24, %v574, %v576
  %579 = vst.msk [vmem:[#allocation3 + $0x70] sm:$0xff] %vm411, %v577
  %v580 = vld [vmem:[#allocation2] sm:$0xff]
  %v581 = vld [vmem:[#allocation2 + $0x8] sm:$0xff]
  %584 = vrot.lane.b32.xlu0 %v580, 75
  %v585 = vpop.permute.xlu0 %584
  %586 = vrot.lane.b32.xlu0 %v581, 75
  %v587 = vpop.permute.xlu0 %586
  %vm588 = vcmask 613376
  %v589 = vsel %vm588, %v585, %v587
  %591 = vst.msk [vmem:[#allocation3 + $0x78] sm:$0xff] %vm411, %v589
  %v592 = vld [vmem:[#allocation2] sm:$0xff]
  %v593 = vld [vmem:[#allocation2 + $0x8] sm:$0xff]
  %596 = vrot.lane.b32.xlu0 %v592, 74
  %v597 = vpop.permute.xlu0 %596
  %598 = vrot.lane.b32.xlu0 %v593, 74
  %v599 = vpop.permute.xlu0 %598
  %vm600 = vcmask 605184
  %v601 = vsel %vm600, %v597, %v599
  %603 = vst.msk [vmem:[#allocation3 + $0x80] sm:$0xff] %vm411, %v601
  %v604 = vld [vmem:[#allocation2] sm:$0xff]
  %v605 = vld [vmem:[#allocation2 + $0x8] sm:$0xff]
  %608 = vrot.lane.b32.xlu0 %v604, 73
  %v609 = vpop.permute.xlu0 %608
  %610 = vrot.lane.b32.xlu0 %v605, 73
  %v611 = vpop.permute.xlu0 %610
  %vm612 = vcmask 596992
  %v613 = vsel %vm612, %v609, %v611
  %615 = vst.msk [vmem:[#allocation3 + $0x88] sm:$0xff] %vm411, %v613
  %v616 = vld [vmem:[#allocation2] sm:$0xff]
  %v617 = vld [vmem:[#allocation2 + $0x8] sm:$0xff]
  %620 = vrot.lane.b32.xlu0 %v616, 72
  %v621 = vpop.permute.xlu0 %620
  %622 = vrot.lane.b32.xlu0 %v617, 72
  %v623 = vpop.permute.xlu0 %622
  %vm624 = vcmask 588800
  %v625 = vsel %vm624, %v621, %v623
  %627 = vst.msk [vmem:[#allocation3 + $0x90] sm:$0xff] %vm411, %v625
  %v628 = vld [vmem:[#allocation2] sm:$0xff]
  %v629 = vld [vmem:[#allocation2 + $0x8] sm:$0xff]
  %632 = vrot.lane.b32.xlu0 %v628, 71
  %v633 = vpop.permute.xlu0 %632
  %634 = vrot.lane.b32.xlu0 %v629, 71
  %v635 = vpop.permute.xlu0 %634
  %vm636 = vcmask 580608
  %v637 = vsel %vm636, %v633, %v635
  %639 = vst.msk [vmem:[#allocation3 + $0x98] sm:$0xff] %vm411, %v637
  %v640 = vld [vmem:[#allocation2] sm:$0xff]
  %v641 = vld [vmem:[#allocation2 + $0x8] sm:$0xff]
  %644 = vrot.lane.b32.xlu0 %v640, 70
  %v645 = vpop.permute.xlu0 %644
  %646 = vrot.lane.b32.xlu0 %v641, 70
  %v647 = vpop.permute.xlu0 %646
  %vm648 = vcmask 572416
  %v649 = vsel %vm648, %v645, %v647
  %651 = vst.msk [vmem:[#allocation3 + $0xa0] sm:$0xff] %vm411, %v649
  %v652 = vld [vmem:[#allocation2] sm:$0xff]
  %v653 = vld [vmem:[#allocation2 + $0x8] sm:$0xff]
  %656 = vrot.lane.b32.xlu0 %v652, 69
  %v657 = vpop.permute.xlu0 %656
  %658 = vrot.lane.b32.xlu0 %v653, 69
  %v659 = vpop.permute.xlu0 %658
  %vm660 = vcmask 564224
  %v661 = vsel %vm660, %v657, %v659
  %663 = vst.msk [vmem:[#allocation3 + $0xa8] sm:$0xff] %vm411, %v661
  %v664 = vld [vmem:[#allocation2] sm:$0xff]
  %v665 = vld [vmem:[#allocation2 + $0x8] sm:$0xff]
  %668 = vrot.lane.b32.xlu0 %v664, 68
  %v669 = vpop.permute.xlu0 %668
  %670 = vrot.lane.b32.xlu0 %v665, 68
  %v671 = vpop.permute.xlu0 %670
  %vm672 = vcmask 556032
  %v673 = vsel %vm672, %v669, %v671
  %675 = vst.msk [vmem:[#allocation3 + $0xb0] sm:$0xff] %vm411, %v673
  %v676 = vld [vmem:[#allocation2] sm:$0xff]
  %v677 = vld [vmem:[#allocation2 + $0x8] sm:$0xff]
  %680 = vrot.lane.b32.xlu0 %v676, 67
  %v681 = vpop.permute.xlu0 %680
  %682 = vrot.lane.b32.xlu0 %v677, 67
  %v683 = vpop.permute.xlu0 %682
  %vm684 = vcmask 547840
  %v685 = vsel %vm684, %v681, %v683
  %687 = vst.msk [vmem:[#allocation3 + $0xb8] sm:$0xff] %vm411, %v685
  %v688 = vld [vmem:[#allocation2] sm:$0xff]
  %v689 = vld [vmem:[#allocation2 + $0x8] sm:$0xff]
  %692 = vrot.lane.b32.xlu0 %v688, 66
  %v693 = vpop.permute.xlu0 %692
  %694 = vrot.lane.b32.xlu0 %v689, 66
  %v695 = vpop.permute.xlu0 %694
  %vm696 = vcmask 539648
  %v697 = vsel %vm696, %v693, %v695
  %699 = vst.msk [vmem:[#allocation3 + $0xc0] sm:$0xff] %vm411, %v697
  %v700 = vld [vmem:[#allocation2] sm:$0xff]
  %v701 = vld [vmem:[#allocation2 + $0x8] sm:$0xff]
  %704 = vrot.lane.b32.xlu0 %v700, 65
  %v705 = vpop.permute.xlu0 %704
  %706 = vrot.lane.b32.xlu0 %v701, 65
  %v707 = vpop.permute.xlu0 %706
  %vm708 = vcmask 531456
  %v709 = vsel %vm708, %v705, %v707
  %711 = vst.msk [vmem:[#allocation3 + $0xc8] sm:$0xff] %vm411, %v709
  %v712 = vld [vmem:[#allocation2 + $0x8] sm:$0xff]
  %714 = vrot.lane.b32.xlu0 %v712, 64
  %v715 = vpop.permute.xlu0 %714
  %717 = vst.msk [vmem:[#allocation3 + $0xd0] sm:$0xff] %vm411, %v715
  %v718 = vld [vmem:[#allocation2 + $0x8] sm:$0xff]
  %720 = vrot.lane.b32.xlu0 %v718, 63
  %v721 = vpop.permute.xlu0 %720
  %723 = vst.msk [vmem:[#allocation3 + $0xd8] sm:$0xff] %vm411, %v721
  %v724 = vld [vmem:[#allocation2 + $0x8] sm:$0xff]
  %726 = vrot.lane.b32.xlu0 %v724, 62
  %v727 = vpop.permute.xlu0 %726
  %729 = vst.msk [vmem:[#allocation3 + $0xe0] sm:$0xff] %vm411, %v727
  %v730 = vld [vmem:[#allocation2 + $0x8] sm:$0xff]
  %732 = vrot.lane.b32.xlu0 %v730, 61
  %v733 = vpop.permute.xlu0 %732
  %735 = vst.msk [vmem:[#allocation3 + $0xe8] sm:$0xff] %vm411, %v733
  %v736 = vld [vmem:[#allocation2 + $0x8] sm:$0xff]
  %738 = vrot.lane.b32.xlu0 %v736, 60
  %v739 = vpop.permute.xlu0 %738
  %741 = vst.msk [vmem:[#allocation3 + $0xf0] sm:$0xff] %vm411, %v739
  %v742 = vld [vmem:[#allocation2 + $0x8] sm:$0xff]
  %744 = vrot.lane.b32.xlu0 %v742, 59
  %v745 = vpop.permute.xlu0 %744
  %747 = vst.msk [vmem:[#allocation3 + $0xf8] sm:$0xff] %vm411, %v745
  %v748 = vld [vmem:[#allocation2 + $0x8] sm:$0xff]
  %750 = vrot.lane.b32.xlu0 %v748, 58
  %v751 = vpop.permute.xlu0 %750
  %753 = vst.msk [vmem:[#allocation3 + $0x100] sm:$0xff] %vm411, %v751
  %v754 = vld [vmem:[#allocation2 + $0x8] sm:$0xff]
  %756 = vrot.lane.b32.xlu0 %v754, 57
  %v757 = vpop.permute.xlu0 %756
  %759 = vst.msk [vmem:[#allocation3 + $0x108] sm:$0xff] %vm411, %v757
  %v760 = vld [vmem:[#allocation2 + $0x8] sm:$0xff]
  %762 = vrot.lane.b32.xlu0 %v760, 56
  %v763 = vpop.permute.xlu0 %762
  %765 = vst.msk [vmem:[#allocation3 + $0x110] sm:$0xff] %vm411, %v763
  %v766 = vld [vmem:[#allocation2 + $0x8] sm:$0xff]
  %768 = vrot.lane.b32.xlu0 %v766, 55
  %v769 = vpop.permute.xlu0 %768
  %771 = vst.msk [vmem:[#allocation3 + $0x118] sm:$0xff] %vm411, %v769
  %v772 = vld [vmem:[#allocation2 + $0x8] sm:$0xff]
  %774 = vrot.lane.b32.xlu0 %v772, 54
  %v775 = vpop.permute.xlu0 %774
  %777 = vst.msk [vmem:[#allocation3 + $0x120] sm:$0xff] %vm411, %v775
  %v778 = vld [vmem:[#allocation2 + $0x8] sm:$0xff]
  %780 = vrot.lane.b32.xlu0 %v778, 53
  %v781 = vpop.permute.xlu0 %780
  %783 = vst.msk [vmem:[#allocation3 + $0x128] sm:$0xff] %vm411, %v781
  %v784 = vld [vmem:[#allocation2 + $0x8] sm:$0xff]
  %786 = vrot.lane.b32.xlu0 %v784, 52
  %v787 = vpop.permute.xlu0 %786
  %789 = vst.msk [vmem:[#allocation3 + $0x130] sm:$0xff] %vm411, %v787
  %v790 = vld [vmem:[%s2] sm:$0xff]
  %v791 = vld [vmem:[%s2 + $0x8] sm:$0xff]
  %v792 = vld [vmem:[%s2 + $0x10] sm:$0xff]
  %v793 = vld [vmem:[%s2 + $0x18] sm:$0xff]
  %v794 = vld [vmem:[%s2 + $0x20] sm:$0xff]
  %v795 = vld [vmem:[%s2 + $0x28] sm:$0xff]
  %v796 = vld [vmem:[%s2 + $0x30] sm:$0xff]
  %v797 = vld [vmem:[%s2 + $0x38] sm:$0xff]
  %v798 = vld [vmem:[%s2 + $0x40] sm:$0xff]
  %v799 = vld [vmem:[#allocation3] sm:$0xff]
  %v800 = vld [vmem:[#allocation3 + $0x8] sm:$0xff]
  %v801 = vld [vmem:[#allocation3 + $0x10] sm:$0xff]
  %v802 = vld [vmem:[#allocation3 + $0x18] sm:$0xff]
  %v803 = vld [vmem:[#allocation3 + $0x20] sm:$0xff]
  %v804 = vld [vmem:[#allocation3 + $0x28] sm:$0xff]
  %v805 = vld [vmem:[#allocation3 + $0x30] sm:$0xff]
  %v806 = vld [vmem:[#allocation3 + $0x38] sm:$0xff]
  %v807 = vld [vmem:[#allocation3 + $0x40] sm:$0xff]
  %v808 = vld [vmem:[#allocation3 + $0x48] sm:$0xff]
  %v809 = vld [vmem:[#allocation3 + $0x50] sm:$0xff]
  %v810 = vld [vmem:[#allocation3 + $0x58] sm:$0xff]
  %v811 = vld [vmem:[#allocation3 + $0x60] sm:$0xff]
  %v812 = vld [vmem:[#allocation3 + $0x68] sm:$0xff]
  %v813 = vld [vmem:[#allocation3 + $0x70] sm:$0xff]
  %v814 = vld [vmem:[#allocation3 + $0x78] sm:$0xff]
  %v815 = vld [vmem:[#allocation3 + $0x80] sm:$0xff]
  %v816 = vld [vmem:[#allocation3 + $0x88] sm:$0xff]
  %v817 = vld [vmem:[#allocation3 + $0x90] sm:$0xff]
  %v818 = vld [vmem:[#allocation3 + $0x98] sm:$0xff]
  %v819 = vld [vmem:[#allocation3 + $0xa0] sm:$0xff]
  %v820 = vld [vmem:[#allocation3 + $0xa8] sm:$0xff]
  %v821 = vld [vmem:[#allocation3 + $0xb0] sm:$0xff]
  %v822 = vld [vmem:[#allocation3 + $0xb8] sm:$0xff]
  %v823 = vld [vmem:[#allocation3 + $0xc0] sm:$0xff]
  %v824 = vld [vmem:[#allocation3 + $0xc8] sm:$0xff]
  %v825 = vld [vmem:[#allocation3 + $0xd0] sm:$0xff]
  %v826 = vld [vmem:[#allocation3 + $0xd8] sm:$0xff]
  %v827 = vld [vmem:[#allocation3 + $0xe0] sm:$0xff]
  %v828 = vld [vmem:[#allocation3 + $0xe8] sm:$0xff]
  %v829 = vld [vmem:[#allocation3 + $0xf0] sm:$0xff]
  %v830 = vld [vmem:[#allocation3 + $0xf8] sm:$0xff]
  %v831 = vld [vmem:[#allocation3 + $0x100] sm:$0xff]
  %v832 = vld [vmem:[#allocation3 + $0x108] sm:$0xff]
  %v833 = vld [vmem:[#allocation3 + $0x110] sm:$0xff]
  %v834 = vld [vmem:[#allocation3 + $0x118] sm:$0xff]
  %v835 = vld [vmem:[#allocation3 + $0x120] sm:$0xff]
  %v836 = vld [vmem:[#allocation3 + $0x128] sm:$0xff]
  %v837 = vld [vmem:[#allocation3 + $0x130] sm:$0xff]
  %v838 = vld [vmem:[#allocation3 + $0x138] sm:$0xff]
  %v839 = vld [vmem:[#allocation3 + $0x140] sm:$0xff]
  %v840 = vld [vmem:[#allocation3 + $0x148] sm:$0xff]
  %v841 = vld [vmem:[#allocation3 + $0x150] sm:$0xff]
  %v842 = vld [vmem:[#allocation3 + $0x158] sm:$0xff]
  %v843 = vld [vmem:[#allocation3 + $0x160] sm:$0xff]
  %v844 = vld [vmem:[#allocation3 + $0x168] sm:$0xff]
  %v845 = vld [vmem:[#allocation3 + $0x170] sm:$0xff]
  %v846 = vld [vmem:[#allocation3 + $0x178] sm:$0xff]
  %847 = vmatprep.subr.mxu0 0.0
  %848 = vmatpush1.msra.mxu0 %v799
  %849 = vmatprep.subr.mxu0 0.0
  %850 = vmatpush1.msra.mxu0 %v800
  %851 = vmatprep.subr.mxu0 0.0
  %852 = vmatpush1.msra.mxu0 %v801
  %853 = vmatprep.subr.mxu0 0.0
  %854 = vmatpush1.msra.mxu0 %v802
  %855 = vmatprep.subr.mxu0 0.0
  %856 = vmatpush1.msra.mxu0 %v803
  %857 = vmatprep.subr.mxu0 0.0
  %858 = vmatpush1.msra.mxu0 %v804
  %859 = vmatprep.subr.mxu0 0.0
  %860 = vmatpush1.msra.mxu0 %v805
  %861 = vmatprep.subr.mxu0 0.0
  %862 = vmatpush1.msra.mxu0 %v806
  %863 = vmatprep.subr.mxu0 0.0
  %864 = vmatpush1.msra.mxu0 %v807
  %865 = vmatprep.subr.mxu0 0.0
  %866 = vmatpush1.msra.mxu0 %v808
  %867 = vmatprep.subr.mxu0 0.0
  %868 = vmatpush1.msra.mxu0 %v809
  %869 = vmatprep.subr.mxu0 0.0
  %870 = vmatpush1.msra.mxu0 %v810
  %871 = vmatprep.subr.mxu0 0.0
  %872 = vmatpush1.msra.mxu0 %v811
  %873 = vmatprep.subr.mxu0 0.0
  %874 = vmatpush1.msra.mxu0 %v812
  %875 = vmatprep.subr.mxu0 0.0
  %876 = vmatpush1.msra.mxu0 %v813
  %877 = vmatprep.subr.mxu0 0.0
  %878 = vmatpush1.msra.mxu0 %v814
  %879 = vmatprep.subr.mxu0 0.0
  %880 = vmatpush1.msra.mxu0 %v815
  %881 = vmatprep.subr.mxu0 0.0
  %882 = vmatpush1.msra.mxu0 %v816
  %883 = vmatprep.subr.mxu0 0.0
  %884 = vmatpush1.msra.mxu0 %v817
  %885 = vmatprep.subr.mxu0 0.0
  %886 = vmatpush1.msra.mxu0 %v818
  %887 = vmatprep.subr.mxu0 0.0
  %888 = vmatpush1.msra.mxu0 %v819
  %889 = vmatprep.subr.mxu0 0.0
  %890 = vmatpush1.msra.mxu0 %v820
  %891 = vmatprep.subr.mxu0 0.0
  %892 = vmatpush1.msra.mxu0 %v821
  %893 = vmatprep.subr.mxu0 0.0
  %894 = vmatpush1.msra.mxu0 %v822
  %895 = vmatprep.subr.mxu0 0.0
  %896 = vmatpush1.msra.mxu0 %v823
  %897 = vmatprep.subr.mxu0 0.0
  %898 = vmatpush1.msra.mxu0 %v824
  %899 = vmatprep.subr.mxu0 0.0
  %900 = vmatpush1.msra.mxu0 %v825
  %901 = vmatprep.subr.mxu0 0.0
  %902 = vmatpush1.msra.mxu0 %v826
  %903 = vmatprep.subr.mxu0 0.0
  %904 = vmatpush1.msra.mxu0 %v827
  %905 = vmatprep.subr.mxu0 0.0
  %906 = vmatpush1.msra.mxu0 %v828
  %907 = vmatprep.subr.mxu0 0.0
  %908 = vmatpush1.msra.mxu0 %v829
  %909 = vmatprep.subr.mxu0 0.0
  %910 = vmatpush1.msra.mxu0 %v830
  %911 = vmatprep.mubr.f32.mxu0 %v791
  %912 = vmatmul.mubr.f32.gmra.mrb[0].mxu0 %v790
  %v913 = vpop.f32.mrb[0].mxu0
  %v914 = vadd.f32 0.0, %v913
  %v915 = vpop.f32.mrb[0].mxu0
  %916 = vmatprep.mubr.f32.mxu0 %v794
  %917 = vmatmul.mubr.f32.gmra.mrb[0].mxu0 %v793
  %v918 = vpop.f32.mrb[0].mxu0
  %v919 = vadd.f32 0.0, %v918
  %v920 = vpop.f32.mrb[0].mxu0
  %921 = vmatprep.mubr.f32.mxu0 %v797
  %922 = vmatmul.mubr.f32.gmra.mrb[0].mxu0 %v796
  %v923 = vpop.f32.mrb[0].mxu0
  %v924 = vadd.f32 0.0, %v923
  %v925 = vpop.f32.mrb[0].mxu0
  %926 = vdwg.mxu0
  %927 = vmatprep.subr.mxu0 0.0
  %928 = vmatpush1.msra.mxu0 %v831
  %929 = vmatprep.subr.mxu0 0.0
  %930 = vmatpush1.msra.mxu0 %v832
  %931 = vmatprep.subr.mxu0 0.0
  %932 = vmatpush1.msra.mxu0 %v833
  %933 = vmatprep.subr.mxu0 0.0
  %934 = vmatpush1.msra.mxu0 %v834
  %935 = vmatprep.subr.mxu0 0.0
  %936 = vmatpush1.msra.mxu0 %v835
  %937 = vmatprep.subr.mxu0 0.0
  %938 = vmatpush1.msra.mxu0 %v836
  %939 = vmatprep.subr.mxu0 0.0
  %940 = vmatpush1.msra.mxu0 %v837
  %941 = vmatprep.subr.mxu0 0.0
  %942 = vmatpush1.msra.mxu0 %v838
  %943 = vmatprep.subr.mxu0 0.0
  %944 = vmatpush1.msra.mxu0 %v839
  %945 = vmatprep.subr.mxu0 0.0
  %946 = vmatpush1.msra.mxu0 %v840
  %947 = vmatprep.subr.mxu0 0.0
  %948 = vmatpush1.msra.mxu0 %v841
  %949 = vmatprep.subr.mxu0 0.0
  %950 = vmatpush1.msra.mxu0 %v842
  %951 = vmatprep.subr.mxu0 0.0
  %952 = vmatpush1.msra.mxu0 %v843
  %953 = vmatprep.subr.mxu0 0.0
  %954 = vmatpush1.msra.mxu0 %v844
  %955 = vmatprep.subr.mxu0 0.0
  %956 = vmatpush1.msra.mxu0 %v845
  %957 = vmatprep.subr.mxu0 0.0
  %958 = vmatpush1.msra.mxu0 %v846
  %959 = vmatprep.subr.mxu0 0.0
  %960 = vmatpush1.msra.mxu0 0.0
  %961 = vmatprep.subr.mxu0 0.0
  %962 = vmatpush1.msra.mxu0 0.0
  %963 = vmatprep.subr.mxu0 0.0
  %964 = vmatpush1.msra.mxu0 0.0
  %965 = vmatprep.subr.mxu0 0.0
  %966 = vmatpush1.msra.mxu0 0.0
  %967 = vmatprep.subr.mxu0 0.0
  %968 = vmatpush1.msra.mxu0 0.0
  %969 = vmatprep.subr.mxu0 0.0
  %970 = vmatpush1.msra.mxu0 0.0
  %971 = vmatprep.subr.mxu0 0.0
  %972 = vmatpush1.msra.mxu0 0.0
  %973 = vmatprep.subr.mxu0 0.0
  %974 = vmatpush1.msra.mxu0 0.0
  %975 = vmatprep.subr.mxu0 0.0
  %976 = vmatpush1.msra.mxu0 0.0
  %977 = vmatprep.subr.mxu0 0.0
  %978 = vmatpush1.msra.mxu0 0.0
  %979 = vmatprep.subr.mxu0 0.0
  %980 = vmatpush1.msra.mxu0 0.0
  %981 = vmatprep.subr.mxu0 0.0
  %982 = vmatpush1.msra.mxu0 0.0
  %983 = vmatprep.subr.mxu0 0.0
  %984 = vmatpush1.msra.mxu0 0.0
  %985 = vmatprep.subr.mxu0 0.0
  %986 = vmatpush1.msra.mxu0 0.0
  %987 = vmatprep.subr.mxu0 0.0
  %988 = vmatpush1.msra.mxu0 0.0
  %989 = vmatprep.subr.mxu0 0.0
  %990 = vmatpush1.msra.mxu0 0.0
  %991 = vmatprep.mubr.f32.mxu0 0.0
  %992 = vmatmul.mubr.f32.gmra.mrb[0].mxu0 %v792
  %v993 = vpop.f32.mrb[0].mxu0
  %v994 = vadd.f32 %v914, %v993
  %v995 = vpop.f32.mrb[0].mxu0
  %996 = vmatprep.mubr.f32.mxu0 0.0
  %997 = vmatmul.mubr.f32.gmra.mrb[0].mxu0 %v795
  %v998 = vpop.f32.mrb[0].mxu0
  %v999 = vadd.f32 %v919, %v998
  %v1000 = vpop.f32.mrb[0].mxu0
  %1001 = vmatprep.mubr.f32.mxu0 0.0
  %1002 = vmatmul.mubr.f32.gmra.mrb[0].mxu0 %v798
  %v1003 = vpop.f32.mrb[0].mxu0
  %v1004 = vadd.f32 %v924, %v1003
  %v1005 = vpop.f32.mrb[0].mxu0
  %1006 = vdwg.mxu0
  %1007 = vrot.lane.b32.xlu0 %v76, 1
  %v1008 = vpop.permute.xlu0 %1007
  %vm1010 = vcmask 527368
  %1011 = vst.msk [vmem:[#allocation4] sm:$0xf] %vm1010, %v1008
  %v1012 = vld [vmem:[#allocation4] sm:$0xf]
  %1014 = vrot.lane.b32.xlu0 %v1012, 127
  %v1015 = vpop.permute.xlu0 %1014
  %v1017 = vmax.f32 %v1012, %v1015
  %1018 = vrot.lane.b32.xlu0 %v1012, 126
  %v1019 = vpop.permute.xlu0 %1018
  %v1021 = vmax.f32 %v1017, %v1019
  %vm1022 = vcmask 519168
  %1023 = vst.msk [vmem:[#allocation5] sm:$0xf] %vm1022, %v1021
  %1024 = vrot.lane.b32.xlu0 %v76, 65
  %v1025 = vpop.permute.xlu0 %1024
  %1027 = vst.msk [vmem:[#allocation4] sm:$0xf] %vm1010, %v1025
  %v1028 = vld [vmem:[#allocation4] sm:$0xf]
  %1030 = vrot.lane.b32.xlu0 %v1028, 127
  %v1031 = vpop.permute.xlu0 %1030
  %v1033 = vmax.f32 %v1028, %v1031
  %1034 = vrot.lane.b32.xlu0 %v1028, 126
  %v1035 = vpop.permute.xlu0 %1034
  %v1037 = vmax.f32 %v1033, %v1035
  %1039 = vrot.lane.b32.xlu0 %v1037, 64
  %v1040 = vpop.permute.xlu0 %1039
  %vm1042 = vcmask 1043968
  %1043 = vst.msk [vmem:[#allocation5] sm:$0xf] %vm1042, %v1040
  %v1044 = vld [vmem:[%s3] sm:$0xff]
  %v1045 = vld [vmem:[#allocation5] sm:$0xf]
  %v1047 = vsel %vm78, %v1044, 0
  %v1050 = vsel %vm82, %v1045, 0
  %1052 = vmatprep.subr.mxu0 0.0
  %1053 = vmatpush1.msra.mxu0 %v1050
  %1054 = vmatprep.subr.mxu0 0.0
  %1055 = vmatpush1.msra.mxu0 0.0
  %1056 = vmatprep.subr.mxu0 0.0
  %1057 = vmatpush1.msra.mxu0 0.0
  %1058 = vmatprep.subr.mxu0 0.0
  %1059 = vmatpush1.msra.mxu0 0.0
  %1060 = vmatprep.subr.mxu0 0.0
  %1061 = vmatpush1.msra.mxu0 0.0
  %1062 = vmatprep.subr.mxu0 0.0
  %1063 = vmatpush1.msra.mxu0 0.0
  %1064 = vmatprep.subr.mxu0 0.0
  %1065 = vmatpush1.msra.mxu0 0.0
  %1066 = vmatprep.subr.mxu0 0.0
  %1067 = vmatpush1.msra.mxu0 0.0
  %1068 = vmatprep.subr.mxu0 0.0
  %1069 = vmatpush1.msra.mxu0 0.0
  %1070 = vmatprep.subr.mxu0 0.0
  %1071 = vmatpush1.msra.mxu0 0.0
  %1072 = vmatprep.subr.mxu0 0.0
  %1073 = vmatpush1.msra.mxu0 0.0
  %1074 = vmatprep.subr.mxu0 0.0
  %1075 = vmatpush1.msra.mxu0 0.0
  %1076 = vmatprep.subr.mxu0 0.0
  %1077 = vmatpush1.msra.mxu0 0.0
  %1078 = vmatprep.subr.mxu0 0.0
  %1079 = vmatpush1.msra.mxu0 0.0
  %1080 = vmatprep.subr.mxu0 0.0
  %1081 = vmatpush1.msra.mxu0 0.0
  %1082 = vmatprep.subr.mxu0 0.0
  %1083 = vmatpush1.msra.mxu0 0.0
  %1084 = vmatprep.subr.mxu0 0.0
  %1085 = vmatpush1.msra.mxu0 0.0
  %1086 = vmatprep.subr.mxu0 0.0
  %1087 = vmatpush1.msra.mxu0 0.0
  %1088 = vmatprep.subr.mxu0 0.0
  %1089 = vmatpush1.msra.mxu0 0.0
  %1090 = vmatprep.subr.mxu0 0.0
  %1091 = vmatpush1.msra.mxu0 0.0
  %1092 = vmatprep.subr.mxu0 0.0
  %1093 = vmatpush1.msra.mxu0 0.0
  %1094 = vmatprep.subr.mxu0 0.0
  %1095 = vmatpush1.msra.mxu0 0.0
  %1096 = vmatprep.subr.mxu0 0.0
  %1097 = vmatpush1.msra.mxu0 0.0
  %1098 = vmatprep.subr.mxu0 0.0
  %1099 = vmatpush1.msra.mxu0 0.0
  %1100 = vmatprep.subr.mxu0 0.0
  %1101 = vmatpush1.msra.mxu0 0.0
  %1102 = vmatprep.subr.mxu0 0.0
  %1103 = vmatpush1.msra.mxu0 0.0
  %1104 = vmatprep.subr.mxu0 0.0
  %1105 = vmatpush1.msra.mxu0 0.0
  %1106 = vmatprep.subr.mxu0 0.0
  %1107 = vmatpush1.msra.mxu0 0.0
  %1108 = vmatprep.subr.mxu0 0.0
  %1109 = vmatpush1.msra.mxu0 0.0
  %1110 = vmatprep.subr.mxu0 0.0
  %1111 = vmatpush1.msra.mxu0 0.0
  %1112 = vmatprep.subr.mxu0 0.0
  %1113 = vmatpush1.msra.mxu0 0.0
  %1114 = vmatprep.subr.mxu0 0.0
  %1115 = vmatpush1.msra.mxu0 0.0
  %1116 = vmatprep.mubr.f32.mxu0 0.0
  %1117 = vmatmul.mubr.f32.gmra.mrb[0].mxu0 %v1047
  %v1118 = vpop.f32.mrb[0].mxu0
  %v1119 = vadd.f32 0.0, %v1118
  %v1120 = vpop.f32.mrb[0].mxu0
  %1121 = vdwg.mxu0
  %v1122 = vld [vmem:[%s4] sm:$0xff]
  %v1123 = vld [vmem:[%s4 + $0x8] sm:$0xff]
  %v1124 = vld [vmem:[%s4 + $0x10] sm:$0xff]
  %v1125 = vld [vmem:[%s4 + $0x18] sm:$0xff]
  %v1126 = vld [vmem:[%s5] sm:$0xff]
  %v1127 = vld [vmem:[%s5 + $0x8] sm:$0xff]
  %v1128 = vld [vmem:[%s5 + $0x10] sm:$0xff]
  %v1129 = vld [vmem:[%s5 + $0x18] sm:$0xff]
  %1130 = vadd.xlane.f32.xlu0 %v994
  %v1131 = vpop.xlane.xlu0 %1130
  %1132 = vadd.xlane.f32.xlu0 %v999
  %v1133 = vpop.xlane.xlu0 %1132
  %1134 = vadd.xlane.f32.xlu0 %v1004
  %v1135 = vpop.xlane.xlu0 %1134
  %v1136 = vrcp.pop 128.0
  %v1137 = vmul.f32 %v1131, %v1136
  %v1138 = vmul.f32 %v1133, %v1136
  %v1139 = vmul.f32 %v1135, %v1136
  %v1140 = vsub.f32 %v994, %v1137
  %v1141 = vsub.f32 %v999, %v1138
  %v1142 = vsub.f32 %v1004, %v1139
  %v1143 = vmul.f32 %v1140, %v1140
  %v1144 = vmul.f32 %v1141, %v1141
  %v1145 = vmul.f32 %v1142, %v1142
  %1146 = vadd.xlane.f32.xlu0 %v1143
  %v1147 = vpop.xlane.xlu0 %1146
  %1148 = vadd.xlane.f32.xlu0 %v1144
  %v1149 = vpop.xlane.xlu0 %1148
  %1150 = vadd.xlane.f32.xlu0 %v1145
  %v1151 = vpop.xlane.xlu0 %1150
  %v1152 = vmul.f32 %v1147, %v1136
  %v1153 = vmul.f32 %v1149, %v1136
  %v1154 = vmul.f32 %v1151, %v1136
  %v1155 = vadd.f32 %v1152, 1e-05
  %v1156 = vadd.f32 %v1153, 1e-05
  %v1157 = vadd.f32 %v1154, 1e-05
  %v1158 = vrsqrt.pop %v1155
  %v1159 = vrsqrt.pop %v1156
  %v1160 = vrsqrt.pop %v1157
  %v1161 = vmul.f32 %v1140, %v1158
  %v1162 = vmul.f32 %v1141, %v1159
  %v1163 = vmul.f32 %v1142, %v1160
  %1165 = vset.pattern.permute.xlu0 0
  %1166 = vperm.xlu0 %1165, %v1122
  %v1167 = vpop.permute.xlu0 %1166
  %1170 = vset.pattern.permute.xlu0 0
  %1171 = vperm.xlu0 %1170, %v1123
  %v1172 = vpop.permute.xlu0 %1171
  %1175 = vset.pattern.permute.xlu0 0
  %1176 = vperm.xlu0 %1175, %v1124
  %v1177 = vpop.permute.xlu0 %1176
  %v1179 = vmul.f32 %v1161, %v1167
  %v1180 = vmul.f32 %v1162, %v1172
  %v1181 = vmul.f32 %v1163, %v1177
  %1183 = vset.pattern.permute.xlu0 0
  %1184 = vperm.xlu0 %1183, %v1126
  %v1185 = vpop.permute.xlu0 %1184
  %1188 = vset.pattern.permute.xlu0 0
  %1189 = vperm.xlu0 %1188, %v1127
  %v1190 = vpop.permute.xlu0 %1189
  %1193 = vset.pattern.permute.xlu0 0
  %1194 = vperm.xlu0 %1193, %v1128
  %v1195 = vpop.permute.xlu0 %1194
  %v1197 = vadd.f32 %v1179, %v1185
  %v1198 = vadd.f32 %v1180, %v1190
  %v1199 = vadd.f32 %v1181, %v1195
  %v1200 = vmax.f32 %v1197, 0.0
  %v1201 = vmax.f32 %v1198, 0.0
  %v1202 = vmax.f32 %v1199, 0.0
  %1203 = vst [vmem:[%s6] sm:$0xff] %v1200
  %1204 = vst [vmem:[%s6 + $0x8] sm:$0xff] %v1201
  %1205 = vst [vmem:[%s6 + $0x10] sm:$0xff] %v1202
  %1206 = vadd.xlane.f32.xlu0 %v1119
  %v1207 = vpop.xlane.xlu0 %1206
  %v1208 = vmul.f32 %v1207, %v1136
  %v1209 = vsub.f32 %v1119, %v1208
  %v1210 = vmul.f32 %v1209, %v1209
  %1211 = vadd.xlane.f32.xlu0 %v1210
  %v1212 = vpop.xlane.xlu0 %1211
  %v1213 = vmul.f32 %v1212, %v1136
  %v1214 = vadd.f32 %v1213, 1e-05
  %v1215 = vrsqrt.pop %v1214
  %v1216 = vmul.f32 %v1209, %v1215
  %1218 = vset.pattern.permute.xlu0 0
  %1219 = vperm.xlu0 %1218, %v1125
  %v1220 = vpop.permute.xlu0 %1219
  %v1222 = vmul.f32 %v1216, %v1220
  %1224 = vset.pattern.permute.xlu0 0
  %1225 = vperm.xlu0 %1224, %v1129
  %v1226 = vpop.permute.xlu0 %1225
  %v1228 = vadd.f32 %v1222, %v1226
  %v1229 = vmax.f32 %v1228, 0.0
  %1230 = vst [vmem:[%s6 + $0x18] sm:$0xff] %v1229
  // Predicated region
  $region26: #{inception_block_forward.4} parent=0 // pred_check
    _
  $region27: #{inception_block_forward.4} parent=0 // pred_check_branch
    %1232 = sbr.rel (0) target = $region29
  $region28: #{inception_block_forward.4} parent=0 // pred_region
    _
  $region29: #{inception_block_forward.4} parent=0 // pred_fallthru
    _
  // Predicated region
  $region30: #{inception_block_forward.4} parent=0 // pred_check
    _
  $region31: #{inception_block_forward.4} parent=0 // pred_check_branch
    %1234 = sbr.rel (0) target = $region33
  $region32: #{inception_block_forward.4} parent=0 // pred_region
    _
  $region33: #{inception_block_forward.4} parent=0 // pred_fallthru
    _

// kernel: inception_block_forward.5
$region0: #{inception_block_forward.5}
  #allocation0 [shape = 'u32[]', space=smem, size = 0x4, offset = 0x4, fixed_abs, tag = 'smem constant byte address 0x4 - core index']
  #allocation1 [shape = 'u32[144,128]{1,0:T(1,128)}', space=vmem, size = 0x12000, scoped, tag = 'internal scratch']
  #allocation2 [shape = 'f32[8,204]{1,0:T(8,128)}', space=vmem, size = 0x2000, scoped, tag = 'scratch operand']
  #allocation3 [shape = 'f32[384,128]{1,0:T(8,128)}', space=vmem, size = 0x30000, scoped, tag = 'scratch operand']
  #allocation4 [shape = 'f32[32,66]{1,0:T(8,128)}', space=vmem, size = 0x4000, scoped, tag = 'scratch operand']
  #allocation5 [shape = 'f32[32,128]{1,0:T(8,128)}', space=vmem, size = 0x4000, scoped, tag = 'scratch operand']
  %s0 = inlined_call_operand.vmem [shape: f32[32,128], index: 0, kind: input, shape index: {}]
  %s1 = inlined_call_operand.vmem [shape: f32[8,32], index: 1, kind: input, shape index: {}]
  %s2 = inlined_call_operand.vmem [shape: f32[24,384], index: 2, kind: input, shape index: {}]
  %s3 = inlined_call_operand.vmem [shape: f32[8,32], index: 3, kind: input, shape index: {}]
  %s4 = inlined_call_operand.vmem [shape: f32[32,1], index: 4, kind: input, shape index: {}]
  %s5 = inlined_call_operand.vmem [shape: f32[32,1], index: 5, kind: input, shape index: {}]
  %s6 = inlined_call_operand.vmem [shape: f32[32,128], index: 6, kind: output, shape index: {}]
  %s7 = sld [smem:[#allocation0]]
  $region34: #{inception_block_forward.5} parent=0
    _
  %s9 = ssub.s32 1, %s7
  %s10 = scalar_select 0, %s9, %s7
  // Predicated region
  $region2: #{inception_block_forward.5} parent=0 // pred_check
    _
  $region3: #{inception_block_forward.5} parent=0 // pred_check_branch
    %12 = sbr.rel (0) target = $region5
  $region4: #{inception_block_forward.5} parent=0 // pred_region
    _
  $region5: #{inception_block_forward.5} parent=0 // pred_fallthru
    _
  // Predicated region
  $region6: #{inception_block_forward.5} parent=0 // pred_check
    _
  $region7: #{inception_block_forward.5} parent=0 // pred_check_branch
    %14 = sbr.rel (0) target = $region9
  $region8: #{inception_block_forward.5} parent=0 // pred_region
    _
  $region9: #{inception_block_forward.5} parent=0 // pred_fallthru
    _
  // Predicated region
  $region10: #{inception_block_forward.5} parent=0 // pred_check
    _
  $region11: #{inception_block_forward.5} parent=0 // pred_check_branch
    %16 = sbr.rel (0) target = $region13
  $region12: #{inception_block_forward.5} parent=0 // pred_region
    _
  $region13: #{inception_block_forward.5} parent=0 // pred_fallthru
    _
  // Predicated region
  $region14: #{inception_block_forward.5} parent=0 // pred_check
    _
  $region15: #{inception_block_forward.5} parent=0 // pred_check_branch
    %18 = sbr.rel (0) target = $region17
  $region16: #{inception_block_forward.5} parent=0 // pred_region
    _
  $region17: #{inception_block_forward.5} parent=0 // pred_fallthru
    _
  // Predicated region
  $region18: #{inception_block_forward.5} parent=0 // pred_check
    _
  $region19: #{inception_block_forward.5} parent=0 // pred_check_branch
    %20 = sbr.rel (0) target = $region21
  $region20: #{inception_block_forward.5} parent=0 // pred_region
    _
  $region21: #{inception_block_forward.5} parent=0 // pred_fallthru
    _
  // Predicated region
  $region22: #{inception_block_forward.5} parent=0 // pred_check
    _
  $region23: #{inception_block_forward.5} parent=0 // pred_check_branch
    %22 = sbr.rel (0) target = $region25
  $region24: #{inception_block_forward.5} parent=0 // pred_region
    _
  $region25: #{inception_block_forward.5} parent=0 // pred_fallthru
    _
  %23 = vst [vmem:[#allocation2] sm:$0xff] 0.0
  %vm24 = vcmask 621568
  %25 = vst.msk [vmem:[#allocation2 + $0x8] sm:$0xff] %vm24, 0.0
  %26 = vst [vmem:[#allocation3] sm:$0xff] 0.0
  %27 = vst [vmem:[#allocation3 + $0x8] sm:$0xff] 0.0
  %28 = vst [vmem:[#allocation3 + $0x10] sm:$0xff] 0.0
  %29 = vst [vmem:[#allocation3 + $0x18] sm:$0xff] 0.0
  %30 = vst [vmem:[#allocation3 + $0x20] sm:$0xff] 0.0
  %31 = vst [vmem:[#allocation3 + $0x28] sm:$0xff] 0.0
  %32 = vst [vmem:[#allocation3 + $0x30] sm:$0xff] 0.0
  %33 = vst [vmem:[#allocation3 + $0x38] sm:$0xff] 0.0
  %34 = vst [vmem:[#allocation3 + $0x40] sm:$0xff] 0.0
  %35 = vst [vmem:[#allocation3 + $0x48] sm:$0xff] 0.0
  %36 = vst [vmem:[#allocation3 + $0x50] sm:$0xff] 0.0
  %37 = vst [vmem:[#allocation3 + $0x58] sm:$0xff] 0.0
  %38 = vst [vmem:[#allocation3 + $0x60] sm:$0xff] 0.0
  %39 = vst [vmem:[#allocation3 + $0x68] sm:$0xff] 0.0
  %40 = vst [vmem:[#allocation3 + $0x70] sm:$0xff] 0.0
  %41 = vst [vmem:[#allocation3 + $0x78] sm:$0xff] 0.0
  %42 = vst [vmem:[#allocation3 + $0x80] sm:$0xff] 0.0
  %43 = vst [vmem:[#allocation3 + $0x88] sm:$0xff] 0.0
  %44 = vst [vmem:[#allocation3 + $0x90] sm:$0xff] 0.0
  %45 = vst [vmem:[#allocation3 + $0x98] sm:$0xff] 0.0
  %46 = vst [vmem:[#allocation3 + $0xa0] sm:$0xff] 0.0
  %47 = vst [vmem:[#allocation3 + $0xa8] sm:$0xff] 0.0
  %48 = vst [vmem:[#allocation3 + $0xb0] sm:$0xff] 0.0
  %49 = vst [vmem:[#allocation3 + $0xb8] sm:$0xff] 0.0
  %50 = vst [vmem:[#allocation3 + $0xc0] sm:$0xff] 0.0
  %51 = vst [vmem:[#allocation3 + $0xc8] sm:$0xff] 0.0
  %52 = vst [vmem:[#allocation3 + $0xd0] sm:$0xff] 0.0
  %53 = vst [vmem:[#allocation3 + $0xd8] sm:$0xff] 0.0
  %54 = vst [vmem:[#allocation3 + $0xe0] sm:$0xff] 0.0
  %55 = vst [vmem:[#allocation3 + $0xe8] sm:$0xff] 0.0
  %56 = vst [vmem:[#allocation3 + $0xf0] sm:$0xff] 0.0
  %57 = vst [vmem:[#allocation3 + $0xf8] sm:$0xff] 0.0
  %58 = vst [vmem:[#allocation3 + $0x100] sm:$0xff] 0.0
  %59 = vst [vmem:[#allocation3 + $0x108] sm:$0xff] 0.0
  %60 = vst [vmem:[#allocation3 + $0x110] sm:$0xff] 0.0
  %61 = vst [vmem:[#allocation3 + $0x118] sm:$0xff] 0.0
  %62 = vst [vmem:[#allocation3 + $0x120] sm:$0xff] 0.0
  %63 = vst [vmem:[#allocation3 + $0x128] sm:$0xff] 0.0
  %64 = vst [vmem:[#allocation3 + $0x130] sm:$0xff] 0.0
  %65 = vst [vmem:[#allocation3 + $0x138] sm:$0xff] 0.0
  %66 = vst [vmem:[#allocation3 + $0x140] sm:$0xff] 0.0
  %67 = vst [vmem:[#allocation3 + $0x148] sm:$0xff] 0.0
  %68 = vst [vmem:[#allocation3 + $0x150] sm:$0xff] 0.0
  %69 = vst [vmem:[#allocation3 + $0x158] sm:$0xff] 0.0
  %70 = vst [vmem:[#allocation3 + $0x160] sm:$0xff] 0.0
  %71 = vst [vmem:[#allocation3 + $0x168] sm:$0xff] 0.0
  %72 = vst [vmem:[#allocation3 + $0x170] sm:$0xff] 0.0
  %73 = vst [vmem:[#allocation3 + $0x178] sm:$0xff] 0.0
  %vm74 = vcmask 539648
  %75 = vst.msk [vmem:[#allocation4] sm:$0xff] %vm74, -inf
  %76 = vst.msk [vmem:[#allocation4 + $0x8] sm:$0xff] %vm74, -inf
  %77 = vst.msk [vmem:[#allocation4 + $0x10] sm:$0xff] %vm74, -inf
  %78 = vst.msk [vmem:[#allocation4 + $0x18] sm:$0xff] %vm74, -inf
  %v79 = vld [vmem:[%s0] sm:$0xff]
  %v80 = vld [vmem:[%s0 + $0x8] sm:$0xff]
  %v81 = vld [vmem:[%s0 + $0x10] sm:$0xff]
  %v82 = vld [vmem:[%s0 + $0x18] sm:$0xff]
  %v83 = vld [vmem:[%s1] sm:$0xff]
  %vm84 = vcmask 261120
  %v86 = vsel %vm84, %v83, 0
  %88 = vmatprep.subr.mxu0 0.0
  %89 = vmatpush1.msra.mxu0 %v79
  %90 = vmatprep.subr.mxu0 0.0
  %91 = vmatpush1.msra.mxu0 %v80
  %92 = vmatprep.subr.mxu0 0.0
  %93 = vmatpush1.msra.mxu0 %v81
  %94 = vmatprep.subr.mxu0 0.0
  %95 = vmatpush1.msra.mxu0 %v82
  %96 = vmatprep.subr.mxu0 0.0
  %97 = vmatpush1.msra.mxu0 0.0
  %98 = vmatprep.subr.mxu0 0.0
  %99 = vmatpush1.msra.mxu0 0.0
  %100 = vmatprep.subr.mxu0 0.0
  %101 = vmatpush1.msra.mxu0 0.0
  %102 = vmatprep.subr.mxu0 0.0
  %103 = vmatpush1.msra.mxu0 0.0
  %104 = vmatprep.subr.mxu0 0.0
  %105 = vmatpush1.msra.mxu0 0.0
  %106 = vmatprep.subr.mxu0 0.0
  %107 = vmatpush1.msra.mxu0 0.0
  %108 = vmatprep.subr.mxu0 0.0
  %109 = vmatpush1.msra.mxu0 0.0
  %110 = vmatprep.subr.mxu0 0.0
  %111 = vmatpush1.msra.mxu0 0.0
  %112 = vmatprep.subr.mxu0 0.0
  %113 = vmatpush1.msra.mxu0 0.0
  %114 = vmatprep.subr.mxu0 0.0
  %115 = vmatpush1.msra.mxu0 0.0
  %116 = vmatprep.subr.mxu0 0.0
  %117 = vmatpush1.msra.mxu0 0.0
  %118 = vmatprep.subr.mxu0 0.0
  %119 = vmatpush1.msra.mxu0 0.0
  %120 = vmatprep.subr.mxu0 0.0
  %121 = vmatpush1.msra.mxu0 0.0
  %122 = vmatprep.subr.mxu0 0.0
  %123 = vmatpush1.msra.mxu0 0.0
  %124 = vmatprep.subr.mxu0 0.0
  %125 = vmatpush1.msra.mxu0 0.0
  %126 = vmatprep.subr.mxu0 0.0
  %127 = vmatpush1.msra.mxu0 0.0
  %128 = vmatprep.subr.mxu0 0.0
  %129 = vmatpush1.msra.mxu0 0.0
  %130 = vmatprep.subr.mxu0 0.0
  %131 = vmatpush1.msra.mxu0 0.0
  %132 = vmatprep.subr.mxu0 0.0
  %133 = vmatpush1.msra.mxu0 0.0
  %134 = vmatprep.subr.mxu0 0.0
  %135 = vmatpush1.msra.mxu0 0.0
  %136 = vmatprep.subr.mxu0 0.0
  %137 = vmatpush1.msra.mxu0 0.0
  %138 = vmatprep.subr.mxu0 0.0
  %139 = vmatpush1.msra.mxu0 0.0
  %140 = vmatprep.subr.mxu0 0.0
  %141 = vmatpush1.msra.mxu0 0.0
  %142 = vmatprep.subr.mxu0 0.0
  %143 = vmatpush1.msra.mxu0 0.0
  %144 = vmatprep.subr.mxu0 0.0
  %145 = vmatpush1.msra.mxu0 0.0
  %146 = vmatprep.subr.mxu0 0.0
  %147 = vmatpush1.msra.mxu0 0.0
  %148 = vmatprep.subr.mxu0 0.0
  %149 = vmatpush1.msra.mxu0 0.0
  %150 = vmatprep.subr.mxu0 0.0
  %151 = vmatpush1.msra.mxu0 0.0
  %152 = vmatprep.mubr.f32.mxu0 0.0
  %153 = vmatmul.mubr.f32.gmra.mrb[0].mxu0 %v86
  %v154 = vpop.f32.mrb[0].mxu0
  %v155 = vadd.f32 0.0, %v154
  %v156 = vpop.f32.mrb[0].mxu0
  %157 = vdwg.mxu0
  %159 = vrot.lane.b32.xlu0 %v155, 19
  %v160 = vpop.permute.xlu0 %159
  %vm162 = vcmask 679064
  %163 = vst.msk [vmem:[#allocation2] sm:$0xff] %vm162, %v160
  %164 = vrot.lane.b32.xlu0 %v155, 57
  %v165 = vpop.permute.xlu0 %164
  %vm167 = vcmask 1048520
  %168 = vst.msk [vmem:[#allocation2] sm:$0xff] %vm167, %v165
  %vm169 = vcmask 465920
  %170 = vst.msk [vmem:[#allocation2 + $0x8] sm:$0xff] %vm169, %v165
  %v171 = vld [vmem:[#allocation2] sm:$0xff]
  %vm172 = vcmask 523264
  %173 = vst.msk [vmem:[#allocation3] sm:$0xff] %vm172, %v171
  %v174 = vld [vmem:[#allocation2] sm:$0xff]
  %176 = vrot.lane.b32.xlu0 %v174, 127
  %v177 = vpop.permute.xlu0 %176
  %179 = vst.msk [vmem:[#allocation3 + $0x8] sm:$0xff] %vm172, %v177
  %v180 = vld [vmem:[#allocation2] sm:$0xff]
  %182 = vrot.lane.b32.xlu0 %v180, 126
  %v183 = vpop.permute.xlu0 %182
  %185 = vst.msk [vmem:[#allocation3 + $0x10] sm:$0xff] %vm172, %v183
  %v186 = vld [vmem:[#allocation2] sm:$0xff]
  %188 = vrot.lane.b32.xlu0 %v186, 125
  %v189 = vpop.permute.xlu0 %188
  %191 = vst.msk [vmem:[#allocation3 + $0x18] sm:$0xff] %vm172, %v189
  %v192 = vld [vmem:[#allocation2] sm:$0xff]
  %194 = vrot.lane.b32.xlu0 %v192, 124
  %v195 = vpop.permute.xlu0 %194
  %197 = vst.msk [vmem:[#allocation3 + $0x20] sm:$0xff] %vm172, %v195
  %v198 = vld [vmem:[#allocation2] sm:$0xff]
  %200 = vrot.lane.b32.xlu0 %v198, 123
  %v201 = vpop.permute.xlu0 %200
  %203 = vst.msk [vmem:[#allocation3 + $0x28] sm:$0xff] %vm172, %v201
  %v204 = vld [vmem:[#allocation2] sm:$0xff]
  %206 = vrot.lane.b32.xlu0 %v204, 122
  %v207 = vpop.permute.xlu0 %206
  %209 = vst.msk [vmem:[#allocation3 + $0x30] sm:$0xff] %vm172, %v207
  %v210 = vld [vmem:[#allocation2] sm:$0xff]
  %212 = vrot.lane.b32.xlu0 %v210, 121
  %v213 = vpop.permute.xlu0 %212
  %215 = vst.msk [vmem:[#allocation3 + $0x38] sm:$0xff] %vm172, %v213
  %v216 = vld [vmem:[#allocation2] sm:$0xff]
  %218 = vrot.lane.b32.xlu0 %v216, 120
  %v219 = vpop.permute.xlu0 %218
  %221 = vst.msk [vmem:[#allocation3 + $0x40] sm:$0xff] %vm172, %v219
  %v222 = vld [vmem:[#allocation2] sm:$0xff]
  %224 = vrot.lane.b32.xlu0 %v222, 119
  %v225 = vpop.permute.xlu0 %224
  %227 = vst.msk [vmem:[#allocation3 + $0x48] sm:$0xff] %vm172, %v225
  %v228 = vld [vmem:[#allocation2] sm:$0xff]
  %230 = vrot.lane.b32.xlu0 %v228, 118
  %v231 = vpop.permute.xlu0 %230
  %233 = vst.msk [vmem:[#allocation3 + $0x50] sm:$0xff] %vm172, %v231
  %v234 = vld [vmem:[#allocation2] sm:$0xff]
  %236 = vrot.lane.b32.xlu0 %v234, 117
  %v237 = vpop.permute.xlu0 %236
  %239 = vst.msk [vmem:[#allocation3 + $0x58] sm:$0xff] %vm172, %v237
  %v240 = vld [vmem:[#allocation2] sm:$0xff]
  %242 = vrot.lane.b32.xlu0 %v240, 116
  %v243 = vpop.permute.xlu0 %242
  %245 = vst.msk [vmem:[#allocation3 + $0x60] sm:$0xff] %vm172, %v243
  %v246 = vld [vmem:[#allocation2] sm:$0xff]
  %248 = vrot.lane.b32.xlu0 %v246, 115
  %v249 = vpop.permute.xlu0 %248
  %251 = vst.msk [vmem:[#allocation3 + $0x68] sm:$0xff] %vm172, %v249
  %v252 = vld [vmem:[#allocation2] sm:$0xff]
  %254 = vrot.lane.b32.xlu0 %v252, 114
  %v255 = vpop.permute.xlu0 %254
  %257 = vst.msk [vmem:[#allocation3 + $0x70] sm:$0xff] %vm172, %v255
  %v258 = vld [vmem:[#allocation2] sm:$0xff]
  %260 = vrot.lane.b32.xlu0 %v258, 113
  %v261 = vpop.permute.xlu0 %260
  %263 = vst.msk [vmem:[#allocation3 + $0x78] sm:$0xff] %vm172, %v261
  %v264 = vld [vmem:[#allocation2] sm:$0xff]
  %266 = vrot.lane.b32.xlu0 %v264, 112
  %v267 = vpop.permute.xlu0 %266
  %269 = vst.msk [vmem:[#allocation3 + $0x80] sm:$0xff] %vm172, %v267
  %v270 = vld [vmem:[#allocation2] sm:$0xff]
  %272 = vrot.lane.b32.xlu0 %v270, 111
  %v273 = vpop.permute.xlu0 %272
  %275 = vst.msk [vmem:[#allocation3 + $0x88] sm:$0xff] %vm172, %v273
  %v276 = vld [vmem:[#allocation2] sm:$0xff]
  %278 = vrot.lane.b32.xlu0 %v276, 110
  %v279 = vpop.permute.xlu0 %278
  %281 = vst.msk [vmem:[#allocation3 + $0x90] sm:$0xff] %vm172, %v279
  %v282 = vld [vmem:[#allocation2] sm:$0xff]
  %284 = vrot.lane.b32.xlu0 %v282, 109
  %v285 = vpop.permute.xlu0 %284
  %287 = vst.msk [vmem:[#allocation3 + $0x98] sm:$0xff] %vm172, %v285
  %v288 = vld [vmem:[#allocation2] sm:$0xff]
  %290 = vrot.lane.b32.xlu0 %v288, 108
  %v291 = vpop.permute.xlu0 %290
  %293 = vst.msk [vmem:[#allocation3 + $0xa0] sm:$0xff] %vm172, %v291
  %v294 = vld [vmem:[#allocation2] sm:$0xff]
  %296 = vrot.lane.b32.xlu0 %v294, 107
  %v297 = vpop.permute.xlu0 %296
  %299 = vst.msk [vmem:[#allocation3 + $0xa8] sm:$0xff] %vm172, %v297
  %v300 = vld [vmem:[#allocation2] sm:$0xff]
  %302 = vrot.lane.b32.xlu0 %v300, 106
  %v303 = vpop.permute.xlu0 %302
  %305 = vst.msk [vmem:[#allocation3 + $0xb0] sm:$0xff] %vm172, %v303
  %v306 = vld [vmem:[#allocation2] sm:$0xff]
  %308 = vrot.lane.b32.xlu0 %v306, 105
  %v309 = vpop.permute.xlu0 %308
  %311 = vst.msk [vmem:[#allocation3 + $0xb8] sm:$0xff] %vm172, %v309
  %v312 = vld [vmem:[#allocation2] sm:$0xff]
  %314 = vrot.lane.b32.xlu0 %v312, 104
  %v315 = vpop.permute.xlu0 %314
  %317 = vst.msk [vmem:[#allocation3 + $0xc0] sm:$0xff] %vm172, %v315
  %v318 = vld [vmem:[#allocation2] sm:$0xff]
  %320 = vrot.lane.b32.xlu0 %v318, 103
  %v321 = vpop.permute.xlu0 %320
  %323 = vst.msk [vmem:[#allocation3 + $0xc8] sm:$0xff] %vm172, %v321
  %v324 = vld [vmem:[#allocation2] sm:$0xff]
  %326 = vrot.lane.b32.xlu0 %v324, 102
  %v327 = vpop.permute.xlu0 %326
  %329 = vst.msk [vmem:[#allocation3 + $0xd0] sm:$0xff] %vm172, %v327
  %v330 = vld [vmem:[#allocation2] sm:$0xff]
  %332 = vrot.lane.b32.xlu0 %v330, 101
  %v333 = vpop.permute.xlu0 %332
  %335 = vst.msk [vmem:[#allocation3 + $0xd8] sm:$0xff] %vm172, %v333
  %v336 = vld [vmem:[#allocation2] sm:$0xff]
  %338 = vrot.lane.b32.xlu0 %v336, 100
  %v339 = vpop.permute.xlu0 %338
  %341 = vst.msk [vmem:[#allocation3 + $0xe0] sm:$0xff] %vm172, %v339
  %v342 = vld [vmem:[#allocation2] sm:$0xff]
  %344 = vrot.lane.b32.xlu0 %v342, 99
  %v345 = vpop.permute.xlu0 %344
  %347 = vst.msk [vmem:[#allocation3 + $0xe8] sm:$0xff] %vm172, %v345
  %v348 = vld [vmem:[#allocation2] sm:$0xff]
  %350 = vrot.lane.b32.xlu0 %v348, 98
  %v351 = vpop.permute.xlu0 %350
  %353 = vst.msk [vmem:[#allocation3 + $0xf0] sm:$0xff] %vm172, %v351
  %v354 = vld [vmem:[#allocation2] sm:$0xff]
  %356 = vrot.lane.b32.xlu0 %v354, 97
  %v357 = vpop.permute.xlu0 %356
  %359 = vst.msk [vmem:[#allocation3 + $0xf8] sm:$0xff] %vm172, %v357
  %v360 = vld [vmem:[#allocation2] sm:$0xff]
  %362 = vrot.lane.b32.xlu0 %v360, 96
  %v363 = vpop.permute.xlu0 %362
  %365 = vst.msk [vmem:[#allocation3 + $0x100] sm:$0xff] %vm172, %v363
  %v366 = vld [vmem:[#allocation2] sm:$0xff]
  %368 = vrot.lane.b32.xlu0 %v366, 95
  %v369 = vpop.permute.xlu0 %368
  %371 = vst.msk [vmem:[#allocation3 + $0x108] sm:$0xff] %vm172, %v369
  %v372 = vld [vmem:[#allocation2] sm:$0xff]
  %374 = vrot.lane.b32.xlu0 %v372, 94
  %v375 = vpop.permute.xlu0 %374
  %377 = vst.msk [vmem:[#allocation3 + $0x110] sm:$0xff] %vm172, %v375
  %v378 = vld [vmem:[#allocation2] sm:$0xff]
  %380 = vrot.lane.b32.xlu0 %v378, 93
  %v381 = vpop.permute.xlu0 %380
  %383 = vst.msk [vmem:[#allocation3 + $0x118] sm:$0xff] %vm172, %v381
  %v384 = vld [vmem:[#allocation2] sm:$0xff]
  %386 = vrot.lane.b32.xlu0 %v384, 92
  %v387 = vpop.permute.xlu0 %386
  %389 = vst.msk [vmem:[#allocation3 + $0x120] sm:$0xff] %vm172, %v387
  %v390 = vld [vmem:[#allocation2] sm:$0xff]
  %392 = vrot.lane.b32.xlu0 %v390, 91
  %v393 = vpop.permute.xlu0 %392
  %395 = vst.msk [vmem:[#allocation3 + $0x128] sm:$0xff] %vm172, %v393
  %v396 = vld [vmem:[#allocation2] sm:$0xff]
  %398 = vrot.lane.b32.xlu0 %v396, 90
  %v399 = vpop.permute.xlu0 %398
  %401 = vst.msk [vmem:[#allocation3 + $0x130] sm:$0xff] %vm172, %v399
  %v402 = vld [vmem:[#allocation2] sm:$0xff]
  %v403 = vld [vmem:[#allocation2 + $0x8] sm:$0xff]
  %406 = vrot.lane.b32.xlu0 %v402, 90
  %v407 = vpop.permute.xlu0 %406
  %408 = vrot.lane.b32.xlu0 %v403, 90
  %v409 = vpop.permute.xlu0 %408
  %vm410 = vcmask 736256
  %v411 = vsel %vm410, %v407, %v409
  %vm413 = vcmask 1048064
  %414 = vst.msk [vmem:[#allocation3] sm:$0xff] %vm413, %v411
  %v415 = vld [vmem:[#allocation2] sm:$0xff]
  %v416 = vld [vmem:[#allocation2 + $0x8] sm:$0xff]
  %419 = vrot.lane.b32.xlu0 %v415, 89
  %v420 = vpop.permute.xlu0 %419
  %421 = vrot.lane.b32.xlu0 %v416, 89
  %v422 = vpop.permute.xlu0 %421
  %vm423 = vcmask 728064
  %v424 = vsel %vm423, %v420, %v422
  %426 = vst.msk [vmem:[#allocation3 + $0x8] sm:$0xff] %vm413, %v424
  %v427 = vld [vmem:[#allocation2] sm:$0xff]
  %v428 = vld [vmem:[#allocation2 + $0x8] sm:$0xff]
  %431 = vrot.lane.b32.xlu0 %v427, 88
  %v432 = vpop.permute.xlu0 %431
  %433 = vrot.lane.b32.xlu0 %v428, 88
  %v434 = vpop.permute.xlu0 %433
  %vm435 = vcmask 719872
  %v436 = vsel %vm435, %v432, %v434
  %438 = vst.msk [vmem:[#allocation3 + $0x10] sm:$0xff] %vm413, %v436
  %v439 = vld [vmem:[#allocation2] sm:$0xff]
  %v440 = vld [vmem:[#allocation2 + $0x8] sm:$0xff]
  %443 = vrot.lane.b32.xlu0 %v439, 87
  %v444 = vpop.permute.xlu0 %443
  %445 = vrot.lane.b32.xlu0 %v440, 87
  %v446 = vpop.permute.xlu0 %445
  %vm447 = vcmask 711680
  %v448 = vsel %vm447, %v444, %v446
  %450 = vst.msk [vmem:[#allocation3 + $0x18] sm:$0xff] %vm413, %v448
  %v451 = vld [vmem:[#allocation2] sm:$0xff]
  %v452 = vld [vmem:[#allocation2 + $0x8] sm:$0xff]
  %455 = vrot.lane.b32.xlu0 %v451, 86
  %v456 = vpop.permute.xlu0 %455
  %457 = vrot.lane.b32.xlu0 %v452, 86
  %v458 = vpop.permute.xlu0 %457
  %vm459 = vcmask 703488
  %v460 = vsel %vm459, %v456, %v458
  %462 = vst.msk [vmem:[#allocation3 + $0x20] sm:$0xff] %vm413, %v460
  %v463 = vld [vmem:[#allocation2] sm:$0xff]
  %v464 = vld [vmem:[#allocation2 + $0x8] sm:$0xff]
  %467 = vrot.lane.b32.xlu0 %v463, 85
  %v468 = vpop.permute.xlu0 %467
  %469 = vrot.lane.b32.xlu0 %v464, 85
  %v470 = vpop.permute.xlu0 %469
  %vm471 = vcmask 695296
  %v472 = vsel %vm471, %v468, %v470
  %474 = vst.msk [vmem:[#allocation3 + $0x28] sm:$0xff] %vm413, %v472
  %v475 = vld [vmem:[#allocation2] sm:$0xff]
  %v476 = vld [vmem:[#allocation2 + $0x8] sm:$0xff]
  %479 = vrot.lane.b32.xlu0 %v475, 84
  %v480 = vpop.permute.xlu0 %479
  %481 = vrot.lane.b32.xlu0 %v476, 84
  %v482 = vpop.permute.xlu0 %481
  %vm483 = vcmask 687104
  %v484 = vsel %vm483, %v480, %v482
  %486 = vst.msk [vmem:[#allocation3 + $0x30] sm:$0xff] %vm413, %v484
  %v487 = vld [vmem:[#allocation2] sm:$0xff]
  %v488 = vld [vmem:[#allocation2 + $0x8] sm:$0xff]
  %491 = vrot.lane.b32.xlu0 %v487, 83
  %v492 = vpop.permute.xlu0 %491
  %493 = vrot.lane.b32.xlu0 %v488, 83
  %v494 = vpop.permute.xlu0 %493
  %vm495 = vcmask 678912
  %v496 = vsel %vm495, %v492, %v494
  %498 = vst.msk [vmem:[#allocation3 + $0x38] sm:$0xff] %vm413, %v496
  %v499 = vld [vmem:[#allocation2] sm:$0xff]
  %v500 = vld [vmem:[#allocation2 + $0x8] sm:$0xff]
  %503 = vrot.lane.b32.xlu0 %v499, 82
  %v504 = vpop.permute.xlu0 %503
  %505 = vrot.lane.b32.xlu0 %v500, 82
  %v506 = vpop.permute.xlu0 %505
  %vm507 = vcmask 670720
  %v508 = vsel %vm507, %v504, %v506
  %510 = vst.msk [vmem:[#allocation3 + $0x40] sm:$0xff] %vm413, %v508
  %v511 = vld [vmem:[#allocation2] sm:$0xff]
  %v512 = vld [vmem:[#allocation2 + $0x8] sm:$0xff]
  %515 = vrot.lane.b32.xlu0 %v511, 81
  %v516 = vpop.permute.xlu0 %515
  %517 = vrot.lane.b32.xlu0 %v512, 81
  %v518 = vpop.permute.xlu0 %517
  %vm519 = vcmask 662528
  %v520 = vsel %vm519, %v516, %v518
  %522 = vst.msk [vmem:[#allocation3 + $0x48] sm:$0xff] %vm413, %v520
  %v523 = vld [vmem:[#allocation2] sm:$0xff]
  %v524 = vld [vmem:[#allocation2 + $0x8] sm:$0xff]
  %527 = vrot.lane.b32.xlu0 %v523, 80
  %v528 = vpop.permute.xlu0 %527
  %529 = vrot.lane.b32.xlu0 %v524, 80
  %v530 = vpop.permute.xlu0 %529
  %vm531 = vcmask 654336
  %v532 = vsel %vm531, %v528, %v530
  %534 = vst.msk [vmem:[#allocation3 + $0x50] sm:$0xff] %vm413, %v532
  %v535 = vld [vmem:[#allocation2] sm:$0xff]
  %v536 = vld [vmem:[#allocation2 + $0x8] sm:$0xff]
  %539 = vrot.lane.b32.xlu0 %v535, 79
  %v540 = vpop.permute.xlu0 %539
  %541 = vrot.lane.b32.xlu0 %v536, 79
  %v542 = vpop.permute.xlu0 %541
  %vm543 = vcmask 646144
  %v544 = vsel %vm543, %v540, %v542
  %546 = vst.msk [vmem:[#allocation3 + $0x58] sm:$0xff] %vm413, %v544
  %v547 = vld [vmem:[#allocation2] sm:$0xff]
  %v548 = vld [vmem:[#allocation2 + $0x8] sm:$0xff]
  %551 = vrot.lane.b32.xlu0 %v547, 78
  %v552 = vpop.permute.xlu0 %551
  %553 = vrot.lane.b32.xlu0 %v548, 78
  %v554 = vpop.permute.xlu0 %553
  %vm555 = vcmask 637952
  %v556 = vsel %vm555, %v552, %v554
  %558 = vst.msk [vmem:[#allocation3 + $0x60] sm:$0xff] %vm413, %v556
  %v559 = vld [vmem:[#allocation2] sm:$0xff]
  %v560 = vld [vmem:[#allocation2 + $0x8] sm:$0xff]
  %563 = vrot.lane.b32.xlu0 %v559, 77
  %v564 = vpop.permute.xlu0 %563
  %565 = vrot.lane.b32.xlu0 %v560, 77
  %v566 = vpop.permute.xlu0 %565
  %vm567 = vcmask 629760
  %v568 = vsel %vm567, %v564, %v566
  %570 = vst.msk [vmem:[#allocation3 + $0x68] sm:$0xff] %vm413, %v568
  %v571 = vld [vmem:[#allocation2] sm:$0xff]
  %v572 = vld [vmem:[#allocation2 + $0x8] sm:$0xff]
  %575 = vrot.lane.b32.xlu0 %v571, 76
  %v576 = vpop.permute.xlu0 %575
  %577 = vrot.lane.b32.xlu0 %v572, 76
  %v578 = vpop.permute.xlu0 %577
  %v579 = vsel %vm24, %v576, %v578
  %581 = vst.msk [vmem:[#allocation3 + $0x70] sm:$0xff] %vm413, %v579
  %v582 = vld [vmem:[#allocation2] sm:$0xff]
  %v583 = vld [vmem:[#allocation2 + $0x8] sm:$0xff]
  %586 = vrot.lane.b32.xlu0 %v582, 75
  %v587 = vpop.permute.xlu0 %586
  %588 = vrot.lane.b32.xlu0 %v583, 75
  %v589 = vpop.permute.xlu0 %588
  %vm590 = vcmask 613376
  %v591 = vsel %vm590, %v587, %v589
  %593 = vst.msk [vmem:[#allocation3 + $0x78] sm:$0xff] %vm413, %v591
  %v594 = vld [vmem:[#allocation2] sm:$0xff]
  %v595 = vld [vmem:[#allocation2 + $0x8] sm:$0xff]
  %598 = vrot.lane.b32.xlu0 %v594, 74
  %v599 = vpop.permute.xlu0 %598
  %600 = vrot.lane.b32.xlu0 %v595, 74
  %v601 = vpop.permute.xlu0 %600
  %vm602 = vcmask 605184
  %v603 = vsel %vm602, %v599, %v601
  %605 = vst.msk [vmem:[#allocation3 + $0x80] sm:$0xff] %vm413, %v603
  %v606 = vld [vmem:[#allocation2] sm:$0xff]
  %v607 = vld [vmem:[#allocation2 + $0x8] sm:$0xff]
  %610 = vrot.lane.b32.xlu0 %v606, 73
  %v611 = vpop.permute.xlu0 %610
  %612 = vrot.lane.b32.xlu0 %v607, 73
  %v613 = vpop.permute.xlu0 %612
  %vm614 = vcmask 596992
  %v615 = vsel %vm614, %v611, %v613
  %617 = vst.msk [vmem:[#allocation3 + $0x88] sm:$0xff] %vm413, %v615
  %v618 = vld [vmem:[#allocation2] sm:$0xff]
  %v619 = vld [vmem:[#allocation2 + $0x8] sm:$0xff]
  %622 = vrot.lane.b32.xlu0 %v618, 72
  %v623 = vpop.permute.xlu0 %622
  %624 = vrot.lane.b32.xlu0 %v619, 72
  %v625 = vpop.permute.xlu0 %624
  %vm626 = vcmask 588800
  %v627 = vsel %vm626, %v623, %v625
  %629 = vst.msk [vmem:[#allocation3 + $0x90] sm:$0xff] %vm413, %v627
  %v630 = vld [vmem:[#allocation2] sm:$0xff]
  %v631 = vld [vmem:[#allocation2 + $0x8] sm:$0xff]
  %634 = vrot.lane.b32.xlu0 %v630, 71
  %v635 = vpop.permute.xlu0 %634
  %636 = vrot.lane.b32.xlu0 %v631, 71
  %v637 = vpop.permute.xlu0 %636
  %vm638 = vcmask 580608
  %v639 = vsel %vm638, %v635, %v637
  %641 = vst.msk [vmem:[#allocation3 + $0x98] sm:$0xff] %vm413, %v639
  %v642 = vld [vmem:[#allocation2] sm:$0xff]
  %v643 = vld [vmem:[#allocation2 + $0x8] sm:$0xff]
  %646 = vrot.lane.b32.xlu0 %v642, 70
  %v647 = vpop.permute.xlu0 %646
  %648 = vrot.lane.b32.xlu0 %v643, 70
  %v649 = vpop.permute.xlu0 %648
  %vm650 = vcmask 572416
  %v651 = vsel %vm650, %v647, %v649
  %653 = vst.msk [vmem:[#allocation3 + $0xa0] sm:$0xff] %vm413, %v651
  %v654 = vld [vmem:[#allocation2] sm:$0xff]
  %v655 = vld [vmem:[#allocation2 + $0x8] sm:$0xff]
  %658 = vrot.lane.b32.xlu0 %v654, 69
  %v659 = vpop.permute.xlu0 %658
  %660 = vrot.lane.b32.xlu0 %v655, 69
  %v661 = vpop.permute.xlu0 %660
  %vm662 = vcmask 564224
  %v663 = vsel %vm662, %v659, %v661
  %665 = vst.msk [vmem:[#allocation3 + $0xa8] sm:$0xff] %vm413, %v663
  %v666 = vld [vmem:[#allocation2] sm:$0xff]
  %v667 = vld [vmem:[#allocation2 + $0x8] sm:$0xff]
  %670 = vrot.lane.b32.xlu0 %v666, 68
  %v671 = vpop.permute.xlu0 %670
  %672 = vrot.lane.b32.xlu0 %v667, 68
  %v673 = vpop.permute.xlu0 %672
  %vm674 = vcmask 556032
  %v675 = vsel %vm674, %v671, %v673
  %677 = vst.msk [vmem:[#allocation3 + $0xb0] sm:$0xff] %vm413, %v675
  %v678 = vld [vmem:[#allocation2] sm:$0xff]
  %v679 = vld [vmem:[#allocation2 + $0x8] sm:$0xff]
  %682 = vrot.lane.b32.xlu0 %v678, 67
  %v683 = vpop.permute.xlu0 %682
  %684 = vrot.lane.b32.xlu0 %v679, 67
  %v685 = vpop.permute.xlu0 %684
  %vm686 = vcmask 547840
  %v687 = vsel %vm686, %v683, %v685
  %689 = vst.msk [vmem:[#allocation3 + $0xb8] sm:$0xff] %vm413, %v687
  %v690 = vld [vmem:[#allocation2] sm:$0xff]
  %v691 = vld [vmem:[#allocation2 + $0x8] sm:$0xff]
  %694 = vrot.lane.b32.xlu0 %v690, 66
  %v695 = vpop.permute.xlu0 %694
  %696 = vrot.lane.b32.xlu0 %v691, 66
  %v697 = vpop.permute.xlu0 %696
  %v698 = vsel %vm74, %v695, %v697
  %700 = vst.msk [vmem:[#allocation3 + $0xc0] sm:$0xff] %vm413, %v698
  %v701 = vld [vmem:[#allocation2] sm:$0xff]
  %v702 = vld [vmem:[#allocation2 + $0x8] sm:$0xff]
  %705 = vrot.lane.b32.xlu0 %v701, 65
  %v706 = vpop.permute.xlu0 %705
  %707 = vrot.lane.b32.xlu0 %v702, 65
  %v708 = vpop.permute.xlu0 %707
  %vm709 = vcmask 531456
  %v710 = vsel %vm709, %v706, %v708
  %712 = vst.msk [vmem:[#allocation3 + $0xc8] sm:$0xff] %vm413, %v710
  %v713 = vld [vmem:[#allocation2 + $0x8] sm:$0xff]
  %715 = vrot.lane.b32.xlu0 %v713, 64
  %v716 = vpop.permute.xlu0 %715
  %718 = vst.msk [vmem:[#allocation3 + $0xd0] sm:$0xff] %vm413, %v716
  %v719 = vld [vmem:[#allocation2 + $0x8] sm:$0xff]
  %721 = vrot.lane.b32.xlu0 %v719, 63
  %v722 = vpop.permute.xlu0 %721
  %724 = vst.msk [vmem:[#allocation3 + $0xd8] sm:$0xff] %vm413, %v722
  %v725 = vld [vmem:[#allocation2 + $0x8] sm:$0xff]
  %727 = vrot.lane.b32.xlu0 %v725, 62
  %v728 = vpop.permute.xlu0 %727
  %730 = vst.msk [vmem:[#allocation3 + $0xe0] sm:$0xff] %vm413, %v728
  %v731 = vld [vmem:[#allocation2 + $0x8] sm:$0xff]
  %733 = vrot.lane.b32.xlu0 %v731, 61
  %v734 = vpop.permute.xlu0 %733
  %736 = vst.msk [vmem:[#allocation3 + $0xe8] sm:$0xff] %vm413, %v734
  %v737 = vld [vmem:[#allocation2 + $0x8] sm:$0xff]
  %739 = vrot.lane.b32.xlu0 %v737, 60
  %v740 = vpop.permute.xlu0 %739
  %742 = vst.msk [vmem:[#allocation3 + $0xf0] sm:$0xff] %vm413, %v740
  %v743 = vld [vmem:[#allocation2 + $0x8] sm:$0xff]
  %745 = vrot.lane.b32.xlu0 %v743, 59
  %v746 = vpop.permute.xlu0 %745
  %748 = vst.msk [vmem:[#allocation3 + $0xf8] sm:$0xff] %vm413, %v746
  %v749 = vld [vmem:[#allocation2 + $0x8] sm:$0xff]
  %751 = vrot.lane.b32.xlu0 %v749, 58
  %v752 = vpop.permute.xlu0 %751
  %754 = vst.msk [vmem:[#allocation3 + $0x100] sm:$0xff] %vm413, %v752
  %v755 = vld [vmem:[#allocation2 + $0x8] sm:$0xff]
  %757 = vrot.lane.b32.xlu0 %v755, 57
  %v758 = vpop.permute.xlu0 %757
  %760 = vst.msk [vmem:[#allocation3 + $0x108] sm:$0xff] %vm413, %v758
  %v761 = vld [vmem:[#allocation2 + $0x8] sm:$0xff]
  %763 = vrot.lane.b32.xlu0 %v761, 56
  %v764 = vpop.permute.xlu0 %763
  %766 = vst.msk [vmem:[#allocation3 + $0x110] sm:$0xff] %vm413, %v764
  %v767 = vld [vmem:[#allocation2 + $0x8] sm:$0xff]
  %769 = vrot.lane.b32.xlu0 %v767, 55
  %v770 = vpop.permute.xlu0 %769
  %772 = vst.msk [vmem:[#allocation3 + $0x118] sm:$0xff] %vm413, %v770
  %v773 = vld [vmem:[#allocation2 + $0x8] sm:$0xff]
  %775 = vrot.lane.b32.xlu0 %v773, 54
  %v776 = vpop.permute.xlu0 %775
  %778 = vst.msk [vmem:[#allocation3 + $0x120] sm:$0xff] %vm413, %v776
  %v779 = vld [vmem:[#allocation2 + $0x8] sm:$0xff]
  %781 = vrot.lane.b32.xlu0 %v779, 53
  %v782 = vpop.permute.xlu0 %781
  %784 = vst.msk [vmem:[#allocation3 + $0x128] sm:$0xff] %vm413, %v782
  %v785 = vld [vmem:[#allocation2 + $0x8] sm:$0xff]
  %787 = vrot.lane.b32.xlu0 %v785, 52
  %v788 = vpop.permute.xlu0 %787
  %790 = vst.msk [vmem:[#allocation3 + $0x130] sm:$0xff] %vm413, %v788
  %v791 = vld [vmem:[%s2] sm:$0xff]
  %v792 = vld [vmem:[%s2 + $0x8] sm:$0xff]
  %v793 = vld [vmem:[%s2 + $0x10] sm:$0xff]
  %v794 = vld [vmem:[%s2 + $0x18] sm:$0xff]
  %v795 = vld [vmem:[%s2 + $0x20] sm:$0xff]
  %v796 = vld [vmem:[%s2 + $0x28] sm:$0xff]
  %v797 = vld [vmem:[%s2 + $0x30] sm:$0xff]
  %v798 = vld [vmem:[%s2 + $0x38] sm:$0xff]
  %v799 = vld [vmem:[%s2 + $0x40] sm:$0xff]
  %v800 = vld [vmem:[#allocation3] sm:$0xff]
  %v801 = vld [vmem:[#allocation3 + $0x8] sm:$0xff]
  %v802 = vld [vmem:[#allocation3 + $0x10] sm:$0xff]
  %v803 = vld [vmem:[#allocation3 + $0x18] sm:$0xff]
  %v804 = vld [vmem:[#allocation3 + $0x20] sm:$0xff]
  %v805 = vld [vmem:[#allocation3 + $0x28] sm:$0xff]
  %v806 = vld [vmem:[#allocation3 + $0x30] sm:$0xff]
  %v807 = vld [vmem:[#allocation3 + $0x38] sm:$0xff]
  %v808 = vld [vmem:[#allocation3 + $0x40] sm:$0xff]
  %v809 = vld [vmem:[#allocation3 + $0x48] sm:$0xff]
  %v810 = vld [vmem:[#allocation3 + $0x50] sm:$0xff]
  %v811 = vld [vmem:[#allocation3 + $0x58] sm:$0xff]
  %v812 = vld [vmem:[#allocation3 + $0x60] sm:$0xff]
  %v813 = vld [vmem:[#allocation3 + $0x68] sm:$0xff]
  %v814 = vld [vmem:[#allocation3 + $0x70] sm:$0xff]
  %v815 = vld [vmem:[#allocation3 + $0x78] sm:$0xff]
  %v816 = vld [vmem:[#allocation3 + $0x80] sm:$0xff]
  %v817 = vld [vmem:[#allocation3 + $0x88] sm:$0xff]
  %v818 = vld [vmem:[#allocation3 + $0x90] sm:$0xff]
  %v819 = vld [vmem:[#allocation3 + $0x98] sm:$0xff]
  %v820 = vld [vmem:[#allocation3 + $0xa0] sm:$0xff]
  %v821 = vld [vmem:[#allocation3 + $0xa8] sm:$0xff]
  %v822 = vld [vmem:[#allocation3 + $0xb0] sm:$0xff]
  %v823 = vld [vmem:[#allocation3 + $0xb8] sm:$0xff]
  %v824 = vld [vmem:[#allocation3 + $0xc0] sm:$0xff]
  %v825 = vld [vmem:[#allocation3 + $0xc8] sm:$0xff]
  %v826 = vld [vmem:[#allocation3 + $0xd0] sm:$0xff]
  %v827 = vld [vmem:[#allocation3 + $0xd8] sm:$0xff]
  %v828 = vld [vmem:[#allocation3 + $0xe0] sm:$0xff]
  %v829 = vld [vmem:[#allocation3 + $0xe8] sm:$0xff]
  %v830 = vld [vmem:[#allocation3 + $0xf0] sm:$0xff]
  %v831 = vld [vmem:[#allocation3 + $0xf8] sm:$0xff]
  %v832 = vld [vmem:[#allocation3 + $0x100] sm:$0xff]
  %v833 = vld [vmem:[#allocation3 + $0x108] sm:$0xff]
  %v834 = vld [vmem:[#allocation3 + $0x110] sm:$0xff]
  %v835 = vld [vmem:[#allocation3 + $0x118] sm:$0xff]
  %v836 = vld [vmem:[#allocation3 + $0x120] sm:$0xff]
  %v837 = vld [vmem:[#allocation3 + $0x128] sm:$0xff]
  %v838 = vld [vmem:[#allocation3 + $0x130] sm:$0xff]
  %v839 = vld [vmem:[#allocation3 + $0x138] sm:$0xff]
  %v840 = vld [vmem:[#allocation3 + $0x140] sm:$0xff]
  %v841 = vld [vmem:[#allocation3 + $0x148] sm:$0xff]
  %v842 = vld [vmem:[#allocation3 + $0x150] sm:$0xff]
  %v843 = vld [vmem:[#allocation3 + $0x158] sm:$0xff]
  %v844 = vld [vmem:[#allocation3 + $0x160] sm:$0xff]
  %v845 = vld [vmem:[#allocation3 + $0x168] sm:$0xff]
  %v846 = vld [vmem:[#allocation3 + $0x170] sm:$0xff]
  %v847 = vld [vmem:[#allocation3 + $0x178] sm:$0xff]
  %848 = vmatprep.subr.mxu0 0.0
  %849 = vmatpush1.msra.mxu0 %v800
  %850 = vmatprep.subr.mxu0 0.0
  %851 = vmatpush1.msra.mxu0 %v801
  %852 = vmatprep.subr.mxu0 0.0
  %853 = vmatpush1.msra.mxu0 %v802
  %854 = vmatprep.subr.mxu0 0.0
  %855 = vmatpush1.msra.mxu0 %v803
  %856 = vmatprep.subr.mxu0 0.0
  %857 = vmatpush1.msra.mxu0 %v804
  %858 = vmatprep.subr.mxu0 0.0
  %859 = vmatpush1.msra.mxu0 %v805
  %860 = vmatprep.subr.mxu0 0.0
  %861 = vmatpush1.msra.mxu0 %v806
  %862 = vmatprep.subr.mxu0 0.0
  %863 = vmatpush1.msra.mxu0 %v807
  %864 = vmatprep.subr.mxu0 0.0
  %865 = vmatpush1.msra.mxu0 %v808
  %866 = vmatprep.subr.mxu0 0.0
  %867 = vmatpush1.msra.mxu0 %v809
  %868 = vmatprep.subr.mxu0 0.0
  %869 = vmatpush1.msra.mxu0 %v810
  %870 = vmatprep.subr.mxu0 0.0
  %871 = vmatpush1.msra.mxu0 %v811
  %872 = vmatprep.subr.mxu0 0.0
  %873 = vmatpush1.msra.mxu0 %v812
  %874 = vmatprep.subr.mxu0 0.0
  %875 = vmatpush1.msra.mxu0 %v813
  %876 = vmatprep.subr.mxu0 0.0
  %877 = vmatpush1.msra.mxu0 %v814
  %878 = vmatprep.subr.mxu0 0.0
  %879 = vmatpush1.msra.mxu0 %v815
  %880 = vmatprep.subr.mxu0 0.0
  %881 = vmatpush1.msra.mxu0 %v816
  %882 = vmatprep.subr.mxu0 0.0
  %883 = vmatpush1.msra.mxu0 %v817
  %884 = vmatprep.subr.mxu0 0.0
  %885 = vmatpush1.msra.mxu0 %v818
  %886 = vmatprep.subr.mxu0 0.0
  %887 = vmatpush1.msra.mxu0 %v819
  %888 = vmatprep.subr.mxu0 0.0
  %889 = vmatpush1.msra.mxu0 %v820
  %890 = vmatprep.subr.mxu0 0.0
  %891 = vmatpush1.msra.mxu0 %v821
  %892 = vmatprep.subr.mxu0 0.0
  %893 = vmatpush1.msra.mxu0 %v822
  %894 = vmatprep.subr.mxu0 0.0
  %895 = vmatpush1.msra.mxu0 %v823
  %896 = vmatprep.subr.mxu0 0.0
  %897 = vmatpush1.msra.mxu0 %v824
  %898 = vmatprep.subr.mxu0 0.0
  %899 = vmatpush1.msra.mxu0 %v825
  %900 = vmatprep.subr.mxu0 0.0
  %901 = vmatpush1.msra.mxu0 %v826
  %902 = vmatprep.subr.mxu0 0.0
  %903 = vmatpush1.msra.mxu0 %v827
  %904 = vmatprep.subr.mxu0 0.0
  %905 = vmatpush1.msra.mxu0 %v828
  %906 = vmatprep.subr.mxu0 0.0
  %907 = vmatpush1.msra.mxu0 %v829
  %908 = vmatprep.subr.mxu0 0.0
  %909 = vmatpush1.msra.mxu0 %v830
  %910 = vmatprep.subr.mxu0 0.0
  %911 = vmatpush1.msra.mxu0 %v831
  %912 = vmatprep.mubr.f32.mxu0 %v792
  %913 = vmatmul.mubr.f32.gmra.mrb[0].mxu0 %v791
  %v914 = vpop.f32.mrb[0].mxu0
  %v915 = vadd.f32 0.0, %v914
  %v916 = vpop.f32.mrb[0].mxu0
  %917 = vmatprep.mubr.f32.mxu0 %v795
  %918 = vmatmul.mubr.f32.gmra.mrb[0].mxu0 %v794
  %v919 = vpop.f32.mrb[0].mxu0
  %v920 = vadd.f32 0.0, %v919
  %v921 = vpop.f32.mrb[0].mxu0
  %922 = vmatprep.mubr.f32.mxu0 %v798
  %923 = vmatmul.mubr.f32.gmra.mrb[0].mxu0 %v797
  %v924 = vpop.f32.mrb[0].mxu0
  %v925 = vadd.f32 0.0, %v924
  %v926 = vpop.f32.mrb[0].mxu0
  %927 = vdwg.mxu0
  %928 = vmatprep.subr.mxu0 0.0
  %929 = vmatpush1.msra.mxu0 %v832
  %930 = vmatprep.subr.mxu0 0.0
  %931 = vmatpush1.msra.mxu0 %v833
  %932 = vmatprep.subr.mxu0 0.0
  %933 = vmatpush1.msra.mxu0 %v834
  %934 = vmatprep.subr.mxu0 0.0
  %935 = vmatpush1.msra.mxu0 %v835
  %936 = vmatprep.subr.mxu0 0.0
  %937 = vmatpush1.msra.mxu0 %v836
  %938 = vmatprep.subr.mxu0 0.0
  %939 = vmatpush1.msra.mxu0 %v837
  %940 = vmatprep.subr.mxu0 0.0
  %941 = vmatpush1.msra.mxu0 %v838
  %942 = vmatprep.subr.mxu0 0.0
  %943 = vmatpush1.msra.mxu0 %v839
  %944 = vmatprep.subr.mxu0 0.0
  %945 = vmatpush1.msra.mxu0 %v840
  %946 = vmatprep.subr.mxu0 0.0
  %947 = vmatpush1.msra.mxu0 %v841
  %948 = vmatprep.subr.mxu0 0.0
  %949 = vmatpush1.msra.mxu0 %v842
  %950 = vmatprep.subr.mxu0 0.0
  %951 = vmatpush1.msra.mxu0 %v843
  %952 = vmatprep.subr.mxu0 0.0
  %953 = vmatpush1.msra.mxu0 %v844
  %954 = vmatprep.subr.mxu0 0.0
  %955 = vmatpush1.msra.mxu0 %v845
  %956 = vmatprep.subr.mxu0 0.0
  %957 = vmatpush1.msra.mxu0 %v846
  %958 = vmatprep.subr.mxu0 0.0
  %959 = vmatpush1.msra.mxu0 %v847
  %960 = vmatprep.subr.mxu0 0.0
  %961 = vmatpush1.msra.mxu0 0.0
  %962 = vmatprep.subr.mxu0 0.0
  %963 = vmatpush1.msra.mxu0 0.0
  %964 = vmatprep.subr.mxu0 0.0
  %965 = vmatpush1.msra.mxu0 0.0
  %966 = vmatprep.subr.mxu0 0.0
  %967 = vmatpush1.msra.mxu0 0.0
  %968 = vmatprep.subr.mxu0 0.0
  %969 = vmatpush1.msra.mxu0 0.0
  %970 = vmatprep.subr.mxu0 0.0
  %971 = vmatpush1.msra.mxu0 0.0
  %972 = vmatprep.subr.mxu0 0.0
  %973 = vmatpush1.msra.mxu0 0.0
  %974 = vmatprep.subr.mxu0 0.0
  %975 = vmatpush1.msra.mxu0 0.0
  %976 = vmatprep.subr.mxu0 0.0
  %977 = vmatpush1.msra.mxu0 0.0
  %978 = vmatprep.subr.mxu0 0.0
  %979 = vmatpush1.msra.mxu0 0.0
  %980 = vmatprep.subr.mxu0 0.0
  %981 = vmatpush1.msra.mxu0 0.0
  %982 = vmatprep.subr.mxu0 0.0
  %983 = vmatpush1.msra.mxu0 0.0
  %984 = vmatprep.subr.mxu0 0.0
  %985 = vmatpush1.msra.mxu0 0.0
  %986 = vmatprep.subr.mxu0 0.0
  %987 = vmatpush1.msra.mxu0 0.0
  %988 = vmatprep.subr.mxu0 0.0
  %989 = vmatpush1.msra.mxu0 0.0
  %990 = vmatprep.subr.mxu0 0.0
  %991 = vmatpush1.msra.mxu0 0.0
  %992 = vmatprep.mubr.f32.mxu0 0.0
  %993 = vmatmul.mubr.f32.gmra.mrb[0].mxu0 %v793
  %v994 = vpop.f32.mrb[0].mxu0
  %v995 = vadd.f32 %v915, %v994
  %v996 = vpop.f32.mrb[0].mxu0
  %997 = vmatprep.mubr.f32.mxu0 0.0
  %998 = vmatmul.mubr.f32.gmra.mrb[0].mxu0 %v796
  %v999 = vpop.f32.mrb[0].mxu0
  %v1000 = vadd.f32 %v920, %v999
  %v1001 = vpop.f32.mrb[0].mxu0
  %1002 = vmatprep.mubr.f32.mxu0 0.0
  %1003 = vmatmul.mubr.f32.gmra.mrb[0].mxu0 %v799
  %v1004 = vpop.f32.mrb[0].mxu0
  %v1005 = vadd.f32 %v925, %v1004
  %v1006 = vpop.f32.mrb[0].mxu0
  %1007 = vdwg.mxu0
  %1012 = vrot.lane.b32.xlu0 %v79, 1
  %v1013 = vpop.permute.xlu0 %1012
  %1014 = vrot.lane.b32.xlu0 %v80, 1
  %v1015 = vpop.permute.xlu0 %1014
  %1016 = vrot.lane.b32.xlu0 %v81, 1
  %v1017 = vpop.permute.xlu0 %1016
  %1018 = vrot.lane.b32.xlu0 %v82, 1
  %v1019 = vpop.permute.xlu0 %1018
  %vm1024 = vcmask 531464
  %1025 = vst.msk [vmem:[#allocation4] sm:$0xff] %vm1024, %v1013
  %1026 = vst.msk [vmem:[#allocation4 + $0x8] sm:$0xff] %vm1024, %v1015
  %1027 = vst.msk [vmem:[#allocation4 + $0x10] sm:$0xff] %vm1024, %v1017
  %1028 = vst.msk [vmem:[#allocation4 + $0x18] sm:$0xff] %vm1024, %v1019
  %v1029 = vld [vmem:[#allocation4] sm:$0xff]
  %v1030 = vld [vmem:[#allocation4 + $0x8] sm:$0xff]
  %v1031 = vld [vmem:[#allocation4 + $0x10] sm:$0xff]
  %v1032 = vld [vmem:[#allocation4 + $0x18] sm:$0xff]
  %1037 = vrot.lane.b32.xlu0 %v1029, 127
  %v1038 = vpop.permute.xlu0 %1037
  %1039 = vrot.lane.b32.xlu0 %v1030, 127
  %v1040 = vpop.permute.xlu0 %1039
  %1041 = vrot.lane.b32.xlu0 %v1031, 127
  %v1042 = vpop.permute.xlu0 %1041
  %1043 = vrot.lane.b32.xlu0 %v1032, 127
  %v1044 = vpop.permute.xlu0 %1043
  %v1049 = vmax.f32 %v1029, %v1038
  %v1050 = vmax.f32 %v1030, %v1040
  %v1051 = vmax.f32 %v1031, %v1042
  %v1052 = vmax.f32 %v1032, %v1044
  %1053 = vrot.lane.b32.xlu0 %v1029, 126
  %v1054 = vpop.permute.xlu0 %1053
  %1055 = vrot.lane.b32.xlu0 %v1030, 126
  %v1056 = vpop.permute.xlu0 %1055
  %1057 = vrot.lane.b32.xlu0 %v1031, 126
  %v1058 = vpop.permute.xlu0 %1057
  %1059 = vrot.lane.b32.xlu0 %v1032, 126
  %v1060 = vpop.permute.xlu0 %1059
  %v1065 = vmax.f32 %v1049, %v1054
  %v1066 = vmax.f32 %v1050, %v1056
  %v1067 = vmax.f32 %v1051, %v1058
  %v1068 = vmax.f32 %v1052, %v1060
  %1069 = vst.msk [vmem:[#allocation5] sm:$0xff] %vm172, %v1065
  %1070 = vst.msk [vmem:[#allocation5 + $0x8] sm:$0xff] %vm172, %v1066
  %1071 = vst.msk [vmem:[#allocation5 + $0x10] sm:$0xff] %vm172, %v1067
  %1072 = vst.msk [vmem:[#allocation5 + $0x18] sm:$0xff] %vm172, %v1068
  %1073 = vrot.lane.b32.xlu0 %v79, 65
  %v1074 = vpop.permute.xlu0 %1073
  %1075 = vrot.lane.b32.xlu0 %v80, 65
  %v1076 = vpop.permute.xlu0 %1075
  %1077 = vrot.lane.b32.xlu0 %v81, 65
  %v1078 = vpop.permute.xlu0 %1077
  %1079 = vrot.lane.b32.xlu0 %v82, 65
  %v1080 = vpop.permute.xlu0 %1079
  %1085 = vst.msk [vmem:[#allocation4] sm:$0xff] %vm1024, %v1074
  %1086 = vst.msk [vmem:[#allocation4 + $0x8] sm:$0xff] %vm1024, %v1076
  %1087 = vst.msk [vmem:[#allocation4 + $0x10] sm:$0xff] %vm1024, %v1078
  %1088 = vst.msk [vmem:[#allocation4 + $0x18] sm:$0xff] %vm1024, %v1080
  %v1089 = vld [vmem:[#allocation4] sm:$0xff]
  %v1090 = vld [vmem:[#allocation4 + $0x8] sm:$0xff]
  %v1091 = vld [vmem:[#allocation4 + $0x10] sm:$0xff]
  %v1092 = vld [vmem:[#allocation4 + $0x18] sm:$0xff]
  %1097 = vrot.lane.b32.xlu0 %v1089, 127
  %v1098 = vpop.permute.xlu0 %1097
  %1099 = vrot.lane.b32.xlu0 %v1090, 127
  %v1100 = vpop.permute.xlu0 %1099
  %1101 = vrot.lane.b32.xlu0 %v1091, 127
  %v1102 = vpop.permute.xlu0 %1101
  %1103 = vrot.lane.b32.xlu0 %v1092, 127
  %v1104 = vpop.permute.xlu0 %1103
  %v1109 = vmax.f32 %v1089, %v1098
  %v1110 = vmax.f32 %v1090, %v1100
  %v1111 = vmax.f32 %v1091, %v1102
  %v1112 = vmax.f32 %v1092, %v1104
  %1113 = vrot.lane.b32.xlu0 %v1089, 126
  %v1114 = vpop.permute.xlu0 %1113
  %1115 = vrot.lane.b32.xlu0 %v1090, 126
  %v1116 = vpop.permute.xlu0 %1115
  %1117 = vrot.lane.b32.xlu0 %v1091, 126
  %v1118 = vpop.permute.xlu0 %1117
  %1119 = vrot.lane.b32.xlu0 %v1092, 126
  %v1120 = vpop.permute.xlu0 %1119
  %v1125 = vmax.f32 %v1109, %v1114
  %v1126 = vmax.f32 %v1110, %v1116
  %v1127 = vmax.f32 %v1111, %v1118
  %v1128 = vmax.f32 %v1112, %v1120
  %1133 = vrot.lane.b32.xlu0 %v1125, 64
  %v1134 = vpop.permute.xlu0 %1133
  %1135 = vrot.lane.b32.xlu0 %v1126, 64
  %v1136 = vpop.permute.xlu0 %1135
  %1137 = vrot.lane.b32.xlu0 %v1127, 64
  %v1138 = vpop.permute.xlu0 %1137
  %1139 = vrot.lane.b32.xlu0 %v1128, 64
  %v1140 = vpop.permute.xlu0 %1139
  %1145 = vst.msk [vmem:[#allocation5] sm:$0xff] %vm413, %v1134
  %1146 = vst.msk [vmem:[#allocation5 + $0x8] sm:$0xff] %vm413, %v1136
  %1147 = vst.msk [vmem:[#allocation5 + $0x10] sm:$0xff] %vm413, %v1138
  %1148 = vst.msk [vmem:[#allocation5 + $0x18] sm:$0xff] %vm413, %v1140
  %v1149 = vld [vmem:[%s3] sm:$0xff]
  %v1150 = vld [vmem:[#allocation5] sm:$0xff]
  %v1151 = vld [vmem:[#allocation5 + $0x8] sm:$0xff]
  %v1152 = vld [vmem:[#allocation5 + $0x10] sm:$0xff]
  %v1153 = vld [vmem:[#allocation5 + $0x18] sm:$0xff]
  %v1155 = vsel %vm84, %v1149, 0
  %1157 = vmatprep.subr.mxu0 0.0
  %1158 = vmatpush1.msra.mxu0 %v1150
  %1159 = vmatprep.subr.mxu0 0.0
  %1160 = vmatpush1.msra.mxu0 %v1151
  %1161 = vmatprep.subr.mxu0 0.0
  %1162 = vmatpush1.msra.mxu0 %v1152
  %1163 = vmatprep.subr.mxu0 0.0
  %1164 = vmatpush1.msra.mxu0 %v1153
  %1165 = vmatprep.subr.mxu0 0.0
  %1166 = vmatpush1.msra.mxu0 0.0
  %1167 = vmatprep.subr.mxu0 0.0
  %1168 = vmatpush1.msra.mxu0 0.0
  %1169 = vmatprep.subr.mxu0 0.0
  %1170 = vmatpush1.msra.mxu0 0.0
  %1171 = vmatprep.subr.mxu0 0.0
  %1172 = vmatpush1.msra.mxu0 0.0
  %1173 = vmatprep.subr.mxu0 0.0
  %1174 = vmatpush1.msra.mxu0 0.0
  %1175 = vmatprep.subr.mxu0 0.0
  %1176 = vmatpush1.msra.mxu0 0.0
  %1177 = vmatprep.subr.mxu0 0.0
  %1178 = vmatpush1.msra.mxu0 0.0
  %1179 = vmatprep.subr.mxu0 0.0
  %1180 = vmatpush1.msra.mxu0 0.0
  %1181 = vmatprep.subr.mxu0 0.0
  %1182 = vmatpush1.msra.mxu0 0.0
  %1183 = vmatprep.subr.mxu0 0.0
  %1184 = vmatpush1.msra.mxu0 0.0
  %1185 = vmatprep.subr.mxu0 0.0
  %1186 = vmatpush1.msra.mxu0 0.0
  %1187 = vmatprep.subr.mxu0 0.0
  %1188 = vmatpush1.msra.mxu0 0.0
  %1189 = vmatprep.subr.mxu0 0.0
  %1190 = vmatpush1.msra.mxu0 0.0
  %1191 = vmatprep.subr.mxu0 0.0
  %1192 = vmatpush1.msra.mxu0 0.0
  %1193 = vmatprep.subr.mxu0 0.0
  %1194 = vmatpush1.msra.mxu0 0.0
  %1195 = vmatprep.subr.mxu0 0.0
  %1196 = vmatpush1.msra.mxu0 0.0
  %1197 = vmatprep.subr.mxu0 0.0
  %1198 = vmatpush1.msra.mxu0 0.0
  %1199 = vmatprep.subr.mxu0 0.0
  %1200 = vmatpush1.msra.mxu0 0.0
  %1201 = vmatprep.subr.mxu0 0.0
  %1202 = vmatpush1.msra.mxu0 0.0
  %1203 = vmatprep.subr.mxu0 0.0
  %1204 = vmatpush1.msra.mxu0 0.0
  %1205 = vmatprep.subr.mxu0 0.0
  %1206 = vmatpush1.msra.mxu0 0.0
  %1207 = vmatprep.subr.mxu0 0.0
  %1208 = vmatpush1.msra.mxu0 0.0
  %1209 = vmatprep.subr.mxu0 0.0
  %1210 = vmatpush1.msra.mxu0 0.0
  %1211 = vmatprep.subr.mxu0 0.0
  %1212 = vmatpush1.msra.mxu0 0.0
  %1213 = vmatprep.subr.mxu0 0.0
  %1214 = vmatpush1.msra.mxu0 0.0
  %1215 = vmatprep.subr.mxu0 0.0
  %1216 = vmatpush1.msra.mxu0 0.0
  %1217 = vmatprep.subr.mxu0 0.0
  %1218 = vmatpush1.msra.mxu0 0.0
  %1219 = vmatprep.subr.mxu0 0.0
  %1220 = vmatpush1.msra.mxu0 0.0
  %1221 = vmatprep.mubr.f32.mxu0 0.0
  %1222 = vmatmul.mubr.f32.gmra.mrb[0].mxu0 %v1155
  %v1223 = vpop.f32.mrb[0].mxu0
  %v1224 = vadd.f32 0.0, %v1223
  %v1225 = vpop.f32.mrb[0].mxu0
  %1226 = vdwg.mxu0
  %v1227 = vld [vmem:[%s4] sm:$0xff]
  %v1228 = vld [vmem:[%s4 + $0x8] sm:$0xff]
  %v1229 = vld [vmem:[%s4 + $0x10] sm:$0xff]
  %v1230 = vld [vmem:[%s4 + $0x18] sm:$0xff]
  %v1231 = vld [vmem:[%s5] sm:$0xff]
  %v1232 = vld [vmem:[%s5 + $0x8] sm:$0xff]
  %v1233 = vld [vmem:[%s5 + $0x10] sm:$0xff]
  %v1234 = vld [vmem:[%s5 + $0x18] sm:$0xff]
  %1235 = vadd.xlane.f32.xlu0 %v995
  %v1236 = vpop.xlane.xlu0 %1235
  %1237 = vadd.xlane.f32.xlu0 %v1000
  %v1238 = vpop.xlane.xlu0 %1237
  %1239 = vadd.xlane.f32.xlu0 %v1005
  %v1240 = vpop.xlane.xlu0 %1239
  %v1241 = vrcp.pop 128.0
  %v1242 = vmul.f32 %v1236, %v1241
  %v1243 = vmul.f32 %v1238, %v1241
  %v1244 = vmul.f32 %v1240, %v1241
  %v1245 = vsub.f32 %v995, %v1242
  %v1246 = vsub.f32 %v1000, %v1243
  %v1247 = vsub.f32 %v1005, %v1244
  %v1248 = vmul.f32 %v1245, %v1245
  %v1249 = vmul.f32 %v1246, %v1246
  %v1250 = vmul.f32 %v1247, %v1247
  %1251 = vadd.xlane.f32.xlu0 %v1248
  %v1252 = vpop.xlane.xlu0 %1251
  %1253 = vadd.xlane.f32.xlu0 %v1249
  %v1254 = vpop.xlane.xlu0 %1253
  %1255 = vadd.xlane.f32.xlu0 %v1250
  %v1256 = vpop.xlane.xlu0 %1255
  %v1257 = vmul.f32 %v1252, %v1241
  %v1258 = vmul.f32 %v1254, %v1241
  %v1259 = vmul.f32 %v1256, %v1241
  %v1260 = vadd.f32 %v1257, 1e-05
  %v1261 = vadd.f32 %v1258, 1e-05
  %v1262 = vadd.f32 %v1259, 1e-05
  %v1263 = vrsqrt.pop %v1260
  %v1264 = vrsqrt.pop %v1261
  %v1265 = vrsqrt.pop %v1262
  %v1266 = vmul.f32 %v1245, %v1263
  %v1267 = vmul.f32 %v1246, %v1264
  %v1268 = vmul.f32 %v1247, %v1265
  %1270 = vset.pattern.permute.xlu0 0
  %1271 = vperm.xlu0 %1270, %v1227
  %v1272 = vpop.permute.xlu0 %1271
  %1275 = vset.pattern.permute.xlu0 0
  %1276 = vperm.xlu0 %1275, %v1228
  %v1277 = vpop.permute.xlu0 %1276
  %1280 = vset.pattern.permute.xlu0 0
  %1281 = vperm.xlu0 %1280, %v1229
  %v1282 = vpop.permute.xlu0 %1281
  %v1284 = vmul.f32 %v1266, %v1272
  %v1285 = vmul.f32 %v1267, %v1277
  %v1286 = vmul.f32 %v1268, %v1282
  %1288 = vset.pattern.permute.xlu0 0
  %1289 = vperm.xlu0 %1288, %v1231
  %v1290 = vpop.permute.xlu0 %1289
  %1293 = vset.pattern.permute.xlu0 0
  %1294 = vperm.xlu0 %1293, %v1232
  %v1295 = vpop.permute.xlu0 %1294
  %1298 = vset.pattern.permute.xlu0 0
  %1299 = vperm.xlu0 %1298, %v1233
  %v1300 = vpop.permute.xlu0 %1299
  %v1302 = vadd.f32 %v1284, %v1290
  %v1303 = vadd.f32 %v1285, %v1295
  %v1304 = vadd.f32 %v1286, %v1300
  %v1305 = vmax.f32 %v1302, 0.0
  %v1306 = vmax.f32 %v1303, 0.0
  %v1307 = vmax.f32 %v1304, 0.0
  %1308 = vst [vmem:[%s6] sm:$0xff] %v1305
  %1309 = vst [vmem:[%s6 + $0x8] sm:$0xff] %v1306
  %1310 = vst [vmem:[%s6 + $0x10] sm:$0xff] %v1307
  %1311 = vadd.xlane.f32.xlu0 %v1224
  %v1312 = vpop.xlane.xlu0 %1311
  %v1313 = vmul.f32 %v1312, %v1241
  %v1314 = vsub.f32 %v1224, %v1313
  %v1315 = vmul.f32 %v1314, %v1314
  %1316 = vadd.xlane.f32.xlu0 %v1315
  %v1317 = vpop.xlane.xlu0 %1316
  %v1318 = vmul.f32 %v1317, %v1241
  %v1319 = vadd.f32 %v1318, 1e-05
  %v1320 = vrsqrt.pop %v1319
  %v1321 = vmul.f32 %v1314, %v1320
  %1323 = vset.pattern.permute.xlu0 0
  %1324 = vperm.xlu0 %1323, %v1230
  %v1325 = vpop.permute.xlu0 %1324
  %v1327 = vmul.f32 %v1321, %v1325
  %1329 = vset.pattern.permute.xlu0 0
  %1330 = vperm.xlu0 %1329, %v1234
  %v1331 = vpop.permute.xlu0 %1330
  %v1333 = vadd.f32 %v1327, %v1331
  %v1334 = vmax.f32 %v1333, 0.0
  %1335 = vst [vmem:[%s6 + $0x18] sm:$0xff] %v1334
  // Predicated region
  $region26: #{inception_block_forward.5} parent=0 // pred_check
    _
  $region27: #{inception_block_forward.5} parent=0 // pred_check_branch
    %1337 = sbr.rel (0) target = $region29
  $region28: #{inception_block_forward.5} parent=0 // pred_region
    _
  $region29: #{inception_block_forward.5} parent=0 // pred_fallthru
    _
  // Predicated region
  $region30: #{inception_block_forward.5} parent=0 // pred_check
    _
  $region31: #{inception_block_forward.5} parent=0 // pred_check_branch
    %1339 = sbr.rel (0) target = $region33
  $region32: #{inception_block_forward.5} parent=0 // pred_region
    _
  $region33: #{inception_block_forward.5} parent=0 // pred_fallthru
    _

</llo_original>
